<compile_context>
chip_gen: v5e
topology: v5e:2x2
jax: 0.10.0
libtpu: 0.0.40
codegen_flags: <defaults>
</compile_context>

<pallas_src>
import jax
import jax.numpy as jnp
from jax import lax
from jax.experimental import pallas as pl
from jax.experimental.pallas import tpu as pltpu

# ----------------------------- configuration --------------------------------
NUM_CLASSES = 4
FEATURE_SIZE = 256          # LSTM input size == projection output dim
HIDDEN = 32                 # LSTM hidden size
T_SR = 8                    # logmels time steps
T_TR = 8                    # bEmb time steps
T_TOTAL = T_SR + T_TR
D_SR = 40                   # logmel feature dim  (projSr: 40 -> 256)
D_TR = 768                  # bert-embedding dim  (projTr: 768 -> 256)
TILE_B = 8                  # examples per grid step (multiple of 8)


# ------------------------------- the kernel ---------------------------------
def _speech_cls_kernel(
    logmels_ref,      # (1, T_SR*TILE_B, D_SR)  time-major within tile, f32
    bemb_ref,         # (1, T_TR*TILE_B, D_TR)  time-major within tile, bf16
    wsr_g_ref,        # (D_SR, 8H)  projSr folded into [fwd|bwd] gate weights
    bsr_g_ref,        # (1, 8H)
    wtr_g_ref,        # (D_TR, 8H)  bf16
    btr_g_ref,        # (1, 8H)
    whh_f_ref,        # (H, 4H)
    whh_b_ref,        # (H, 4H)
    wfc_f_ref,        # (H, C)
    wfc_b_ref,        # (H, C)
    bfc_ref,          # (1, C)
    out_ref,          # (TILE_B, C)
    pre_ref,          # scratch (T_TOTAL*TILE_B, 8H) f32
):
    f32 = jnp.float32
    H = HIDDEN
    G = 4 * H
    T = T_TOTAL
    TB = TILE_B

    # ---- pre-gate activations for all timesteps / all TILE_B examples,
    #      both directions at once: columns [0:4H] = fwd gates [i|f|g|o],
    #      columns [4H:8H] = bwd gates [i|f|g|o].  Projections are folded
    #      into the weights, so these two matmuls are the whole input path.
    pre_ref[0:T_SR * TB, :] = (
        jnp.dot(logmels_ref[0], wsr_g_ref[...], preferred_element_type=f32)
        + bsr_g_ref[...])
    pre_ref[T_SR * TB:T * TB, :] = (
        jnp.dot(bemb_ref[0], wtr_g_ref[...], preferred_element_type=f32)
        + btr_g_ref[...])

    whh_f = whh_f_ref[...]
    whh_b = whh_b_ref[...]
    zeros = jnp.zeros((TB, H), f32)

    # ---- fused fwd/bwd recurrence; running h-sums replace per-step stores ----
    def body(t, carry):
        h_f, c_f, h_b, c_b, s_f, s_b = carry
        pf = pre_ref[pl.ds(t * TB, TB), :]              # (TB, 8H)
        pb = pre_ref[pl.ds((T - 1 - t) * TB, TB), :]    # (TB, 8H)
        gf = pf[:, 0:G] + jnp.dot(h_f, whh_f, preferred_element_type=f32)
        gb = pb[:, G:2 * G] + jnp.dot(h_b, whh_b, preferred_element_type=f32)
        # full-width nonlinearities, slice only for the elementwise products
        sg_f = jax.nn.sigmoid(gf)
        th_f = jnp.tanh(gf)
        sg_b = jax.nn.sigmoid(gb)
        th_b = jnp.tanh(gb)
        c_f = sg_f[:, H:2 * H] * c_f + sg_f[:, 0:H] * th_f[:, 2 * H:3 * H]
        c_b = sg_b[:, H:2 * H] * c_b + sg_b[:, 0:H] * th_b[:, 2 * H:3 * H]
        h_f = sg_f[:, 3 * H:4 * H] * jnp.tanh(c_f)
        h_b = sg_b[:, 3 * H:4 * H] * jnp.tanh(c_b)
        return (h_f, c_f, h_b, c_b, s_f + h_f, s_b + h_b)

    carry = (zeros, zeros, zeros, zeros, zeros, zeros)
    carry = lax.fori_loop(0, T, body, carry, unroll=True)
    s_f, s_b = carry[4], carry[5]

    # ---- fc + temporal mean pool (linear -> fold onto h-sums) + sigmoid ----
    logits = (jnp.dot(s_f, wfc_f_ref[...], preferred_element_type=f32)
              + jnp.dot(s_b, wfc_b_ref[...], preferred_element_type=f32)
              ) * (1.0 / T) + bfc_ref[...]
    out_ref[...] = jax.nn.sigmoid(logits)


# ------------------------------- the wrapper ---------------------------------
def prepare_params(params):
    """Exact offline algebraic folding of the PyTorch-convention parameters.

    projSr/projTr are Linear layers feeding only W_ih, so
      pre = (x @ Wp^T + bp) @ Wih^T + b_ih + b_hh
          = x @ (Wp^T @ Wih^T) + (bp @ Wih^T + b_ih + b_hh)
    and the fwd/bwd input weights are concatenated laterally (256 output lanes).
    """
    (wsr, bsr, wtr, btr,
     wih_f, whh_f, bf,
     wih_b, whh_b, bb,
     wfc_f, wfc_b, bfc) = params
    wih_cat = jnp.concatenate([wih_f, wih_b], axis=1)     # (256, 8H)
    b_cat = jnp.concatenate([bf, bb], axis=1)             # (1, 8H)
    wsr_g = wsr @ wih_cat                                 # (40, 8H)
    bsr_g = bsr @ wih_cat + b_cat
    wtr_g = (wtr @ wih_cat).astype(jnp.bfloat16)          # (768, 8H), bf16 stream
    btr_g = btr @ wih_cat + b_cat
    return (wsr_g, bsr_g, wtr_g, btr_g, whh_f, whh_b, wfc_f, wfc_b, bfc)


def speech_classifier_forward(logmels, bemb, params):
    B = logmels.shape[0]
    C = NUM_CLASSES
    H = HIDDEN
    assert B % TILE_B == 0 and TILE_B % 8 == 0
    nb = B // TILE_B
    G2 = 8 * H

    # Time-major-within-tile layout: each grid step gets a dense (T*TILE_B, D)
    # slab whose rows are ordered t*TILE_B + b, so each recurrence step reads
    # one contiguous (TILE_B, 8H) block of the pre-gate scratch.
    lm = logmels.reshape(nb, TILE_B, T_SR, D_SR).transpose(0, 2, 1, 3)
    lm = lm.reshape(nb, T_SR * TILE_B, D_SR)
    be = bemb.astype(jnp.bfloat16).reshape(nb, TILE_B, T_TR, D_TR)
    be = be.transpose(0, 2, 1, 3).reshape(nb, T_TR * TILE_B, D_TR)

    (wsr_g, bsr_g, wtr_g, btr_g,
     whh_f, whh_b, wfc_f, wfc_b, bfc) = prepare_params(params)

    out = pl.pallas_call(
        _speech_cls_kernel,
        out_shape=jax.ShapeDtypeStruct((B, C), jnp.float32),
        grid_spec=pltpu.PrefetchScalarGridSpec(
            num_scalar_prefetch=0,
            grid=(nb,),
            in_specs=[
                pl.BlockSpec((1, T_SR * TILE_B, D_SR), lambda g: (g, 0, 0)),  # logmels tile
                pl.BlockSpec((1, T_TR * TILE_B, D_TR), lambda g: (g, 0, 0)),  # bEmb tile
                pl.BlockSpec((D_SR, G2), lambda g: (0, 0)),    # fused projSr->gates W
                pl.BlockSpec((1, G2), lambda g: (0, 0)),       # fused bias (sr path)
                pl.BlockSpec((D_TR, G2), lambda g: (0, 0)),    # fused projTr->gates W (bf16)
                pl.BlockSpec((1, G2), lambda g: (0, 0)),       # fused bias (tr path)
                pl.BlockSpec((H, 4 * H), lambda g: (0, 0)),    # W_hh fwd^T
                pl.BlockSpec((H, 4 * H), lambda g: (0, 0)),    # W_hh bwd^T
                pl.BlockSpec((H, C), lambda g: (0, 0)),        # fc W fwd half^T
                pl.BlockSpec((H, C), lambda g: (0, 0)),        # fc W bwd half^T
                pl.BlockSpec((1, C), lambda g: (0, 0)),        # fc b
            ],
            out_specs=pl.BlockSpec((TILE_B, C), lambda g: (g, 0)),
            scratch_shapes=[
                pltpu.VMEM((T_TOTAL * TILE_B, G2), jnp.float32),   # pre-gates
            ],
        ),
        compiler_params=pltpu.CompilerParams(
            dimension_semantics=("parallel",)),
    )(lm, be, wsr_g, bsr_g, wtr_g, btr_g, whh_f, whh_b, wfc_f, wfc_b, bfc)

    # (B, C) -> (B, C, 1), matching AdaptiveAvgPool1d(1) on permuted (B, C, T)
    return out[:, :, None]


# --------------------------- deterministic params ----------------------------
def init_params(key):
    """PyTorch-convention (transposed) raw parameters; folding happens in the wrapper."""
    ks = jax.random.split(key, 13)
    s = 0.05
    f32 = jnp.float32
    H, C = HIDDEN, NUM_CLASSES
    wsr = s * jax.random.normal(ks[0], (D_SR, FEATURE_SIZE), f32)       # projSr W^T
    bsr = s * jax.random.normal(ks[1], (1, FEATURE_SIZE), f32)
    wtr = s * jax.random.normal(ks[2], (D_TR, FEATURE_SIZE), f32)       # projTr W^T
    btr = s * jax.random.normal(ks[3], (1, FEATURE_SIZE), f32)
    wih_f = s * jax.random.normal(ks[4], (FEATURE_SIZE, 4 * H), f32)    # [i|f|g|o]
    whh_f = s * jax.random.normal(ks[5], (H, 4 * H), f32)
    bf = s * jax.random.normal(ks[6], (1, 4 * H), f32)                  # b_ih + b_hh (fwd)
    wih_b = s * jax.random.normal(ks[7], (FEATURE_SIZE, 4 * H), f32)
    whh_b = s * jax.random.normal(ks[8], (H, 4 * H), f32)
    bb = s * jax.random.normal(ks[9], (1, 4 * H), f32)                  # b_ih + b_hh (bwd)
    wfc_f = s * jax.random.normal(ks[10], (H, C), f32)                  # fc W, fwd half^T
    wfc_b = s * jax.random.normal(ks[11], (H, C), f32)                  # fc W, bwd half^T
    bfc = s * jax.random.normal(ks[12], (1, C), f32)
    return (wsr, bsr, wtr, btr,
            wih_f, whh_f, bf,
            wih_b, whh_b, bb,
            wfc_f, wfc_b, bfc)


# --------------------------- pure-JAX reference ------------------------------
def reference_forward(logmels, bemb, params):
    (wsr, bsr, wtr, btr,
     wih_f, whh_f, bf,
     wih_b, whh_b, bb,
     wfc_f, wfc_b, bfc) = params
    H = HIDDEN
    x = jnp.concatenate([logmels @ wsr + bsr, bemb @ wtr + btr], axis=1)  # (B,T,256)
    B = x.shape[0]

    def run_dir(x_seq, wih, whh, b):
        def step(carry, xt):
            h, c = carry
            g = xt @ wih + h @ whh + b
            i = jax.nn.sigmoid(g[:, 0:H]); f = jax.nn.sigmoid(g[:, H:2 * H])
            gg = jnp.tanh(g[:, 2 * H:3 * H]); o = jax.nn.sigmoid(g[:, 3 * H:4 * H])
            c = f * c + i * gg
            h = o * jnp.tanh(c)
            return (h, c), h
        init = (jnp.zeros((B, H), jnp.float32), jnp.zeros((B, H), jnp.float32))
        _, hs = lax.scan(step, init, jnp.transpose(x_seq, (1, 0, 2)))
        return jnp.transpose(hs, (1, 0, 2))   # (B, T, H)

    h_f = run_dir(x, wih_f, whh_f, bf)
    h_b = run_dir(x[:, ::-1, :], wih_b, whh_b, bb)[:, ::-1, :]
    out = h_f @ wfc_f + h_b @ wfc_b + bfc     # (B, T, C)
    pooled = jnp.mean(out, axis=1)            # (B, C)
    return jax.nn.sigmoid(pooled)[:, :, None]


if __name__ == "__main__":
    key = jax.random.PRNGKey(0)
    k_logmels, k_bemb, k_params = jax.random.split(key, 3)

    B = 16                      # two grid steps of TILE_B=8 (>=2 for v7x dual-TC)
    logmels = jax.random.normal(k_logmels, (B, T_SR, D_SR), jnp.float32)
    bemb = jax.random.normal(k_bemb, (B, T_TR, D_TR), jnp.float32)
    params = init_params(k_params)

    fwd = jax.jit(speech_classifier_forward)
    out = jax.block_until_ready(fwd(logmels, bemb, params))
    assert out.shape == (B, NUM_CLASSES, 1), out.shape
    assert bool(jnp.all(jnp.isfinite(out)))

    ref = reference_forward(logmels, bemb, params)
    err = float(jnp.max(jnp.abs(out - ref)))
    assert err < 2e-2, f"max abs err vs reference: {err}"

    print("KERNEL_OK")
</pallas_src>

<mosaic_0001>
module attributes {stable_mosaic.version = 11 : i64} {
  func.func @_speech_cls_kernel(%arg0: i32, %arg1: memref<1x64x40xf32, #tpu.memory_space<vmem>>, %arg2: memref<1x64x768xbf16, #tpu.memory_space<vmem>>, %arg3: memref<40x256xf32, #tpu.memory_space<vmem>>, %arg4: memref<1x256xf32, #tpu.memory_space<vmem>>, %arg5: memref<768x256xbf16, #tpu.memory_space<vmem>>, %arg6: memref<1x256xf32, #tpu.memory_space<vmem>>, %arg7: memref<32x128xf32, #tpu.memory_space<vmem>>, %arg8: memref<32x128xf32, #tpu.memory_space<vmem>>, %arg9: memref<32x4xf32, #tpu.memory_space<vmem>>, %arg10: memref<32x4xf32, #tpu.memory_space<vmem>>, %arg11: memref<1x4xf32, #tpu.memory_space<vmem>>, %arg12: memref<8x4xf32, #tpu.memory_space<vmem>>, %arg13: memref<128x256xf32, #tpu.memory_space<vmem>>) attributes {dimension_semantics = [#tpu.dimension_semantics<parallel>], iteration_bounds = array<i64: 2>, scalar_prefetch = 0 : i64, scratch_operands = 1 : i64, tpu.core_type = #tpu.core_type<tc>, window_params = [{transform_indices = @transform_0, window_bounds = array<i64: 1, 64, 40>}, {transform_indices = @transform_1, window_bounds = array<i64: 1, 64, 768>}, {pipeline_mode = #tpu.pipeline_mode<synchronous>, transform_indices = @transform_2, window_bounds = array<i64: 40, 256>}, {pipeline_mode = #tpu.pipeline_mode<synchronous>, transform_indices = @transform_3, window_bounds = array<i64: 1, 256>}, {pipeline_mode = #tpu.pipeline_mode<synchronous>, transform_indices = @transform_4, window_bounds = array<i64: 768, 256>}, {pipeline_mode = #tpu.pipeline_mode<synchronous>, transform_indices = @transform_5, window_bounds = array<i64: 1, 256>}, {pipeline_mode = #tpu.pipeline_mode<synchronous>, transform_indices = @transform_6, window_bounds = array<i64: 32, 128>}, {pipeline_mode = #tpu.pipeline_mode<synchronous>, transform_indices = @transform_7, window_bounds = array<i64: 32, 128>}, {pipeline_mode = #tpu.pipeline_mode<synchronous>, transform_indices = @transform_8, window_bounds = array<i64: 32, 4>}, {pipeline_mode = #tpu.pipeline_mode<synchronous>, transform_indices = @transform_9, window_bounds = array<i64: 32, 4>}, {pipeline_mode = #tpu.pipeline_mode<synchronous>, transform_indices = @transform_10, window_bounds = array<i64: 1, 4>}, {transform_indices = @transform_11, window_bounds = array<i64: 8, 4>}]} {
    %c0 = arith.constant 0 : index
    %c0_0 = arith.constant 0 : index
    %c0_1 = arith.constant 0 : index
    %0 = vector.load %arg1[%c0, %c0_0, %c0_1] : memref<1x64x40xf32, #tpu.memory_space<vmem>>, vector<1x64x40xf32>
    %1 = vector.shape_cast %0 : vector<1x64x40xf32> to vector<64x40xf32>
    %c0_2 = arith.constant 0 : index
    %c0_3 = arith.constant 0 : index
    %2 = vector.load %arg3[%c0_2, %c0_3] : memref<40x256xf32, #tpu.memory_space<vmem>>, vector<40x256xf32>
    %cst = arith.constant dense<0.000000e+00> : vector<64x256xf32>
    %3 = tpu.matmul %1, %2, %cst {dimension_numbers = #tpu.dot_dimension_numbers<[1], [0], [0], [1], [0, 0, 1, 1], [], []>} : vector<64x40xf32>, vector<40x256xf32>, vector<64x256xf32> -> vector<64x256xf32>
    %c0_4 = arith.constant 0 : index
    %c0_5 = arith.constant 0 : index
    %4 = vector.load %arg4[%c0_4, %c0_5] : memref<1x256xf32, #tpu.memory_space<vmem>>, vector<1x256xf32>
    %5 = vector.broadcast %4 : vector<1x256xf32> to vector<64x256xf32>
    %6 = arith.addf %3, %5 : vector<64x256xf32>
    %c0_6 = arith.constant 0 : index
    %c0_7 = arith.constant 0 : index
    %7 = vector.load %arg13[%c0_6, %c0_7] : memref<128x256xf32, #tpu.memory_space<vmem>>, vector<64x256xf32>
    tpu.vector_store %arg13[%c0_6, %c0_7], %6 {strides = array<i32>} : memref<128x256xf32, #tpu.memory_space<vmem>>, vector<64x256xf32>,
    %c0_8 = arith.constant 0 : index
    %c0_9 = arith.constant 0 : index
    %c0_10 = arith.constant 0 : index
    %8 = vector.load %arg2[%c0_8, %c0_9, %c0_10] : memref<1x64x768xbf16, #tpu.memory_space<vmem>>, vector<1x64x768xbf16>
    %9 = vector.shape_cast %8 : vector<1x64x768xbf16> to vector<64x768xbf16>
    %c0_11 = arith.constant 0 : index
    %c0_12 = arith.constant 0 : index
    %10 = vector.load %arg5[%c0_11, %c0_12] : memref<768x256xbf16, #tpu.memory_space<vmem>>, vector<768x256xbf16>
    %cst_13 = arith.constant dense<0.000000e+00> : vector<64x256xf32>
    %11 = tpu.matmul %9, %10, %cst_13 {dimension_numbers = #tpu.dot_dimension_numbers<[1], [0], [0], [1], [0, 0, 1, 1], [], []>} : vector<64x768xbf16>, vector<768x256xbf16>, vector<64x256xf32> -> vector<64x256xf32>
    %c0_14 = arith.constant 0 : index
    %c0_15 = arith.constant 0 : index
    %12 = vector.load %arg6[%c0_14, %c0_15] : memref<1x256xf32, #tpu.memory_space<vmem>>, vector<1x256xf32>
    %13 = vector.broadcast %12 : vector<1x256xf32> to vector<64x256xf32>
    %14 = arith.addf %11, %13 : vector<64x256xf32>
    %c64 = arith.constant 64 : index
    %c0_16 = arith.constant 0 : index
    %15 = vector.load %arg13[%c64, %c0_16] : memref<128x256xf32, #tpu.memory_space<vmem>>, vector<64x256xf32>
    tpu.vector_store %arg13[%c64, %c0_16], %14 {strides = array<i32>} : memref<128x256xf32, #tpu.memory_space<vmem>>, vector<64x256xf32>,
    %c0_17 = arith.constant 0 : index
    %c0_18 = arith.constant 0 : index
    %16 = vector.load %arg7[%c0_17, %c0_18] : memref<32x128xf32, #tpu.memory_space<vmem>>, vector<32x128xf32>
    %c0_19 = arith.constant 0 : index
    %c0_20 = arith.constant 0 : index
    %17 = vector.load %arg8[%c0_19, %c0_20] : memref<32x128xf32, #tpu.memory_space<vmem>>, vector<32x128xf32>
    %cst_21 = arith.constant 0.000000e+00 : f32
    %18 = vector.broadcast %cst_21 : f32 to vector<8x32xf32>
    %c0_i32 = arith.constant 0 : i32
    %c8_i32 = arith.constant 8 : i32
    %19 = arith.muli %c0_i32, %c8_i32 : i32
    %20 = arith.index_cast %19 : i32 to index
    %c0_22 = arith.constant 0 : index
    %21 = vector.load %arg13[%20, %c0_22] : memref<128x256xf32, #tpu.memory_space<vmem>>, vector<8x256xf32>
    %c15_i32 = arith.constant 15 : i32
    %22 = arith.subi %c15_i32, %c0_i32 : i32
    %c8_i32_23 = arith.constant 8 : i32
    %23 = arith.muli %22, %c8_i32_23 : i32
    %24 = arith.index_cast %23 : i32 to index
    %c0_24 = arith.constant 0 : index
    %25 = vector.load %arg13[%24, %c0_24] : memref<128x256xf32, #tpu.memory_space<vmem>>, vector<8x256xf32>
    %26 = vector.extract_strided_slice %21 {offsets = [0, 0], sizes = [8, 128], strides = [1, 1]} : vector<8x256xf32> to vector<8x128xf32>
    %cst_25 = arith.constant dense<0.000000e+00> : vector<8x128xf32>
    %27 = tpu.matmul %18, %16, %cst_25 {dimension_numbers = #tpu.dot_dimension_numbers<[1], [0], [0], [1], [0, 0, 1, 1], [], []>} : vector<8x32xf32>, vector<32x128xf32>, vector<8x128xf32> -> vector<8x128xf32>
    %28 = arith.addf %26, %27 : vector<8x128xf32>
    %29 = vector.extract_strided_slice %25 {offsets = [0, 128], sizes = [8, 128], strides = [1, 1]} : vector<8x256xf32> to vector<8x128xf32>
    %cst_26 = arith.constant dense<0.000000e+00> : vector<8x128xf32>
    %30 = tpu.matmul %18, %17, %cst_26 {dimension_numbers = #tpu.dot_dimension_numbers<[1], [0], [0], [1], [0, 0, 1, 1], [], []>} : vector<8x32xf32>, vector<32x128xf32>, vector<8x128xf32> -> vector<8x128xf32>
    %31 = arith.addf %29, %30 : vector<8x128xf32>
    %32 = arith.negf %28 : vector<8x128xf32>
    %33 = math.exp %32 : vector<8x128xf32>
    %cst_27 = arith.constant 1.000000e+00 : f32
    %34 = vector.broadcast %cst_27 : f32 to vector<8x128xf32>
    %35 = arith.addf %34, %33 : vector<8x128xf32>
    %36 = arith.divf %34, %35 : vector<8x128xf32>
    %37 = math.tanh %28 : vector<8x128xf32>
    %38 = arith.negf %31 : vector<8x128xf32>
    %39 = math.exp %38 : vector<8x128xf32>
    %cst_28 = arith.constant 1.000000e+00 : f32
    %40 = vector.broadcast %cst_28 : f32 to vector<8x128xf32>
    %41 = arith.addf %40, %39 : vector<8x128xf32>
    %42 = arith.divf %40, %41 : vector<8x128xf32>
    %43 = math.tanh %31 : vector<8x128xf32>
    %44 = vector.extract_strided_slice %36 {offsets = [0, 32], sizes = [8, 32], strides = [1, 1]} : vector<8x128xf32> to vector<8x32xf32>
    %45 = arith.mulf %44, %18 : vector<8x32xf32>
    %46 = vector.extract_strided_slice %36 {offsets = [0, 0], sizes = [8, 32], strides = [1, 1]} : vector<8x128xf32> to vector<8x32xf32>
    %47 = vector.extract_strided_slice %37 {offsets = [0, 64], sizes = [8, 32], strides = [1, 1]} : vector<8x128xf32> to vector<8x32xf32>
    %48 = arith.mulf %46, %47 : vector<8x32xf32>
    %49 = arith.addf %45, %48 : vector<8x32xf32>
    %50 = vector.extract_strided_slice %42 {offsets = [0, 32], sizes = [8, 32], strides = [1, 1]} : vector<8x128xf32> to vector<8x32xf32>
    %51 = arith.mulf %50, %18 : vector<8x32xf32>
    %52 = vector.extract_strided_slice %42 {offsets = [0, 0], sizes = [8, 32], strides = [1, 1]} : vector<8x128xf32> to vector<8x32xf32>
    %53 = vector.extract_strided_slice %43 {offsets = [0, 64], sizes = [8, 32], strides = [1, 1]} : vector<8x128xf32> to vector<8x32xf32>
    %54 = arith.mulf %52, %53 : vector<8x32xf32>
    %55 = arith.addf %51, %54 : vector<8x32xf32>
    %56 = vector.extract_strided_slice %36 {offsets = [0, 96], sizes = [8, 32], strides = [1, 1]} : vector<8x128xf32> to vector<8x32xf32>
    %57 = math.tanh %49 : vector<8x32xf32>
    %58 = arith.mulf %56, %57 : vector<8x32xf32>
    %59 = vector.extract_strided_slice %42 {offsets = [0, 96], sizes = [8, 32], strides = [1, 1]} : vector<8x128xf32> to vector<8x32xf32>
    %60 = math.tanh %55 : vector<8x32xf32>
    %61 = arith.mulf %59, %60 : vector<8x32xf32>
    %62 = arith.addf %18, %58 : vector<8x32xf32>
    %63 = arith.addf %18, %61 : vector<8x32xf32>
    %c1_i32 = arith.constant 1 : i32
    %c8_i32_29 = arith.constant 8 : i32
    %64 = arith.muli %c1_i32, %c8_i32_29 : i32
    %65 = arith.index_cast %64 : i32 to index
    %c0_30 = arith.constant 0 : index
    %66 = vector.load %arg13[%65, %c0_30] : memref<128x256xf32, #tpu.memory_space<vmem>>, vector<8x256xf32>
    %c15_i32_31 = arith.constant 15 : i32
    %67 = arith.subi %c15_i32_31, %c1_i32 : i32
    %c8_i32_32 = arith.constant 8 : i32
    %68 = arith.muli %67, %c8_i32_32 : i32
    %69 = arith.index_cast %68 : i32 to index
    %c0_33 = arith.constant 0 : index
    %70 = vector.load %arg13[%69, %c0_33] : memref<128x256xf32, #tpu.memory_space<vmem>>, vector<8x256xf32>
    %71 = vector.extract_strided_slice %66 {offsets = [0, 0], sizes = [8, 128], strides = [1, 1]} : vector<8x256xf32> to vector<8x128xf32>
    %cst_34 = arith.constant dense<0.000000e+00> : vector<8x128xf32>
    %72 = tpu.matmul %58, %16, %cst_34 {dimension_numbers = #tpu.dot_dimension_numbers<[1], [0], [0], [1], [0, 0, 1, 1], [], []>} : vector<8x32xf32>, vector<32x128xf32>, vector<8x128xf32> -> vector<8x128xf32>
    %73 = arith.addf %71, %72 : vector<8x128xf32>
    %74 = vector.extract_strided_slice %70 {offsets = [0, 128], sizes = [8, 128], strides = [1, 1]} : vector<8x256xf32> to vector<8x128xf32>
    %cst_35 = arith.constant dense<0.000000e+00> : vector<8x128xf32>
    %75 = tpu.matmul %61, %17, %cst_35 {dimension_numbers = #tpu.dot_dimension_numbers<[1], [0], [0], [1], [0, 0, 1, 1], [], []>} : vector<8x32xf32>, vector<32x128xf32>, vector<8x128xf32> -> vector<8x128xf32>
    %76 = arith.addf %74, %75 : vector<8x128xf32>
    %77 = arith.negf %73 : vector<8x128xf32>
    %78 = math.exp %77 : vector<8x128xf32>
    %cst_36 = arith.constant 1.000000e+00 : f32
    %79 = vector.broadcast %cst_36 : f32 to vector<8x128xf32>
    %80 = arith.addf %79, %78 : vector<8x128xf32>
    %81 = arith.divf %79, %80 : vector<8x128xf32>
    %82 = math.tanh %73 : vector<8x128xf32>
    %83 = arith.negf %76 : vector<8x128xf32>
    %84 = math.exp %83 : vector<8x128xf32>
    %cst_37 = arith.constant 1.000000e+00 : f32
    %85 = vector.broadcast %cst_37 : f32 to vector<8x128xf32>
    %86 = arith.addf %85, %84 : vector<8x128xf32>
    %87 = arith.divf %85, %86 : vector<8x128xf32>
    %88 = math.tanh %76 : vector<8x128xf32>
    %89 = vector.extract_strided_slice %81 {offsets = [0, 32], sizes = [8, 32], strides = [1, 1]} : vector<8x128xf32> to vector<8x32xf32>
    %90 = arith.mulf %89, %49 : vector<8x32xf32>
    %91 = vector.extract_strided_slice %81 {offsets = [0, 0], sizes = [8, 32], strides = [1, 1]} : vector<8x128xf32> to vector<8x32xf32>
    %92 = vector.extract_strided_slice %82 {offsets = [0, 64], sizes = [8, 32], strides = [1, 1]} : vector<8x128xf32> to vector<8x32xf32>
    %93 = arith.mulf %91, %92 : vector<8x32xf32>
    %94 = arith.addf %90, %93 : vector<8x32xf32>
    %95 = vector.extract_strided_slice %87 {offsets = [0, 32], sizes = [8, 32], strides = [1, 1]} : vector<8x128xf32> to vector<8x32xf32>
    %96 = arith.mulf %95, %55 : vector<8x32xf32>
    %97 = vector.extract_strided_slice %87 {offsets = [0, 0], sizes = [8, 32], strides = [1, 1]} : vector<8x128xf32> to vector<8x32xf32>
    %98 = vector.extract_strided_slice %88 {offsets = [0, 64], sizes = [8, 32], strides = [1, 1]} : vector<8x128xf32> to vector<8x32xf32>
    %99 = arith.mulf %97, %98 : vector<8x32xf32>
    %100 = arith.addf %96, %99 : vector<8x32xf32>
    %101 = vector.extract_strided_slice %81 {offsets = [0, 96], sizes = [8, 32], strides = [1, 1]} : vector<8x128xf32> to vector<8x32xf32>
    %102 = math.tanh %94 : vector<8x32xf32>
    %103 = arith.mulf %101, %102 : vector<8x32xf32>
    %104 = vector.extract_strided_slice %87 {offsets = [0, 96], sizes = [8, 32], strides = [1, 1]} : vector<8x128xf32> to vector<8x32xf32>
    %105 = math.tanh %100 : vector<8x32xf32>
    %106 = arith.mulf %104, %105 : vector<8x32xf32>
    %107 = arith.addf %62, %103 : vector<8x32xf32>
    %108 = arith.addf %63, %106 : vector<8x32xf32>
    %c2_i32 = arith.constant 2 : i32
    %c8_i32_38 = arith.constant 8 : i32
    %109 = arith.muli %c2_i32, %c8_i32_38 : i32
    %110 = arith.index_cast %109 : i32 to index
    %c0_39 = arith.constant 0 : index
    %111 = vector.load %arg13[%110, %c0_39] : memref<128x256xf32, #tpu.memory_space<vmem>>, vector<8x256xf32>
    %c15_i32_40 = arith.constant 15 : i32
    %112 = arith.subi %c15_i32_40, %c2_i32 : i32
    %c8_i32_41 = arith.constant 8 : i32
    %113 = arith.muli %112, %c8_i32_41 : i32
    %114 = arith.index_cast %113 : i32 to index
    %c0_42 = arith.constant 0 : index
    %115 = vector.load %arg13[%114, %c0_42] : memref<128x256xf32, #tpu.memory_space<vmem>>, vector<8x256xf32>
    %116 = vector.extract_strided_slice %111 {offsets = [0, 0], sizes = [8, 128], strides = [1, 1]} : vector<8x256xf32> to vector<8x128xf32>
    %cst_43 = arith.constant dense<0.000000e+00> : vector<8x128xf32>
    %117 = tpu.matmul %103, %16, %cst_43 {dimension_numbers = #tpu.dot_dimension_numbers<[1], [0], [0], [1], [0, 0, 1, 1], [], []>} : vector<8x32xf32>, vector<32x128xf32>, vector<8x128xf32> -> vector<8x128xf32>
    %118 = arith.addf %116, %117 : vector<8x128xf32>
    %119 = vector.extract_strided_slice %115 {offsets = [0, 128], sizes = [8, 128], strides = [1, 1]} : vector<8x256xf32> to vector<8x128xf32>
    %cst_44 = arith.constant dense<0.000000e+00> : vector<8x128xf32>
    %120 = tpu.matmul %106, %17, %cst_44 {dimension_numbers = #tpu.dot_dimension_numbers<[1], [0], [0], [1], [0, 0, 1, 1], [], []>} : vector<8x32xf32>, vector<32x128xf32>, vector<8x128xf32> -> vector<8x128xf32>
    %121 = arith.addf %119, %120 : vector<8x128xf32>
    %122 = arith.negf %118 : vector<8x128xf32>
    %123 = math.exp %122 : vector<8x128xf32>
    %cst_45 = arith.constant 1.000000e+00 : f32
    %124 = vector.broadcast %cst_45 : f32 to vector<8x128xf32>
    %125 = arith.addf %124, %123 : vector<8x128xf32>
    %126 = arith.divf %124, %125 : vector<8x128xf32>
    %127 = math.tanh %118 : vector<8x128xf32>
    %128 = arith.negf %121 : vector<8x128xf32>
    %129 = math.exp %128 : vector<8x128xf32>
    %cst_46 = arith.constant 1.000000e+00 : f32
    %130 = vector.broadcast %cst_46 : f32 to vector<8x128xf32>
    %131 = arith.addf %130, %129 : vector<8x128xf32>
    %132 = arith.divf %130, %131 : vector<8x128xf32>
    %133 = math.tanh %121 : vector<8x128xf32>
    %134 = vector.extract_strided_slice %126 {offsets = [0, 32], sizes = [8, 32], strides = [1, 1]} : vector<8x128xf32> to vector<8x32xf32>
    %135 = arith.mulf %134, %94 : vector<8x32xf32>
    %136 = vector.extract_strided_slice %126 {offsets = [0, 0], sizes = [8, 32], strides = [1, 1]} : vector<8x128xf32> to vector<8x32xf32>
    %137 = vector.extract_strided_slice %127 {offsets = [0, 64], sizes = [8, 32], strides = [1, 1]} : vector<8x128xf32> to vector<8x32xf32>
    %138 = arith.mulf %136, %137 : vector<8x32xf32>
    %139 = arith.addf %135, %138 : vector<8x32xf32>
    %140 = vector.extract_strided_slice %132 {offsets = [0, 32], sizes = [8, 32], strides = [1, 1]} : vector<8x128xf32> to vector<8x32xf32>
    %141 = arith.mulf %140, %100 : vector<8x32xf32>
    %142 = vector.extract_strided_slice %132 {offsets = [0, 0], sizes = [8, 32], strides = [1, 1]} : vector<8x128xf32> to vector<8x32xf32>
    %143 = vector.extract_strided_slice %133 {offsets = [0, 64], sizes = [8, 32], strides = [1, 1]} : vector<8x128xf32> to vector<8x32xf32>
    %144 = arith.mulf %142, %143 : vector<8x32xf32>
    %145 = arith.addf %141, %144 : vector<8x32xf32>
    %146 = vector.extract_strided_slice %126 {offsets = [0, 96], sizes = [8, 32], strides = [1, 1]} : vector<8x128xf32> to vector<8x32xf32>
    %147 = math.tanh %139 : vector<8x32xf32>
    %148 = arith.mulf %146, %147 : vector<8x32xf32>
    %149 = vector.extract_strided_slice %132 {offsets = [0, 96], sizes = [8, 32], strides = [1, 1]} : vector<8x128xf32> to vector<8x32xf32>
    %150 = math.tanh %145 : vector<8x32xf32>
    %151 = arith.mulf %149, %150 : vector<8x32xf32>
    %152 = arith.addf %107, %148 : vector<8x32xf32>
    %153 = arith.addf %108, %151 : vector<8x32xf32>
    %c3_i32 = arith.constant 3 : i32
    %c8_i32_47 = arith.constant 8 : i32
    %154 = arith.muli %c3_i32, %c8_i32_47 : i32
    %155 = arith.index_cast %154 : i32 to index
    %c0_48 = arith.constant 0 : index
    %156 = vector.load %arg13[%155, %c0_48] : memref<128x256xf32, #tpu.memory_space<vmem>>, vector<8x256xf32>
    %c15_i32_49 = arith.constant 15 : i32
    %157 = arith.subi %c15_i32_49, %c3_i32 : i32
    %c8_i32_50 = arith.constant 8 : i32
    %158 = arith.muli %157, %c8_i32_50 : i32
    %159 = arith.index_cast %158 : i32 to index
    %c0_51 = arith.constant 0 : index
    %160 = vector.load %arg13[%159, %c0_51] : memref<128x256xf32, #tpu.memory_space<vmem>>, vector<8x256xf32>
    %161 = vector.extract_strided_slice %156 {offsets = [0, 0], sizes = [8, 128], strides = [1, 1]} : vector<8x256xf32> to vector<8x128xf32>
    %cst_52 = arith.constant dense<0.000000e+00> : vector<8x128xf32>
    %162 = tpu.matmul %148, %16, %cst_52 {dimension_numbers = #tpu.dot_dimension_numbers<[1], [0], [0], [1], [0, 0, 1, 1], [], []>} : vector<8x32xf32>, vector<32x128xf32>, vector<8x128xf32> -> vector<8x128xf32>
    %163 = arith.addf %161, %162 : vector<8x128xf32>
    %164 = vector.extract_strided_slice %160 {offsets = [0, 128], sizes = [8, 128], strides = [1, 1]} : vector<8x256xf32> to vector<8x128xf32>
    %cst_53 = arith.constant dense<0.000000e+00> : vector<8x128xf32>
    %165 = tpu.matmul %151, %17, %cst_53 {dimension_numbers = #tpu.dot_dimension_numbers<[1], [0], [0], [1], [0, 0, 1, 1], [], []>} : vector<8x32xf32>, vector<32x128xf32>, vector<8x128xf32> -> vector<8x128xf32>
    %166 = arith.addf %164, %165 : vector<8x128xf32>
    %167 = arith.negf %163 : vector<8x128xf32>
    %168 = math.exp %167 : vector<8x128xf32>
    %cst_54 = arith.constant 1.000000e+00 : f32
    %169 = vector.broadcast %cst_54 : f32 to vector<8x128xf32>
    %170 = arith.addf %169, %168 : vector<8x128xf32>
    %171 = arith.divf %169, %170 : vector<8x128xf32>
    %172 = math.tanh %163 : vector<8x128xf32>
    %173 = arith.negf %166 : vector<8x128xf32>
    %174 = math.exp %173 : vector<8x128xf32>
    %cst_55 = arith.constant 1.000000e+00 : f32
    %175 = vector.broadcast %cst_55 : f32 to vector<8x128xf32>
    %176 = arith.addf %175, %174 : vector<8x128xf32>
    %177 = arith.divf %175, %176 : vector<8x128xf32>
    %178 = math.tanh %166 : vector<8x128xf32>
    %179 = vector.extract_strided_slice %171 {offsets = [0, 32], sizes = [8, 32], strides = [1, 1]} : vector<8x128xf32> to vector<8x32xf32>
    %180 = arith.mulf %179, %139 : vector<8x32xf32>
    %181 = vector.extract_strided_slice %171 {offsets = [0, 0], sizes = [8, 32], strides = [1, 1]} : vector<8x128xf32> to vector<8x32xf32>
    %182 = vector.extract_strided_slice %172 {offsets = [0, 64], sizes = [8, 32], strides = [1, 1]} : vector<8x128xf32> to vector<8x32xf32>
    %183 = arith.mulf %181, %182 : vector<8x32xf32>
    %184 = arith.addf %180, %183 : vector<8x32xf32>
    %185 = vector.extract_strided_slice %177 {offsets = [0, 32], sizes = [8, 32], strides = [1, 1]} : vector<8x128xf32> to vector<8x32xf32>
    %186 = arith.mulf %185, %145 : vector<8x32xf32>
    %187 = vector.extract_strided_slice %177 {offsets = [0, 0], sizes = [8, 32], strides = [1, 1]} : vector<8x128xf32> to vector<8x32xf32>
    %188 = vector.extract_strided_slice %178 {offsets = [0, 64], sizes = [8, 32], strides = [1, 1]} : vector<8x128xf32> to vector<8x32xf32>
    %189 = arith.mulf %187, %188 : vector<8x32xf32>
    %190 = arith.addf %186, %189 : vector<8x32xf32>
    %191 = vector.extract_strided_slice %171 {offsets = [0, 96], sizes = [8, 32], strides = [1, 1]} : vector<8x128xf32> to vector<8x32xf32>
    %192 = math.tanh %184 : vector<8x32xf32>
    %193 = arith.mulf %191, %192 : vector<8x32xf32>
    %194 = vector.extract_strided_slice %177 {offsets = [0, 96], sizes = [8, 32], strides = [1, 1]} : vector<8x128xf32> to vector<8x32xf32>
    %195 = math.tanh %190 : vector<8x32xf32>
    %196 = arith.mulf %194, %195 : vector<8x32xf32>
    %197 = arith.addf %152, %193 : vector<8x32xf32>
    %198 = arith.addf %153, %196 : vector<8x32xf32>
    %c4_i32 = arith.constant 4 : i32
    %c8_i32_56 = arith.constant 8 : i32
    %199 = arith.muli %c4_i32, %c8_i32_56 : i32
    %200 = arith.index_cast %199 : i32 to index
    %c0_57 = arith.constant 0 : index
    %201 = vector.load %arg13[%200, %c0_57] : memref<128x256xf32, #tpu.memory_space<vmem>>, vector<8x256xf32>
    %c15_i32_58 = arith.constant 15 : i32
    %202 = arith.subi %c15_i32_58, %c4_i32 : i32
    %c8_i32_59 = arith.constant 8 : i32
    %203 = arith.muli %202, %c8_i32_59 : i32
    %204 = arith.index_cast %203 : i32 to index
    %c0_60 = arith.constant 0 : index
    %205 = vector.load %arg13[%204, %c0_60] : memref<128x256xf32, #tpu.memory_space<vmem>>, vector<8x256xf32>
    %206 = vector.extract_strided_slice %201 {offsets = [0, 0], sizes = [8, 128], strides = [1, 1]} : vector<8x256xf32> to vector<8x128xf32>
    %cst_61 = arith.constant dense<0.000000e+00> : vector<8x128xf32>
    %207 = tpu.matmul %193, %16, %cst_61 {dimension_numbers = #tpu.dot_dimension_numbers<[1], [0], [0], [1], [0, 0, 1, 1], [], []>} : vector<8x32xf32>, vector<32x128xf32>, vector<8x128xf32> -> vector<8x128xf32>
    %208 = arith.addf %206, %207 : vector<8x128xf32>
    %209 = vector.extract_strided_slice %205 {offsets = [0, 128], sizes = [8, 128], strides = [1, 1]} : vector<8x256xf32> to vector<8x128xf32>
    %cst_62 = arith.constant dense<0.000000e+00> : vector<8x128xf32>
    %210 = tpu.matmul %196, %17, %cst_62 {dimension_numbers = #tpu.dot_dimension_numbers<[1], [0], [0], [1], [0, 0, 1, 1], [], []>} : vector<8x32xf32>, vector<32x128xf32>, vector<8x128xf32> -> vector<8x128xf32>
    %211 = arith.addf %209, %210 : vector<8x128xf32>
    %212 = arith.negf %208 : vector<8x128xf32>
    %213 = math.exp %212 : vector<8x128xf32>
    %cst_63 = arith.constant 1.000000e+00 : f32
    %214 = vector.broadcast %cst_63 : f32 to vector<8x128xf32>
    %215 = arith.addf %214, %213 : vector<8x128xf32>
    %216 = arith.divf %214, %215 : vector<8x128xf32>
    %217 = math.tanh %208 : vector<8x128xf32>
    %218 = arith.negf %211 : vector<8x128xf32>
    %219 = math.exp %218 : vector<8x128xf32>
    %cst_64 = arith.constant 1.000000e+00 : f32
    %220 = vector.broadcast %cst_64 : f32 to vector<8x128xf32>
    %221 = arith.addf %220, %219 : vector<8x128xf32>
    %222 = arith.divf %220, %221 : vector<8x128xf32>
    %223 = math.tanh %211 : vector<8x128xf32>
    %224 = vector.extract_strided_slice %216 {offsets = [0, 32], sizes = [8, 32], strides = [1, 1]} : vector<8x128xf32> to vector<8x32xf32>
    %225 = arith.mulf %224, %184 : vector<8x32xf32>
    %226 = vector.extract_strided_slice %216 {offsets = [0, 0], sizes = [8, 32], strides = [1, 1]} : vector<8x128xf32> to vector<8x32xf32>
    %227 = vector.extract_strided_slice %217 {offsets = [0, 64], sizes = [8, 32], strides = [1, 1]} : vector<8x128xf32> to vector<8x32xf32>
    %228 = arith.mulf %226, %227 : vector<8x32xf32>
    %229 = arith.addf %225, %228 : vector<8x32xf32>
    %230 = vector.extract_strided_slice %222 {offsets = [0, 32], sizes = [8, 32], strides = [1, 1]} : vector<8x128xf32> to vector<8x32xf32>
    %231 = arith.mulf %230, %190 : vector<8x32xf32>
    %232 = vector.extract_strided_slice %222 {offsets = [0, 0], sizes = [8, 32], strides = [1, 1]} : vector<8x128xf32> to vector<8x32xf32>
    %233 = vector.extract_strided_slice %223 {offsets = [0, 64], sizes = [8, 32], strides = [1, 1]} : vector<8x128xf32> to vector<8x32xf32>
    %234 = arith.mulf %232, %233 : vector<8x32xf32>
    %235 = arith.addf %231, %234 : vector<8x32xf32>
    %236 = vector.extract_strided_slice %216 {offsets = [0, 96], sizes = [8, 32], strides = [1, 1]} : vector<8x128xf32> to vector<8x32xf32>
    %237 = math.tanh %229 : vector<8x32xf32>
    %238 = arith.mulf %236, %237 : vector<8x32xf32>
    %239 = vector.extract_strided_slice %222 {offsets = [0, 96], sizes = [8, 32], strides = [1, 1]} : vector<8x128xf32> to vector<8x32xf32>
    %240 = math.tanh %235 : vector<8x32xf32>
    %241 = arith.mulf %239, %240 : vector<8x32xf32>
    %242 = arith.addf %197, %238 : vector<8x32xf32>
    %243 = arith.addf %198, %241 : vector<8x32xf32>
    %c5_i32 = arith.constant 5 : i32
    %c8_i32_65 = arith.constant 8 : i32
    %244 = arith.muli %c5_i32, %c8_i32_65 : i32
    %245 = arith.index_cast %244 : i32 to index
    %c0_66 = arith.constant 0 : index
    %246 = vector.load %arg13[%245, %c0_66] : memref<128x256xf32, #tpu.memory_space<vmem>>, vector<8x256xf32>
    %c15_i32_67 = arith.constant 15 : i32
    %247 = arith.subi %c15_i32_67, %c5_i32 : i32
    %c8_i32_68 = arith.constant 8 : i32
    %248 = arith.muli %247, %c8_i32_68 : i32
    %249 = arith.index_cast %248 : i32 to index
    %c0_69 = arith.constant 0 : index
    %250 = vector.load %arg13[%249, %c0_69] : memref<128x256xf32, #tpu.memory_space<vmem>>, vector<8x256xf32>
    %251 = vector.extract_strided_slice %246 {offsets = [0, 0], sizes = [8, 128], strides = [1, 1]} : vector<8x256xf32> to vector<8x128xf32>
    %cst_70 = arith.constant dense<0.000000e+00> : vector<8x128xf32>
    %252 = tpu.matmul %238, %16, %cst_70 {dimension_numbers = #tpu.dot_dimension_numbers<[1], [0], [0], [1], [0, 0, 1, 1], [], []>} : vector<8x32xf32>, vector<32x128xf32>, vector<8x128xf32> -> vector<8x128xf32>
    %253 = arith.addf %251, %252 : vector<8x128xf32>
    %254 = vector.extract_strided_slice %250 {offsets = [0, 128], sizes = [8, 128], strides = [1, 1]} : vector<8x256xf32> to vector<8x128xf32>
    %cst_71 = arith.constant dense<0.000000e+00> : vector<8x128xf32>
    %255 = tpu.matmul %241, %17, %cst_71 {dimension_numbers = #tpu.dot_dimension_numbers<[1], [0], [0], [1], [0, 0, 1, 1], [], []>} : vector<8x32xf32>, vector<32x128xf32>, vector<8x128xf32> -> vector<8x128xf32>
    %256 = arith.addf %254, %255 : vector<8x128xf32>
    %257 = arith.negf %253 : vector<8x128xf32>
    %258 = math.exp %257 : vector<8x128xf32>
    %cst_72 = arith.constant 1.000000e+00 : f32
    %259 = vector.broadcast %cst_72 : f32 to vector<8x128xf32>
    %260 = arith.addf %259, %258 : vector<8x128xf32>
    %261 = arith.divf %259, %260 : vector<8x128xf32>
    %262 = math.tanh %253 : vector<8x128xf32>
    %263 = arith.negf %256 : vector<8x128xf32>
    %264 = math.exp %263 : vector<8x128xf32>
    %cst_73 = arith.constant 1.000000e+00 : f32
    %265 = vector.broadcast %cst_73 : f32 to vector<8x128xf32>
    %266 = arith.addf %265, %264 : vector<8x128xf32>
    %267 = arith.divf %265, %266 : vector<8x128xf32>
    %268 = math.tanh %256 : vector<8x128xf32>
    %269 = vector.extract_strided_slice %261 {offsets = [0, 32], sizes = [8, 32], strides = [1, 1]} : vector<8x128xf32> to vector<8x32xf32>
    %270 = arith.mulf %269, %229 : vector<8x32xf32>
    %271 = vector.extract_strided_slice %261 {offsets = [0, 0], sizes = [8, 32], strides = [1, 1]} : vector<8x128xf32> to vector<8x32xf32>
    %272 = vector.extract_strided_slice %262 {offsets = [0, 64], sizes = [8, 32], strides = [1, 1]} : vector<8x128xf32> to vector<8x32xf32>
    %273 = arith.mulf %271, %272 : vector<8x32xf32>
    %274 = arith.addf %270, %273 : vector<8x32xf32>
    %275 = vector.extract_strided_slice %267 {offsets = [0, 32], sizes = [8, 32], strides = [1, 1]} : vector<8x128xf32> to vector<8x32xf32>
    %276 = arith.mulf %275, %235 : vector<8x32xf32>
    %277 = vector.extract_strided_slice %267 {offsets = [0, 0], sizes = [8, 32], strides = [1, 1]} : vector<8x128xf32> to vector<8x32xf32>
    %278 = vector.extract_strided_slice %268 {offsets = [0, 64], sizes = [8, 32], strides = [1, 1]} : vector<8x128xf32> to vector<8x32xf32>
    %279 = arith.mulf %277, %278 : vector<8x32xf32>
    %280 = arith.addf %276, %279 : vector<8x32xf32>
    %281 = vector.extract_strided_slice %261 {offsets = [0, 96], sizes = [8, 32], strides = [1, 1]} : vector<8x128xf32> to vector<8x32xf32>
    %282 = math.tanh %274 : vector<8x32xf32>
    %283 = arith.mulf %281, %282 : vector<8x32xf32>
    %284 = vector.extract_strided_slice %267 {offsets = [0, 96], sizes = [8, 32], strides = [1, 1]} : vector<8x128xf32> to vector<8x32xf32>
    %285 = math.tanh %280 : vector<8x32xf32>
    %286 = arith.mulf %284, %285 : vector<8x32xf32>
    %287 = arith.addf %242, %283 : vector<8x32xf32>
    %288 = arith.addf %243, %286 : vector<8x32xf32>
    %c6_i32 = arith.constant 6 : i32
    %c8_i32_74 = arith.constant 8 : i32
    %289 = arith.muli %c6_i32, %c8_i32_74 : i32
    %290 = arith.index_cast %289 : i32 to index
    %c0_75 = arith.constant 0 : index
    %291 = vector.load %arg13[%290, %c0_75] : memref<128x256xf32, #tpu.memory_space<vmem>>, vector<8x256xf32>
    %c15_i32_76 = arith.constant 15 : i32
    %292 = arith.subi %c15_i32_76, %c6_i32 : i32
    %c8_i32_77 = arith.constant 8 : i32
    %293 = arith.muli %292, %c8_i32_77 : i32
    %294 = arith.index_cast %293 : i32 to index
    %c0_78 = arith.constant 0 : index
    %295 = vector.load %arg13[%294, %c0_78] : memref<128x256xf32, #tpu.memory_space<vmem>>, vector<8x256xf32>
    %296 = vector.extract_strided_slice %291 {offsets = [0, 0], sizes = [8, 128], strides = [1, 1]} : vector<8x256xf32> to vector<8x128xf32>
    %cst_79 = arith.constant dense<0.000000e+00> : vector<8x128xf32>
    %297 = tpu.matmul %283, %16, %cst_79 {dimension_numbers = #tpu.dot_dimension_numbers<[1], [0], [0], [1], [0, 0, 1, 1], [], []>} : vector<8x32xf32>, vector<32x128xf32>, vector<8x128xf32> -> vector<8x128xf32>
    %298 = arith.addf %296, %297 : vector<8x128xf32>
    %299 = vector.extract_strided_slice %295 {offsets = [0, 128], sizes = [8, 128], strides = [1, 1]} : vector<8x256xf32> to vector<8x128xf32>
    %cst_80 = arith.constant dense<0.000000e+00> : vector<8x128xf32>
    %300 = tpu.matmul %286, %17, %cst_80 {dimension_numbers = #tpu.dot_dimension_numbers<[1], [0], [0], [1], [0, 0, 1, 1], [], []>} : vector<8x32xf32>, vector<32x128xf32>, vector<8x128xf32> -> vector<8x128xf32>
    %301 = arith.addf %299, %300 : vector<8x128xf32>
    %302 = arith.negf %298 : vector<8x128xf32>
    %303 = math.exp %302 : vector<8x128xf32>
    %cst_81 = arith.constant 1.000000e+00 : f32
    %304 = vector.broadcast %cst_81 : f32 to vector<8x128xf32>
    %305 = arith.addf %304, %303 : vector<8x128xf32>
    %306 = arith.divf %304, %305 : vector<8x128xf32>
    %307 = math.tanh %298 : vector<8x128xf32>
    %308 = arith.negf %301 : vector<8x128xf32>
    %309 = math.exp %308 : vector<8x128xf32>
    %cst_82 = arith.constant 1.000000e+00 : f32
    %310 = vector.broadcast %cst_82 : f32 to vector<8x128xf32>
    %311 = arith.addf %310, %309 : vector<8x128xf32>
    %312 = arith.divf %310, %311 : vector<8x128xf32>
    %313 = math.tanh %301 : vector<8x128xf32>
    %314 = vector.extract_strided_slice %306 {offsets = [0, 32], sizes = [8, 32], strides = [1, 1]} : vector<8x128xf32> to vector<8x32xf32>
    %315 = arith.mulf %314, %274 : vector<8x32xf32>
    %316 = vector.extract_strided_slice %306 {offsets = [0, 0], sizes = [8, 32], strides = [1, 1]} : vector<8x128xf32> to vector<8x32xf32>
    %317 = vector.extract_strided_slice %307 {offsets = [0, 64], sizes = [8, 32], strides = [1, 1]} : vector<8x128xf32> to vector<8x32xf32>
    %318 = arith.mulf %316, %317 : vector<8x32xf32>
    %319 = arith.addf %315, %318 : vector<8x32xf32>
    %320 = vector.extract_strided_slice %312 {offsets = [0, 32], sizes = [8, 32], strides = [1, 1]} : vector<8x128xf32> to vector<8x32xf32>
    %321 = arith.mulf %320, %280 : vector<8x32xf32>
    %322 = vector.extract_strided_slice %312 {offsets = [0, 0], sizes = [8, 32], strides = [1, 1]} : vector<8x128xf32> to vector<8x32xf32>
    %323 = vector.extract_strided_slice %313 {offsets = [0, 64], sizes = [8, 32], strides = [1, 1]} : vector<8x128xf32> to vector<8x32xf32>
    %324 = arith.mulf %322, %323 : vector<8x32xf32>
    %325 = arith.addf %321, %324 : vector<8x32xf32>
    %326 = vector.extract_strided_slice %306 {offsets = [0, 96], sizes = [8, 32], strides = [1, 1]} : vector<8x128xf32> to vector<8x32xf32>
    %327 = math.tanh %319 : vector<8x32xf32>
    %328 = arith.mulf %326, %327 : vector<8x32xf32>
    %329 = vector.extract_strided_slice %312 {offsets = [0, 96], sizes = [8, 32], strides = [1, 1]} : vector<8x128xf32> to vector<8x32xf32>
    %330 = math.tanh %325 : vector<8x32xf32>
    %331 = arith.mulf %329, %330 : vector<8x32xf32>
    %332 = arith.addf %287, %328 : vector<8x32xf32>
    %333 = arith.addf %288, %331 : vector<8x32xf32>
    %c7_i32 = arith.constant 7 : i32
    %c8_i32_83 = arith.constant 8 : i32
    %334 = arith.muli %c7_i32, %c8_i32_83 : i32
    %335 = arith.index_cast %334 : i32 to index
    %c0_84 = arith.constant 0 : index
    %336 = vector.load %arg13[%335, %c0_84] : memref<128x256xf32, #tpu.memory_space<vmem>>, vector<8x256xf32>
    %c15_i32_85 = arith.constant 15 : i32
    %337 = arith.subi %c15_i32_85, %c7_i32 : i32
    %c8_i32_86 = arith.constant 8 : i32
    %338 = arith.muli %337, %c8_i32_86 : i32
    %339 = arith.index_cast %338 : i32 to index
    %c0_87 = arith.constant 0 : index
    %340 = vector.load %arg13[%339, %c0_87] : memref<128x256xf32, #tpu.memory_space<vmem>>, vector<8x256xf32>
    %341 = vector.extract_strided_slice %336 {offsets = [0, 0], sizes = [8, 128], strides = [1, 1]} : vector<8x256xf32> to vector<8x128xf32>
    %cst_88 = arith.constant dense<0.000000e+00> : vector<8x128xf32>
    %342 = tpu.matmul %328, %16, %cst_88 {dimension_numbers = #tpu.dot_dimension_numbers<[1], [0], [0], [1], [0, 0, 1, 1], [], []>} : vector<8x32xf32>, vector<32x128xf32>, vector<8x128xf32> -> vector<8x128xf32>
    %343 = arith.addf %341, %342 : vector<8x128xf32>
    %344 = vector.extract_strided_slice %340 {offsets = [0, 128], sizes = [8, 128], strides = [1, 1]} : vector<8x256xf32> to vector<8x128xf32>
    %cst_89 = arith.constant dense<0.000000e+00> : vector<8x128xf32>
    %345 = tpu.matmul %331, %17, %cst_89 {dimension_numbers = #tpu.dot_dimension_numbers<[1], [0], [0], [1], [0, 0, 1, 1], [], []>} : vector<8x32xf32>, vector<32x128xf32>, vector<8x128xf32> -> vector<8x128xf32>
    %346 = arith.addf %344, %345 : vector<8x128xf32>
    %347 = arith.negf %343 : vector<8x128xf32>
    %348 = math.exp %347 : vector<8x128xf32>
    %cst_90 = arith.constant 1.000000e+00 : f32
    %349 = vector.broadcast %cst_90 : f32 to vector<8x128xf32>
    %350 = arith.addf %349, %348 : vector<8x128xf32>
    %351 = arith.divf %349, %350 : vector<8x128xf32>
    %352 = math.tanh %343 : vector<8x128xf32>
    %353 = arith.negf %346 : vector<8x128xf32>
    %354 = math.exp %353 : vector<8x128xf32>
    %cst_91 = arith.constant 1.000000e+00 : f32
    %355 = vector.broadcast %cst_91 : f32 to vector<8x128xf32>
    %356 = arith.addf %355, %354 : vector<8x128xf32>
    %357 = arith.divf %355, %356 : vector<8x128xf32>
    %358 = math.tanh %346 : vector<8x128xf32>
    %359 = vector.extract_strided_slice %351 {offsets = [0, 32], sizes = [8, 32], strides = [1, 1]} : vector<8x128xf32> to vector<8x32xf32>
    %360 = arith.mulf %359, %319 : vector<8x32xf32>
    %361 = vector.extract_strided_slice %351 {offsets = [0, 0], sizes = [8, 32], strides = [1, 1]} : vector<8x128xf32> to vector<8x32xf32>
    %362 = vector.extract_strided_slice %352 {offsets = [0, 64], sizes = [8, 32], strides = [1, 1]} : vector<8x128xf32> to vector<8x32xf32>
    %363 = arith.mulf %361, %362 : vector<8x32xf32>
    %364 = arith.addf %360, %363 : vector<8x32xf32>
    %365 = vector.extract_strided_slice %357 {offsets = [0, 32], sizes = [8, 32], strides = [1, 1]} : vector<8x128xf32> to vector<8x32xf32>
    %366 = arith.mulf %365, %325 : vector<8x32xf32>
    %367 = vector.extract_strided_slice %357 {offsets = [0, 0], sizes = [8, 32], strides = [1, 1]} : vector<8x128xf32> to vector<8x32xf32>
    %368 = vector.extract_strided_slice %358 {offsets = [0, 64], sizes = [8, 32], strides = [1, 1]} : vector<8x128xf32> to vector<8x32xf32>
    %369 = arith.mulf %367, %368 : vector<8x32xf32>
    %370 = arith.addf %366, %369 : vector<8x32xf32>
    %371 = vector.extract_strided_slice %351 {offsets = [0, 96], sizes = [8, 32], strides = [1, 1]} : vector<8x128xf32> to vector<8x32xf32>
    %372 = math.tanh %364 : vector<8x32xf32>
    %373 = arith.mulf %371, %372 : vector<8x32xf32>
    %374 = vector.extract_strided_slice %357 {offsets = [0, 96], sizes = [8, 32], strides = [1, 1]} : vector<8x128xf32> to vector<8x32xf32>
    %375 = math.tanh %370 : vector<8x32xf32>
    %376 = arith.mulf %374, %375 : vector<8x32xf32>
    %377 = arith.addf %332, %373 : vector<8x32xf32>
    %378 = arith.addf %333, %376 : vector<8x32xf32>
    %c8_i32_92 = arith.constant 8 : i32
    %c8_i32_93 = arith.constant 8 : i32
    %379 = arith.muli %c8_i32_92, %c8_i32_93 : i32
    %380 = arith.index_cast %379 : i32 to index
    %c0_94 = arith.constant 0 : index
    %381 = vector.load %arg13[%380, %c0_94] : memref<128x256xf32, #tpu.memory_space<vmem>>, vector<8x256xf32>
    %c15_i32_95 = arith.constant 15 : i32
    %382 = arith.subi %c15_i32_95, %c8_i32_92 : i32
    %c8_i32_96 = arith.constant 8 : i32
    %383 = arith.muli %382, %c8_i32_96 : i32
    %384 = arith.index_cast %383 : i32 to index
    %c0_97 = arith.constant 0 : index
    %385 = vector.load %arg13[%384, %c0_97] : memref<128x256xf32, #tpu.memory_space<vmem>>, vector<8x256xf32>
    %386 = vector.extract_strided_slice %381 {offsets = [0, 0], sizes = [8, 128], strides = [1, 1]} : vector<8x256xf32> to vector<8x128xf32>
    %cst_98 = arith.constant dense<0.000000e+00> : vector<8x128xf32>
    %387 = tpu.matmul %373, %16, %cst_98 {dimension_numbers = #tpu.dot_dimension_numbers<[1], [0], [0], [1], [0, 0, 1, 1], [], []>} : vector<8x32xf32>, vector<32x128xf32>, vector<8x128xf32> -> vector<8x128xf32>
    %388 = arith.addf %386, %387 : vector<8x128xf32>
    %389 = vector.extract_strided_slice %385 {offsets = [0, 128], sizes = [8, 128], strides = [1, 1]} : vector<8x256xf32> to vector<8x128xf32>
    %cst_99 = arith.constant dense<0.000000e+00> : vector<8x128xf32>
    %390 = tpu.matmul %376, %17, %cst_99 {dimension_numbers = #tpu.dot_dimension_numbers<[1], [0], [0], [1], [0, 0, 1, 1], [], []>} : vector<8x32xf32>, vector<32x128xf32>, vector<8x128xf32> -> vector<8x128xf32>
    %391 = arith.addf %389, %390 : vector<8x128xf32>
    %392 = arith.negf %388 : vector<8x128xf32>
    %393 = math.exp %392 : vector<8x128xf32>
    %cst_100 = arith.constant 1.000000e+00 : f32
    %394 = vector.broadcast %cst_100 : f32 to vector<8x128xf32>
    %395 = arith.addf %394, %393 : vector<8x128xf32>
    %396 = arith.divf %394, %395 : vector<8x128xf32>
    %397 = math.tanh %388 : vector<8x128xf32>
    %398 = arith.negf %391 : vector<8x128xf32>
    %399 = math.exp %398 : vector<8x128xf32>
    %cst_101 = arith.constant 1.000000e+00 : f32
    %400 = vector.broadcast %cst_101 : f32 to vector<8x128xf32>
    %401 = arith.addf %400, %399 : vector<8x128xf32>
    %402 = arith.divf %400, %401 : vector<8x128xf32>
    %403 = math.tanh %391 : vector<8x128xf32>
    %404 = vector.extract_strided_slice %396 {offsets = [0, 32], sizes = [8, 32], strides = [1, 1]} : vector<8x128xf32> to vector<8x32xf32>
    %405 = arith.mulf %404, %364 : vector<8x32xf32>
    %406 = vector.extract_strided_slice %396 {offsets = [0, 0], sizes = [8, 32], strides = [1, 1]} : vector<8x128xf32> to vector<8x32xf32>
    %407 = vector.extract_strided_slice %397 {offsets = [0, 64], sizes = [8, 32], strides = [1, 1]} : vector<8x128xf32> to vector<8x32xf32>
    %408 = arith.mulf %406, %407 : vector<8x32xf32>
    %409 = arith.addf %405, %408 : vector<8x32xf32>
    %410 = vector.extract_strided_slice %402 {offsets = [0, 32], sizes = [8, 32], strides = [1, 1]} : vector<8x128xf32> to vector<8x32xf32>
    %411 = arith.mulf %410, %370 : vector<8x32xf32>
    %412 = vector.extract_strided_slice %402 {offsets = [0, 0], sizes = [8, 32], strides = [1, 1]} : vector<8x128xf32> to vector<8x32xf32>
    %413 = vector.extract_strided_slice %403 {offsets = [0, 64], sizes = [8, 32], strides = [1, 1]} : vector<8x128xf32> to vector<8x32xf32>
    %414 = arith.mulf %412, %413 : vector<8x32xf32>
    %415 = arith.addf %411, %414 : vector<8x32xf32>
    %416 = vector.extract_strided_slice %396 {offsets = [0, 96], sizes = [8, 32], strides = [1, 1]} : vector<8x128xf32> to vector<8x32xf32>
    %417 = math.tanh %409 : vector<8x32xf32>
    %418 = arith.mulf %416, %417 : vector<8x32xf32>
    %419 = vector.extract_strided_slice %402 {offsets = [0, 96], sizes = [8, 32], strides = [1, 1]} : vector<8x128xf32> to vector<8x32xf32>
    %420 = math.tanh %415 : vector<8x32xf32>
    %421 = arith.mulf %419, %420 : vector<8x32xf32>
    %422 = arith.addf %377, %418 : vector<8x32xf32>
    %423 = arith.addf %378, %421 : vector<8x32xf32>
    %c9_i32 = arith.constant 9 : i32
    %c8_i32_102 = arith.constant 8 : i32
    %424 = arith.muli %c9_i32, %c8_i32_102 : i32
    %425 = arith.index_cast %424 : i32 to index
    %c0_103 = arith.constant 0 : index
    %426 = vector.load %arg13[%425, %c0_103] : memref<128x256xf32, #tpu.memory_space<vmem>>, vector<8x256xf32>
    %c15_i32_104 = arith.constant 15 : i32
    %427 = arith.subi %c15_i32_104, %c9_i32 : i32
    %c8_i32_105 = arith.constant 8 : i32
    %428 = arith.muli %427, %c8_i32_105 : i32
    %429 = arith.index_cast %428 : i32 to index
    %c0_106 = arith.constant 0 : index
    %430 = vector.load %arg13[%429, %c0_106] : memref<128x256xf32, #tpu.memory_space<vmem>>, vector<8x256xf32>
    %431 = vector.extract_strided_slice %426 {offsets = [0, 0], sizes = [8, 128], strides = [1, 1]} : vector<8x256xf32> to vector<8x128xf32>
    %cst_107 = arith.constant dense<0.000000e+00> : vector<8x128xf32>
    %432 = tpu.matmul %418, %16, %cst_107 {dimension_numbers = #tpu.dot_dimension_numbers<[1], [0], [0], [1], [0, 0, 1, 1], [], []>} : vector<8x32xf32>, vector<32x128xf32>, vector<8x128xf32> -> vector<8x128xf32>
    %433 = arith.addf %431, %432 : vector<8x128xf32>
    %434 = vector.extract_strided_slice %430 {offsets = [0, 128], sizes = [8, 128], strides = [1, 1]} : vector<8x256xf32> to vector<8x128xf32>
    %cst_108 = arith.constant dense<0.000000e+00> : vector<8x128xf32>
    %435 = tpu.matmul %421, %17, %cst_108 {dimension_numbers = #tpu.dot_dimension_numbers<[1], [0], [0], [1], [0, 0, 1, 1], [], []>} : vector<8x32xf32>, vector<32x128xf32>, vector<8x128xf32> -> vector<8x128xf32>
    %436 = arith.addf %434, %435 : vector<8x128xf32>
    %437 = arith.negf %433 : vector<8x128xf32>
    %438 = math.exp %437 : vector<8x128xf32>
    %cst_109 = arith.constant 1.000000e+00 : f32
    %439 = vector.broadcast %cst_109 : f32 to vector<8x128xf32>
    %440 = arith.addf %439, %438 : vector<8x128xf32>
    %441 = arith.divf %439, %440 : vector<8x128xf32>
    %442 = math.tanh %433 : vector<8x128xf32>
    %443 = arith.negf %436 : vector<8x128xf32>
    %444 = math.exp %443 : vector<8x128xf32>
    %cst_110 = arith.constant 1.000000e+00 : f32
    %445 = vector.broadcast %cst_110 : f32 to vector<8x128xf32>
    %446 = arith.addf %445, %444 : vector<8x128xf32>
    %447 = arith.divf %445, %446 : vector<8x128xf32>
    %448 = math.tanh %436 : vector<8x128xf32>
    %449 = vector.extract_strided_slice %441 {offsets = [0, 32], sizes = [8, 32], strides = [1, 1]} : vector<8x128xf32> to vector<8x32xf32>
    %450 = arith.mulf %449, %409 : vector<8x32xf32>
    %451 = vector.extract_strided_slice %441 {offsets = [0, 0], sizes = [8, 32], strides = [1, 1]} : vector<8x128xf32> to vector<8x32xf32>
    %452 = vector.extract_strided_slice %442 {offsets = [0, 64], sizes = [8, 32], strides = [1, 1]} : vector<8x128xf32> to vector<8x32xf32>
    %453 = arith.mulf %451, %452 : vector<8x32xf32>
    %454 = arith.addf %450, %453 : vector<8x32xf32>
    %455 = vector.extract_strided_slice %447 {offsets = [0, 32], sizes = [8, 32], strides = [1, 1]} : vector<8x128xf32> to vector<8x32xf32>
    %456 = arith.mulf %455, %415 : vector<8x32xf32>
    %457 = vector.extract_strided_slice %447 {offsets = [0, 0], sizes = [8, 32], strides = [1, 1]} : vector<8x128xf32> to vector<8x32xf32>
    %458 = vector.extract_strided_slice %448 {offsets = [0, 64], sizes = [8, 32], strides = [1, 1]} : vector<8x128xf32> to vector<8x32xf32>
    %459 = arith.mulf %457, %458 : vector<8x32xf32>
    %460 = arith.addf %456, %459 : vector<8x32xf32>
    %461 = vector.extract_strided_slice %441 {offsets = [0, 96], sizes = [8, 32], strides = [1, 1]} : vector<8x128xf32> to vector<8x32xf32>
    %462 = math.tanh %454 : vector<8x32xf32>
    %463 = arith.mulf %461, %462 : vector<8x32xf32>
    %464 = vector.extract_strided_slice %447 {offsets = [0, 96], sizes = [8, 32], strides = [1, 1]} : vector<8x128xf32> to vector<8x32xf32>
    %465 = math.tanh %460 : vector<8x32xf32>
    %466 = arith.mulf %464, %465 : vector<8x32xf32>
    %467 = arith.addf %422, %463 : vector<8x32xf32>
    %468 = arith.addf %423, %466 : vector<8x32xf32>
    %c10_i32 = arith.constant 10 : i32
    %c8_i32_111 = arith.constant 8 : i32
    %469 = arith.muli %c10_i32, %c8_i32_111 : i32
    %470 = arith.index_cast %469 : i32 to index
    %c0_112 = arith.constant 0 : index
    %471 = vector.load %arg13[%470, %c0_112] : memref<128x256xf32, #tpu.memory_space<vmem>>, vector<8x256xf32>
    %c15_i32_113 = arith.constant 15 : i32
    %472 = arith.subi %c15_i32_113, %c10_i32 : i32
    %c8_i32_114 = arith.constant 8 : i32
    %473 = arith.muli %472, %c8_i32_114 : i32
    %474 = arith.index_cast %473 : i32 to index
    %c0_115 = arith.constant 0 : index
    %475 = vector.load %arg13[%474, %c0_115] : memref<128x256xf32, #tpu.memory_space<vmem>>, vector<8x256xf32>
    %476 = vector.extract_strided_slice %471 {offsets = [0, 0], sizes = [8, 128], strides = [1, 1]} : vector<8x256xf32> to vector<8x128xf32>
    %cst_116 = arith.constant dense<0.000000e+00> : vector<8x128xf32>
    %477 = tpu.matmul %463, %16, %cst_116 {dimension_numbers = #tpu.dot_dimension_numbers<[1], [0], [0], [1], [0, 0, 1, 1], [], []>} : vector<8x32xf32>, vector<32x128xf32>, vector<8x128xf32> -> vector<8x128xf32>
    %478 = arith.addf %476, %477 : vector<8x128xf32>
    %479 = vector.extract_strided_slice %475 {offsets = [0, 128], sizes = [8, 128], strides = [1, 1]} : vector<8x256xf32> to vector<8x128xf32>
    %cst_117 = arith.constant dense<0.000000e+00> : vector<8x128xf32>
    %480 = tpu.matmul %466, %17, %cst_117 {dimension_numbers = #tpu.dot_dimension_numbers<[1], [0], [0], [1], [0, 0, 1, 1], [], []>} : vector<8x32xf32>, vector<32x128xf32>, vector<8x128xf32> -> vector<8x128xf32>
    %481 = arith.addf %479, %480 : vector<8x128xf32>
    %482 = arith.negf %478 : vector<8x128xf32>
    %483 = math.exp %482 : vector<8x128xf32>
    %cst_118 = arith.constant 1.000000e+00 : f32
    %484 = vector.broadcast %cst_118 : f32 to vector<8x128xf32>
    %485 = arith.addf %484, %483 : vector<8x128xf32>
    %486 = arith.divf %484, %485 : vector<8x128xf32>
    %487 = math.tanh %478 : vector<8x128xf32>
    %488 = arith.negf %481 : vector<8x128xf32>
    %489 = math.exp %488 : vector<8x128xf32>
    %cst_119 = arith.constant 1.000000e+00 : f32
    %490 = vector.broadcast %cst_119 : f32 to vector<8x128xf32>
    %491 = arith.addf %490, %489 : vector<8x128xf32>
    %492 = arith.divf %490, %491 : vector<8x128xf32>
    %493 = math.tanh %481 : vector<8x128xf32>
    %494 = vector.extract_strided_slice %486 {offsets = [0, 32], sizes = [8, 32], strides = [1, 1]} : vector<8x128xf32> to vector<8x32xf32>
    %495 = arith.mulf %494, %454 : vector<8x32xf32>
    %496 = vector.extract_strided_slice %486 {offsets = [0, 0], sizes = [8, 32], strides = [1, 1]} : vector<8x128xf32> to vector<8x32xf32>
    %497 = vector.extract_strided_slice %487 {offsets = [0, 64], sizes = [8, 32], strides = [1, 1]} : vector<8x128xf32> to vector<8x32xf32>
    %498 = arith.mulf %496, %497 : vector<8x32xf32>
    %499 = arith.addf %495, %498 : vector<8x32xf32>
    %500 = vector.extract_strided_slice %492 {offsets = [0, 32], sizes = [8, 32], strides = [1, 1]} : vector<8x128xf32> to vector<8x32xf32>
    %501 = arith.mulf %500, %460 : vector<8x32xf32>
    %502 = vector.extract_strided_slice %492 {offsets = [0, 0], sizes = [8, 32], strides = [1, 1]} : vector<8x128xf32> to vector<8x32xf32>
    %503 = vector.extract_strided_slice %493 {offsets = [0, 64], sizes = [8, 32], strides = [1, 1]} : vector<8x128xf32> to vector<8x32xf32>
    %504 = arith.mulf %502, %503 : vector<8x32xf32>
    %505 = arith.addf %501, %504 : vector<8x32xf32>
    %506 = vector.extract_strided_slice %486 {offsets = [0, 96], sizes = [8, 32], strides = [1, 1]} : vector<8x128xf32> to vector<8x32xf32>
    %507 = math.tanh %499 : vector<8x32xf32>
    %508 = arith.mulf %506, %507 : vector<8x32xf32>
    %509 = vector.extract_strided_slice %492 {offsets = [0, 96], sizes = [8, 32], strides = [1, 1]} : vector<8x128xf32> to vector<8x32xf32>
    %510 = math.tanh %505 : vector<8x32xf32>
    %511 = arith.mulf %509, %510 : vector<8x32xf32>
    %512 = arith.addf %467, %508 : vector<8x32xf32>
    %513 = arith.addf %468, %511 : vector<8x32xf32>
    %c11_i32 = arith.constant 11 : i32
    %c8_i32_120 = arith.constant 8 : i32
    %514 = arith.muli %c11_i32, %c8_i32_120 : i32
    %515 = arith.index_cast %514 : i32 to index
    %c0_121 = arith.constant 0 : index
    %516 = vector.load %arg13[%515, %c0_121] : memref<128x256xf32, #tpu.memory_space<vmem>>, vector<8x256xf32>
    %c15_i32_122 = arith.constant 15 : i32
    %517 = arith.subi %c15_i32_122, %c11_i32 : i32
    %c8_i32_123 = arith.constant 8 : i32
    %518 = arith.muli %517, %c8_i32_123 : i32
    %519 = arith.index_cast %518 : i32 to index
    %c0_124 = arith.constant 0 : index
    %520 = vector.load %arg13[%519, %c0_124] : memref<128x256xf32, #tpu.memory_space<vmem>>, vector<8x256xf32>
    %521 = vector.extract_strided_slice %516 {offsets = [0, 0], sizes = [8, 128], strides = [1, 1]} : vector<8x256xf32> to vector<8x128xf32>
    %cst_125 = arith.constant dense<0.000000e+00> : vector<8x128xf32>
    %522 = tpu.matmul %508, %16, %cst_125 {dimension_numbers = #tpu.dot_dimension_numbers<[1], [0], [0], [1], [0, 0, 1, 1], [], []>} : vector<8x32xf32>, vector<32x128xf32>, vector<8x128xf32> -> vector<8x128xf32>
    %523 = arith.addf %521, %522 : vector<8x128xf32>
    %524 = vector.extract_strided_slice %520 {offsets = [0, 128], sizes = [8, 128], strides = [1, 1]} : vector<8x256xf32> to vector<8x128xf32>
    %cst_126 = arith.constant dense<0.000000e+00> : vector<8x128xf32>
    %525 = tpu.matmul %511, %17, %cst_126 {dimension_numbers = #tpu.dot_dimension_numbers<[1], [0], [0], [1], [0, 0, 1, 1], [], []>} : vector<8x32xf32>, vector<32x128xf32>, vector<8x128xf32> -> vector<8x128xf32>
    %526 = arith.addf %524, %525 : vector<8x128xf32>
    %527 = arith.negf %523 : vector<8x128xf32>
    %528 = math.exp %527 : vector<8x128xf32>
    %cst_127 = arith.constant 1.000000e+00 : f32
    %529 = vector.broadcast %cst_127 : f32 to vector<8x128xf32>
    %530 = arith.addf %529, %528 : vector<8x128xf32>
    %531 = arith.divf %529, %530 : vector<8x128xf32>
    %532 = math.tanh %523 : vector<8x128xf32>
    %533 = arith.negf %526 : vector<8x128xf32>
    %534 = math.exp %533 : vector<8x128xf32>
    %cst_128 = arith.constant 1.000000e+00 : f32
    %535 = vector.broadcast %cst_128 : f32 to vector<8x128xf32>
    %536 = arith.addf %535, %534 : vector<8x128xf32>
    %537 = arith.divf %535, %536 : vector<8x128xf32>
    %538 = math.tanh %526 : vector<8x128xf32>
    %539 = vector.extract_strided_slice %531 {offsets = [0, 32], sizes = [8, 32], strides = [1, 1]} : vector<8x128xf32> to vector<8x32xf32>
    %540 = arith.mulf %539, %499 : vector<8x32xf32>
    %541 = vector.extract_strided_slice %531 {offsets = [0, 0], sizes = [8, 32], strides = [1, 1]} : vector<8x128xf32> to vector<8x32xf32>
    %542 = vector.extract_strided_slice %532 {offsets = [0, 64], sizes = [8, 32], strides = [1, 1]} : vector<8x128xf32> to vector<8x32xf32>
    %543 = arith.mulf %541, %542 : vector<8x32xf32>
    %544 = arith.addf %540, %543 : vector<8x32xf32>
    %545 = vector.extract_strided_slice %537 {offsets = [0, 32], sizes = [8, 32], strides = [1, 1]} : vector<8x128xf32> to vector<8x32xf32>
    %546 = arith.mulf %545, %505 : vector<8x32xf32>
    %547 = vector.extract_strided_slice %537 {offsets = [0, 0], sizes = [8, 32], strides = [1, 1]} : vector<8x128xf32> to vector<8x32xf32>
    %548 = vector.extract_strided_slice %538 {offsets = [0, 64], sizes = [8, 32], strides = [1, 1]} : vector<8x128xf32> to vector<8x32xf32>
    %549 = arith.mulf %547, %548 : vector<8x32xf32>
    %550 = arith.addf %546, %549 : vector<8x32xf32>
    %551 = vector.extract_strided_slice %531 {offsets = [0, 96], sizes = [8, 32], strides = [1, 1]} : vector<8x128xf32> to vector<8x32xf32>
    %552 = math.tanh %544 : vector<8x32xf32>
    %553 = arith.mulf %551, %552 : vector<8x32xf32>
    %554 = vector.extract_strided_slice %537 {offsets = [0, 96], sizes = [8, 32], strides = [1, 1]} : vector<8x128xf32> to vector<8x32xf32>
    %555 = math.tanh %550 : vector<8x32xf32>
    %556 = arith.mulf %554, %555 : vector<8x32xf32>
    %557 = arith.addf %512, %553 : vector<8x32xf32>
    %558 = arith.addf %513, %556 : vector<8x32xf32>
    %c12_i32 = arith.constant 12 : i32
    %c8_i32_129 = arith.constant 8 : i32
    %559 = arith.muli %c12_i32, %c8_i32_129 : i32
    %560 = arith.index_cast %559 : i32 to index
    %c0_130 = arith.constant 0 : index
    %561 = vector.load %arg13[%560, %c0_130] : memref<128x256xf32, #tpu.memory_space<vmem>>, vector<8x256xf32>
    %c15_i32_131 = arith.constant 15 : i32
    %562 = arith.subi %c15_i32_131, %c12_i32 : i32
    %c8_i32_132 = arith.constant 8 : i32
    %563 = arith.muli %562, %c8_i32_132 : i32
    %564 = arith.index_cast %563 : i32 to index
    %c0_133 = arith.constant 0 : index
    %565 = vector.load %arg13[%564, %c0_133] : memref<128x256xf32, #tpu.memory_space<vmem>>, vector<8x256xf32>
    %566 = vector.extract_strided_slice %561 {offsets = [0, 0], sizes = [8, 128], strides = [1, 1]} : vector<8x256xf32> to vector<8x128xf32>
    %cst_134 = arith.constant dense<0.000000e+00> : vector<8x128xf32>
    %567 = tpu.matmul %553, %16, %cst_134 {dimension_numbers = #tpu.dot_dimension_numbers<[1], [0], [0], [1], [0, 0, 1, 1], [], []>} : vector<8x32xf32>, vector<32x128xf32>, vector<8x128xf32> -> vector<8x128xf32>
    %568 = arith.addf %566, %567 : vector<8x128xf32>
    %569 = vector.extract_strided_slice %565 {offsets = [0, 128], sizes = [8, 128], strides = [1, 1]} : vector<8x256xf32> to vector<8x128xf32>
    %cst_135 = arith.constant dense<0.000000e+00> : vector<8x128xf32>
    %570 = tpu.matmul %556, %17, %cst_135 {dimension_numbers = #tpu.dot_dimension_numbers<[1], [0], [0], [1], [0, 0, 1, 1], [], []>} : vector<8x32xf32>, vector<32x128xf32>, vector<8x128xf32> -> vector<8x128xf32>
    %571 = arith.addf %569, %570 : vector<8x128xf32>
    %572 = arith.negf %568 : vector<8x128xf32>
    %573 = math.exp %572 : vector<8x128xf32>
    %cst_136 = arith.constant 1.000000e+00 : f32
    %574 = vector.broadcast %cst_136 : f32 to vector<8x128xf32>
    %575 = arith.addf %574, %573 : vector<8x128xf32>
    %576 = arith.divf %574, %575 : vector<8x128xf32>
    %577 = math.tanh %568 : vector<8x128xf32>
    %578 = arith.negf %571 : vector<8x128xf32>
    %579 = math.exp %578 : vector<8x128xf32>
    %cst_137 = arith.constant 1.000000e+00 : f32
    %580 = vector.broadcast %cst_137 : f32 to vector<8x128xf32>
    %581 = arith.addf %580, %579 : vector<8x128xf32>
    %582 = arith.divf %580, %581 : vector<8x128xf32>
    %583 = math.tanh %571 : vector<8x128xf32>
    %584 = vector.extract_strided_slice %576 {offsets = [0, 32], sizes = [8, 32], strides = [1, 1]} : vector<8x128xf32> to vector<8x32xf32>
    %585 = arith.mulf %584, %544 : vector<8x32xf32>
    %586 = vector.extract_strided_slice %576 {offsets = [0, 0], sizes = [8, 32], strides = [1, 1]} : vector<8x128xf32> to vector<8x32xf32>
    %587 = vector.extract_strided_slice %577 {offsets = [0, 64], sizes = [8, 32], strides = [1, 1]} : vector<8x128xf32> to vector<8x32xf32>
    %588 = arith.mulf %586, %587 : vector<8x32xf32>
    %589 = arith.addf %585, %588 : vector<8x32xf32>
    %590 = vector.extract_strided_slice %582 {offsets = [0, 32], sizes = [8, 32], strides = [1, 1]} : vector<8x128xf32> to vector<8x32xf32>
    %591 = arith.mulf %590, %550 : vector<8x32xf32>
    %592 = vector.extract_strided_slice %582 {offsets = [0, 0], sizes = [8, 32], strides = [1, 1]} : vector<8x128xf32> to vector<8x32xf32>
    %593 = vector.extract_strided_slice %583 {offsets = [0, 64], sizes = [8, 32], strides = [1, 1]} : vector<8x128xf32> to vector<8x32xf32>
    %594 = arith.mulf %592, %593 : vector<8x32xf32>
    %595 = arith.addf %591, %594 : vector<8x32xf32>
    %596 = vector.extract_strided_slice %576 {offsets = [0, 96], sizes = [8, 32], strides = [1, 1]} : vector<8x128xf32> to vector<8x32xf32>
    %597 = math.tanh %589 : vector<8x32xf32>
    %598 = arith.mulf %596, %597 : vector<8x32xf32>
    %599 = vector.extract_strided_slice %582 {offsets = [0, 96], sizes = [8, 32], strides = [1, 1]} : vector<8x128xf32> to vector<8x32xf32>
    %600 = math.tanh %595 : vector<8x32xf32>
    %601 = arith.mulf %599, %600 : vector<8x32xf32>
    %602 = arith.addf %557, %598 : vector<8x32xf32>
    %603 = arith.addf %558, %601 : vector<8x32xf32>
    %c13_i32 = arith.constant 13 : i32
    %c8_i32_138 = arith.constant 8 : i32
    %604 = arith.muli %c13_i32, %c8_i32_138 : i32
    %605 = arith.index_cast %604 : i32 to index
    %c0_139 = arith.constant 0 : index
    %606 = vector.load %arg13[%605, %c0_139] : memref<128x256xf32, #tpu.memory_space<vmem>>, vector<8x256xf32>
    %c15_i32_140 = arith.constant 15 : i32
    %607 = arith.subi %c15_i32_140, %c13_i32 : i32
    %c8_i32_141 = arith.constant 8 : i32
    %608 = arith.muli %607, %c8_i32_141 : i32
    %609 = arith.index_cast %608 : i32 to index
    %c0_142 = arith.constant 0 : index
    %610 = vector.load %arg13[%609, %c0_142] : memref<128x256xf32, #tpu.memory_space<vmem>>, vector<8x256xf32>
    %611 = vector.extract_strided_slice %606 {offsets = [0, 0], sizes = [8, 128], strides = [1, 1]} : vector<8x256xf32> to vector<8x128xf32>
    %cst_143 = arith.constant dense<0.000000e+00> : vector<8x128xf32>
    %612 = tpu.matmul %598, %16, %cst_143 {dimension_numbers = #tpu.dot_dimension_numbers<[1], [0], [0], [1], [0, 0, 1, 1], [], []>} : vector<8x32xf32>, vector<32x128xf32>, vector<8x128xf32> -> vector<8x128xf32>
    %613 = arith.addf %611, %612 : vector<8x128xf32>
    %614 = vector.extract_strided_slice %610 {offsets = [0, 128], sizes = [8, 128], strides = [1, 1]} : vector<8x256xf32> to vector<8x128xf32>
    %cst_144 = arith.constant dense<0.000000e+00> : vector<8x128xf32>
    %615 = tpu.matmul %601, %17, %cst_144 {dimension_numbers = #tpu.dot_dimension_numbers<[1], [0], [0], [1], [0, 0, 1, 1], [], []>} : vector<8x32xf32>, vector<32x128xf32>, vector<8x128xf32> -> vector<8x128xf32>
    %616 = arith.addf %614, %615 : vector<8x128xf32>
    %617 = arith.negf %613 : vector<8x128xf32>
    %618 = math.exp %617 : vector<8x128xf32>
    %cst_145 = arith.constant 1.000000e+00 : f32
    %619 = vector.broadcast %cst_145 : f32 to vector<8x128xf32>
    %620 = arith.addf %619, %618 : vector<8x128xf32>
    %621 = arith.divf %619, %620 : vector<8x128xf32>
    %622 = math.tanh %613 : vector<8x128xf32>
    %623 = arith.negf %616 : vector<8x128xf32>
    %624 = math.exp %623 : vector<8x128xf32>
    %cst_146 = arith.constant 1.000000e+00 : f32
    %625 = vector.broadcast %cst_146 : f32 to vector<8x128xf32>
    %626 = arith.addf %625, %624 : vector<8x128xf32>
    %627 = arith.divf %625, %626 : vector<8x128xf32>
    %628 = math.tanh %616 : vector<8x128xf32>
    %629 = vector.extract_strided_slice %621 {offsets = [0, 32], sizes = [8, 32], strides = [1, 1]} : vector<8x128xf32> to vector<8x32xf32>
    %630 = arith.mulf %629, %589 : vector<8x32xf32>
    %631 = vector.extract_strided_slice %621 {offsets = [0, 0], sizes = [8, 32], strides = [1, 1]} : vector<8x128xf32> to vector<8x32xf32>
    %632 = vector.extract_strided_slice %622 {offsets = [0, 64], sizes = [8, 32], strides = [1, 1]} : vector<8x128xf32> to vector<8x32xf32>
    %633 = arith.mulf %631, %632 : vector<8x32xf32>
    %634 = arith.addf %630, %633 : vector<8x32xf32>
    %635 = vector.extract_strided_slice %627 {offsets = [0, 32], sizes = [8, 32], strides = [1, 1]} : vector<8x128xf32> to vector<8x32xf32>
    %636 = arith.mulf %635, %595 : vector<8x32xf32>
    %637 = vector.extract_strided_slice %627 {offsets = [0, 0], sizes = [8, 32], strides = [1, 1]} : vector<8x128xf32> to vector<8x32xf32>
    %638 = vector.extract_strided_slice %628 {offsets = [0, 64], sizes = [8, 32], strides = [1, 1]} : vector<8x128xf32> to vector<8x32xf32>
    %639 = arith.mulf %637, %638 : vector<8x32xf32>
    %640 = arith.addf %636, %639 : vector<8x32xf32>
    %641 = vector.extract_strided_slice %621 {offsets = [0, 96], sizes = [8, 32], strides = [1, 1]} : vector<8x128xf32> to vector<8x32xf32>
    %642 = math.tanh %634 : vector<8x32xf32>
    %643 = arith.mulf %641, %642 : vector<8x32xf32>
    %644 = vector.extract_strided_slice %627 {offsets = [0, 96], sizes = [8, 32], strides = [1, 1]} : vector<8x128xf32> to vector<8x32xf32>
    %645 = math.tanh %640 : vector<8x32xf32>
    %646 = arith.mulf %644, %645 : vector<8x32xf32>
    %647 = arith.addf %602, %643 : vector<8x32xf32>
    %648 = arith.addf %603, %646 : vector<8x32xf32>
    %c14_i32 = arith.constant 14 : i32
    %c8_i32_147 = arith.constant 8 : i32
    %649 = arith.muli %c14_i32, %c8_i32_147 : i32
    %650 = arith.index_cast %649 : i32 to index
    %c0_148 = arith.constant 0 : index
    %651 = vector.load %arg13[%650, %c0_148] : memref<128x256xf32, #tpu.memory_space<vmem>>, vector<8x256xf32>
    %c15_i32_149 = arith.constant 15 : i32
    %652 = arith.subi %c15_i32_149, %c14_i32 : i32
    %c8_i32_150 = arith.constant 8 : i32
    %653 = arith.muli %652, %c8_i32_150 : i32
    %654 = arith.index_cast %653 : i32 to index
    %c0_151 = arith.constant 0 : index
    %655 = vector.load %arg13[%654, %c0_151] : memref<128x256xf32, #tpu.memory_space<vmem>>, vector<8x256xf32>
    %656 = vector.extract_strided_slice %651 {offsets = [0, 0], sizes = [8, 128], strides = [1, 1]} : vector<8x256xf32> to vector<8x128xf32>
    %cst_152 = arith.constant dense<0.000000e+00> : vector<8x128xf32>
    %657 = tpu.matmul %643, %16, %cst_152 {dimension_numbers = #tpu.dot_dimension_numbers<[1], [0], [0], [1], [0, 0, 1, 1], [], []>} : vector<8x32xf32>, vector<32x128xf32>, vector<8x128xf32> -> vector<8x128xf32>
    %658 = arith.addf %656, %657 : vector<8x128xf32>
    %659 = vector.extract_strided_slice %655 {offsets = [0, 128], sizes = [8, 128], strides = [1, 1]} : vector<8x256xf32> to vector<8x128xf32>
    %cst_153 = arith.constant dense<0.000000e+00> : vector<8x128xf32>
    %660 = tpu.matmul %646, %17, %cst_153 {dimension_numbers = #tpu.dot_dimension_numbers<[1], [0], [0], [1], [0, 0, 1, 1], [], []>} : vector<8x32xf32>, vector<32x128xf32>, vector<8x128xf32> -> vector<8x128xf32>
    %661 = arith.addf %659, %660 : vector<8x128xf32>
    %662 = arith.negf %658 : vector<8x128xf32>
    %663 = math.exp %662 : vector<8x128xf32>
    %cst_154 = arith.constant 1.000000e+00 : f32
    %664 = vector.broadcast %cst_154 : f32 to vector<8x128xf32>
    %665 = arith.addf %664, %663 : vector<8x128xf32>
    %666 = arith.divf %664, %665 : vector<8x128xf32>
    %667 = math.tanh %658 : vector<8x128xf32>
    %668 = arith.negf %661 : vector<8x128xf32>
    %669 = math.exp %668 : vector<8x128xf32>
    %cst_155 = arith.constant 1.000000e+00 : f32
    %670 = vector.broadcast %cst_155 : f32 to vector<8x128xf32>
    %671 = arith.addf %670, %669 : vector<8x128xf32>
    %672 = arith.divf %670, %671 : vector<8x128xf32>
    %673 = math.tanh %661 : vector<8x128xf32>
    %674 = vector.extract_strided_slice %666 {offsets = [0, 32], sizes = [8, 32], strides = [1, 1]} : vector<8x128xf32> to vector<8x32xf32>
    %675 = arith.mulf %674, %634 : vector<8x32xf32>
    %676 = vector.extract_strided_slice %666 {offsets = [0, 0], sizes = [8, 32], strides = [1, 1]} : vector<8x128xf32> to vector<8x32xf32>
    %677 = vector.extract_strided_slice %667 {offsets = [0, 64], sizes = [8, 32], strides = [1, 1]} : vector<8x128xf32> to vector<8x32xf32>
    %678 = arith.mulf %676, %677 : vector<8x32xf32>
    %679 = arith.addf %675, %678 : vector<8x32xf32>
    %680 = vector.extract_strided_slice %672 {offsets = [0, 32], sizes = [8, 32], strides = [1, 1]} : vector<8x128xf32> to vector<8x32xf32>
    %681 = arith.mulf %680, %640 : vector<8x32xf32>
    %682 = vector.extract_strided_slice %672 {offsets = [0, 0], sizes = [8, 32], strides = [1, 1]} : vector<8x128xf32> to vector<8x32xf32>
    %683 = vector.extract_strided_slice %673 {offsets = [0, 64], sizes = [8, 32], strides = [1, 1]} : vector<8x128xf32> to vector<8x32xf32>
    %684 = arith.mulf %682, %683 : vector<8x32xf32>
    %685 = arith.addf %681, %684 : vector<8x32xf32>
    %686 = vector.extract_strided_slice %666 {offsets = [0, 96], sizes = [8, 32], strides = [1, 1]} : vector<8x128xf32> to vector<8x32xf32>
    %687 = math.tanh %679 : vector<8x32xf32>
    %688 = arith.mulf %686, %687 : vector<8x32xf32>
    %689 = vector.extract_strided_slice %672 {offsets = [0, 96], sizes = [8, 32], strides = [1, 1]} : vector<8x128xf32> to vector<8x32xf32>
    %690 = math.tanh %685 : vector<8x32xf32>
    %691 = arith.mulf %689, %690 : vector<8x32xf32>
    %692 = arith.addf %647, %688 : vector<8x32xf32>
    %693 = arith.addf %648, %691 : vector<8x32xf32>
    %c15_i32_156 = arith.constant 15 : i32
    %c8_i32_157 = arith.constant 8 : i32
    %694 = arith.muli %c15_i32_156, %c8_i32_157 : i32
    %695 = arith.index_cast %694 : i32 to index
    %c0_158 = arith.constant 0 : index
    %696 = vector.load %arg13[%695, %c0_158] : memref<128x256xf32, #tpu.memory_space<vmem>>, vector<8x256xf32>
    %c15_i32_159 = arith.constant 15 : i32
    %697 = arith.subi %c15_i32_159, %c15_i32_156 : i32
    %c8_i32_160 = arith.constant 8 : i32
    %698 = arith.muli %697, %c8_i32_160 : i32
    %699 = arith.index_cast %698 : i32 to index
    %c0_161 = arith.constant 0 : index
    %700 = vector.load %arg13[%699, %c0_161] : memref<128x256xf32, #tpu.memory_space<vmem>>, vector<8x256xf32>
    %701 = vector.extract_strided_slice %696 {offsets = [0, 0], sizes = [8, 128], strides = [1, 1]} : vector<8x256xf32> to vector<8x128xf32>
    %cst_162 = arith.constant dense<0.000000e+00> : vector<8x128xf32>
    %702 = tpu.matmul %688, %16, %cst_162 {dimension_numbers = #tpu.dot_dimension_numbers<[1], [0], [0], [1], [0, 0, 1, 1], [], []>} : vector<8x32xf32>, vector<32x128xf32>, vector<8x128xf32> -> vector<8x128xf32>
    %703 = arith.addf %701, %702 : vector<8x128xf32>
    %704 = vector.extract_strided_slice %700 {offsets = [0, 128], sizes = [8, 128], strides = [1, 1]} : vector<8x256xf32> to vector<8x128xf32>
    %cst_163 = arith.constant dense<0.000000e+00> : vector<8x128xf32>
    %705 = tpu.matmul %691, %17, %cst_163 {dimension_numbers = #tpu.dot_dimension_numbers<[1], [0], [0], [1], [0, 0, 1, 1], [], []>} : vector<8x32xf32>, vector<32x128xf32>, vector<8x128xf32> -> vector<8x128xf32>
    %706 = arith.addf %704, %705 : vector<8x128xf32>
    %707 = arith.negf %703 : vector<8x128xf32>
    %708 = math.exp %707 : vector<8x128xf32>
    %cst_164 = arith.constant 1.000000e+00 : f32
    %709 = vector.broadcast %cst_164 : f32 to vector<8x128xf32>
    %710 = arith.addf %709, %708 : vector<8x128xf32>
    %711 = arith.divf %709, %710 : vector<8x128xf32>
    %712 = math.tanh %703 : vector<8x128xf32>
    %713 = arith.negf %706 : vector<8x128xf32>
    %714 = math.exp %713 : vector<8x128xf32>
    %cst_165 = arith.constant 1.000000e+00 : f32
    %715 = vector.broadcast %cst_165 : f32 to vector<8x128xf32>
    %716 = arith.addf %715, %714 : vector<8x128xf32>
    %717 = arith.divf %715, %716 : vector<8x128xf32>
    %718 = math.tanh %706 : vector<8x128xf32>
    %719 = vector.extract_strided_slice %711 {offsets = [0, 32], sizes = [8, 32], strides = [1, 1]} : vector<8x128xf32> to vector<8x32xf32>
    %720 = arith.mulf %719, %679 : vector<8x32xf32>
    %721 = vector.extract_strided_slice %711 {offsets = [0, 0], sizes = [8, 32], strides = [1, 1]} : vector<8x128xf32> to vector<8x32xf32>
    %722 = vector.extract_strided_slice %712 {offsets = [0, 64], sizes = [8, 32], strides = [1, 1]} : vector<8x128xf32> to vector<8x32xf32>
    %723 = arith.mulf %721, %722 : vector<8x32xf32>
    %724 = arith.addf %720, %723 : vector<8x32xf32>
    %725 = vector.extract_strided_slice %717 {offsets = [0, 32], sizes = [8, 32], strides = [1, 1]} : vector<8x128xf32> to vector<8x32xf32>
    %726 = arith.mulf %725, %685 : vector<8x32xf32>
    %727 = vector.extract_strided_slice %717 {offsets = [0, 0], sizes = [8, 32], strides = [1, 1]} : vector<8x128xf32> to vector<8x32xf32>
    %728 = vector.extract_strided_slice %718 {offsets = [0, 64], sizes = [8, 32], strides = [1, 1]} : vector<8x128xf32> to vector<8x32xf32>
    %729 = arith.mulf %727, %728 : vector<8x32xf32>
    %730 = arith.addf %726, %729 : vector<8x32xf32>
    %731 = vector.extract_strided_slice %711 {offsets = [0, 96], sizes = [8, 32], strides = [1, 1]} : vector<8x128xf32> to vector<8x32xf32>
    %732 = math.tanh %724 : vector<8x32xf32>
    %733 = arith.mulf %731, %732 : vector<8x32xf32>
    %734 = vector.extract_strided_slice %717 {offsets = [0, 96], sizes = [8, 32], strides = [1, 1]} : vector<8x128xf32> to vector<8x32xf32>
    %735 = math.tanh %730 : vector<8x32xf32>
    %736 = arith.mulf %734, %735 : vector<8x32xf32>
    %737 = arith.addf %692, %733 : vector<8x32xf32>
    %738 = arith.addf %693, %736 : vector<8x32xf32>
    %c16_i32 = arith.constant 16 : i32
    %c0_166 = arith.constant 0 : index
    %c0_167 = arith.constant 0 : index
    %739 = vector.load %arg9[%c0_166, %c0_167] : memref<32x4xf32, #tpu.memory_space<vmem>>, vector<32x4xf32>
    %cst_168 = arith.constant dense<0.000000e+00> : vector<8x4xf32>
    %740 = tpu.matmul %737, %739, %cst_168 {dimension_numbers = #tpu.dot_dimension_numbers<[1], [0], [0], [1], [0, 0, 1, 1], [], []>} : vector<8x32xf32>, vector<32x4xf32>, vector<8x4xf32> -> vector<8x4xf32>
    %c0_169 = arith.constant 0 : index
    %c0_170 = arith.constant 0 : index
    %741 = vector.load %arg10[%c0_169, %c0_170] : memref<32x4xf32, #tpu.memory_space<vmem>>, vector<32x4xf32>
    %cst_171 = arith.constant dense<0.000000e+00> : vector<8x4xf32>
    %742 = tpu.matmul %738, %741, %cst_171 {dimension_numbers = #tpu.dot_dimension_numbers<[1], [0], [0], [1], [0, 0, 1, 1], [], []>} : vector<8x32xf32>, vector<32x4xf32>, vector<8x4xf32> -> vector<8x4xf32>
    %743 = arith.addf %740, %742 : vector<8x4xf32>
    %cst_172 = arith.constant 6.250000e-02 : f32
    %744 = vector.broadcast %cst_172 : f32 to vector<8x4xf32>
    %745 = arith.mulf %743, %744 : vector<8x4xf32>
    %c0_173 = arith.constant 0 : index
    %c0_174 = arith.constant 0 : index
    %746 = vector.load %arg11[%c0_173, %c0_174] : memref<1x4xf32, #tpu.memory_space<vmem>>, vector<1x4xf32>
    %747 = vector.broadcast %746 : vector<1x4xf32> to vector<8x4xf32>
    %748 = arith.addf %745, %747 : vector<8x4xf32>
    %749 = arith.negf %748 : vector<8x4xf32>
    %750 = math.exp %749 : vector<8x4xf32>
    %cst_175 = arith.constant 1.000000e+00 : f32
    %751 = vector.broadcast %cst_175 : f32 to vector<8x4xf32>
    %752 = arith.addf %751, %750 : vector<8x4xf32>
    %753 = arith.divf %751, %752 : vector<8x4xf32>
    %c0_176 = arith.constant 0 : index
    %c0_177 = arith.constant 0 : index
    %754 = vector.load %arg12[%c0_176, %c0_177] : memref<8x4xf32, #tpu.memory_space<vmem>>, vector<8x4xf32>
    tpu.vector_store %arg12[%c0_176, %c0_177], %753 {strides = array<i32>} : memref<8x4xf32, #tpu.memory_space<vmem>>, vector<8x4xf32>,
    return
  }
  func.func @transform_0(%arg0: i32) -> (i32, i32, i32) {
    %c0_i32 = arith.constant 0 : i32
    %c0_i32_0 = arith.constant 0 : i32
    %c0_i32_1 = arith.constant 0 : i32
    return %arg0, %c0_i32, %c0_i32_0 : i32, i32, i32
  }
  func.func @transform_1(%arg0: i32) -> (i32, i32, i32) {
    %c0_i32 = arith.constant 0 : i32
    %c0_i32_0 = arith.constant 0 : i32
    %c0_i32_1 = arith.constant 0 : i32
    return %arg0, %c0_i32, %c0_i32_0 : i32, i32, i32
  }
  func.func @transform_2(%arg0: i32) -> (i32, i32) {
    %c0_i32 = arith.constant 0 : i32
    %c0_i32_0 = arith.constant 0 : i32
    %c0_i32_1 = arith.constant 0 : i32
    return %c0_i32, %c0_i32_0 : i32, i32
  }
  func.func @transform_3(%arg0: i32) -> (i32, i32) {
    %c0_i32 = arith.constant 0 : i32
    %c0_i32_0 = arith.constant 0 : i32
    %c0_i32_1 = arith.constant 0 : i32
    return %c0_i32, %c0_i32_0 : i32, i32
  }
  func.func @transform_4(%arg0: i32) -> (i32, i32) {
    %c0_i32 = arith.constant 0 : i32
    %c0_i32_0 = arith.constant 0 : i32
    %c0_i32_1 = arith.constant 0 : i32
    return %c0_i32, %c0_i32_0 : i32, i32
  }
  func.func @transform_5(%arg0: i32) -> (i32, i32) {
    %c0_i32 = arith.constant 0 : i32
    %c0_i32_0 = arith.constant 0 : i32
    %c0_i32_1 = arith.constant 0 : i32
    return %c0_i32, %c0_i32_0 : i32, i32
  }
  func.func @transform_6(%arg0: i32) -> (i32, i32) {
    %c0_i32 = arith.constant 0 : i32
    %c0_i32_0 = arith.constant 0 : i32
    %c0_i32_1 = arith.constant 0 : i32
    return %c0_i32, %c0_i32_0 : i32, i32
  }
  func.func @transform_7(%arg0: i32) -> (i32, i32) {
    %c0_i32 = arith.constant 0 : i32
    %c0_i32_0 = arith.constant 0 : i32
    %c0_i32_1 = arith.constant 0 : i32
    return %c0_i32, %c0_i32_0 : i32, i32
  }
  func.func @transform_8(%arg0: i32) -> (i32, i32) {
    %c0_i32 = arith.constant 0 : i32
    %c0_i32_0 = arith.constant 0 : i32
    %c0_i32_1 = arith.constant 0 : i32
    return %c0_i32, %c0_i32_0 : i32, i32
  }
  func.func @transform_9(%arg0: i32) -> (i32, i32) {
    %c0_i32 = arith.constant 0 : i32
    %c0_i32_0 = arith.constant 0 : i32
    %c0_i32_1 = arith.constant 0 : i32
    return %c0_i32, %c0_i32_0 : i32, i32
  }
  func.func @transform_10(%arg0: i32) -> (i32, i32) {
    %c0_i32 = arith.constant 0 : i32
    %c0_i32_0 = arith.constant 0 : i32
    %c0_i32_1 = arith.constant 0 : i32
    return %c0_i32, %c0_i32_0 : i32, i32
  }
  func.func @transform_11(%arg0: i32) -> (i32, i32) {
    %c0_i32 = arith.constant 0 : i32
    %c0_i32_0 = arith.constant 0 : i32
    return %arg0, %c0_i32 : i32, i32
  }
}

</mosaic_0001>

<llo_original>
// kernel: speech_classifier_forward.1
$region0: #{speech_classifier_forward.1}
  #allocation0 [shape = 'u32[]', space=smem, size = 0x4, offset = 0x4, fixed_abs, tag = 'smem constant byte address 0x4 - core index']
  #allocation1 [shape = 'u32[72,128]{1,0:T(1,128)}', space=vmem, size = 0x9000, scoped, tag = 'internal scratch']
  #allocation2 [shape = 'f32[128,256]{1,0:T(8,128)}', space=vmem, size = 0x20000, scoped, tag = 'scratch operand']
  %s0 = inlined_call_operand.vmem [shape: f32[2,64,40], index: 0, kind: input, shape index: {}]
  %s1 = inlined_call_operand.vmem [shape: bf16[2,64,768], index: 1, kind: input, shape index: {}]
  %s2 = inlined_call_operand.vmem [shape: f32[40,256], index: 2, kind: input, shape index: {}]
  %s3 = inlined_call_operand.vmem [shape: f32[1,256], index: 3, kind: input, shape index: {}]
  %s4 = inlined_call_operand.vmem [shape: bf16[768,256], index: 4, kind: input, shape index: {}]
  %s5 = inlined_call_operand.vmem [shape: f32[1,256], index: 5, kind: input, shape index: {}]
  %s6 = inlined_call_operand.vmem [shape: f32[32,128], index: 6, kind: input, shape index: {}]
  %s7 = inlined_call_operand.vmem [shape: f32[32,128], index: 7, kind: input, shape index: {}]
  %s8 = inlined_call_operand.vmem [shape: f32[32,4], index: 8, kind: input, shape index: {}]
  %s9 = inlined_call_operand.vmem [shape: f32[32,4], index: 9, kind: input, shape index: {}]
  %s10 = inlined_call_operand.vmem [shape: f32[1,4], index: 10, kind: input, shape index: {}]
  %s11 = inlined_call_operand.vmem [shape: f32[16,4], index: 11, kind: output, shape index: {}]
  %s12 = sld [smem:[#allocation0]]
  $region77: #{speech_classifier_forward.1} parent=0
    _
  %s14 = ssub.s32 1, %s12
  %s15 = scalar_select 0, %s14, %s12
  loop: start=0, step=1, limit=4
  $region2: #{speech_classifier_forward.1} parent=0 // loop_pre_header
    _
  $region3: #{speech_classifier_forward.1} parent=0 // loop_header
    %s17 = sphi 0, %s21
    %p18 = scmp.ge.s32.totalorder %s17, 4
    %s27 = sphi 0, %s29
    %s30 = sphi 0, %s27
    %s31 = sphi 0, %s30
    %s47 = sphi 0, %s31
    %s53 = sphi 0, %s55
    %s56 = sphi 0, %s53
    %s57 = sphi 0, %s56
    %s73 = sphi 0, %s57
    %s77 = sphi 0, %s77
    %s79 = sphi 0, %s77
    %s80 = sphi 0, %s79
    %s94 = sphi 0, %s80
    %s98 = sphi 0, %s98
    %s100 = sphi 0, %s98
    %s101 = sphi 0, %s100
    %s115 = sphi 0, %s101
    %s119 = sphi 0, %s119
    %s121 = sphi 0, %s119
    %s122 = sphi 0, %s121
    %s136 = sphi 0, %s122
    %s140 = sphi 0, %s140
    %s142 = sphi 0, %s140
    %s143 = sphi 0, %s142
    %s157 = sphi 0, %s143
    %s161 = sphi 0, %s161
    %s163 = sphi 0, %s161
    %s164 = sphi 0, %s163
    %s178 = sphi 0, %s164
    %s182 = sphi 0, %s182
    %s184 = sphi 0, %s182
    %s185 = sphi 0, %s184
    %s199 = sphi 0, %s185
    %s203 = sphi 0, %s203
    %s205 = sphi 0, %s203
    %s206 = sphi 0, %s205
    %s220 = sphi 0, %s206
    %s224 = sphi 0, %s224
    %s226 = sphi 0, %s224
    %s227 = sphi 0, %s226
    %s241 = sphi 0, %s227
    %s245 = sphi 0, %s245
    %s247 = sphi 0, %s245
    %s248 = sphi 0, %s247
    %s262 = sphi 0, %s248
    %s268 = sphi 0, %s270
    %s271 = sphi 0, %s268
    %s272 = sphi 0, %s271
    %s288 = sphi 0, %s272
  $region4: #{speech_classifier_forward.1} parent=0 // loop_header_branch
    %20 = sbr.rel (%p18) target = $region8
  $region5: #{speech_classifier_forward.1} parent=0 // loop_body
    %s22 = ssub.s32 %s17, 1
    %s23 = ssub.s32 %s17, 2
    %s24 = sadd.s32 %s17, 1
    %s25 = ssub.s32 %s17, %s24
    %p26 = scmp.eq.s32.totalorder %s25, 0
    %s28 = sadd.s32 %s27, 1
    %s29 = scalar_select %p26, %s27, %s28
    %p32 = pneg %p26
    %p33 = scmp.eq.s32.totalorder %s17, 1
    %p34 = por %p32, %p33
    %p35 = scmp.ne.s32.totalorder %s27, %s30
    %p36 = scmp.eq.s32.totalorder %s17, 0
    %p37 = por %p35, %p36
    %p38 = scmp.ne.s32.totalorder %s27, %s30
    %p39 = scmp.eq.s32.totalorder %s22, 1
    %p40 = por %p38, %p39
    %p41 = scmp.ne.s32.totalorder %s30, %s31
    %p42 = scmp.eq.s32.totalorder %s22, 0
    %p43 = por %p41, %p42
    %p44 = scmp.ne.s32.totalorder %s30, %s31
    %p45 = scmp.eq.s32.totalorder %s23, 1
    %p46 = por %p44, %p45
    %p48 = scmp.ne.s32.totalorder %s31, %s47
    %p49 = scmp.eq.s32.totalorder %s23, 0
    %p50 = por %p48, %p49
    %s51 = ssub.s32 %s17, %s24
    %p52 = scmp.eq.s32.totalorder %s51, 0
    %s54 = sadd.s32 %s53, 1
    %s55 = scalar_select %p52, %s53, %s54
    %p58 = pneg %p52
    %p59 = scmp.eq.s32.totalorder %s17, 1
    %p60 = por %p58, %p59
    %p61 = scmp.ne.s32.totalorder %s53, %s56
    %p62 = scmp.eq.s32.totalorder %s17, 0
    %p63 = por %p61, %p62
    %p64 = scmp.ne.s32.totalorder %s53, %s56
    %p65 = scmp.eq.s32.totalorder %s22, 1
    %p66 = por %p64, %p65
    %p67 = scmp.ne.s32.totalorder %s56, %s57
    %p68 = scmp.eq.s32.totalorder %s22, 0
    %p69 = por %p67, %p68
    %p70 = scmp.ne.s32.totalorder %s56, %s57
    %p71 = scmp.eq.s32.totalorder %s23, 1
    %p72 = por %p70, %p71
    %p74 = scmp.ne.s32.totalorder %s57, %s73
    %p75 = scmp.eq.s32.totalorder %s23, 0
    %p76 = por %p74, %p75
    %s78 = sadd.s32 %s77, 1
    %p81 = scmp.eq.s32.totalorder %s17, 1
    %p82 = scmp.ne.s32.totalorder %s77, %s79
    %p83 = scmp.eq.s32.totalorder %s17, 0
    %p84 = por %p82, %p83
    %p85 = scmp.ne.s32.totalorder %s77, %s79
    %p86 = scmp.eq.s32.totalorder %s22, 1
    %p87 = por %p85, %p86
    %p88 = scmp.ne.s32.totalorder %s79, %s80
    %p89 = scmp.eq.s32.totalorder %s22, 0
    %p90 = por %p88, %p89
    %p91 = scmp.ne.s32.totalorder %s79, %s80
    %p92 = scmp.eq.s32.totalorder %s23, 1
    %p93 = por %p91, %p92
    %p95 = scmp.ne.s32.totalorder %s80, %s94
    %p96 = scmp.eq.s32.totalorder %s23, 0
    %p97 = por %p95, %p96
    %s99 = sadd.s32 %s98, 1
    %p102 = scmp.eq.s32.totalorder %s17, 1
    %p103 = scmp.ne.s32.totalorder %s98, %s100
    %p104 = scmp.eq.s32.totalorder %s17, 0
    %p105 = por %p103, %p104
    %p106 = scmp.ne.s32.totalorder %s98, %s100
    %p107 = scmp.eq.s32.totalorder %s22, 1
    %p108 = por %p106, %p107
    %p109 = scmp.ne.s32.totalorder %s100, %s101
    %p110 = scmp.eq.s32.totalorder %s22, 0
    %p111 = por %p109, %p110
    %p112 = scmp.ne.s32.totalorder %s100, %s101
    %p113 = scmp.eq.s32.totalorder %s23, 1
    %p114 = por %p112, %p113
    %p116 = scmp.ne.s32.totalorder %s101, %s115
    %p117 = scmp.eq.s32.totalorder %s23, 0
    %p118 = por %p116, %p117
    %s120 = sadd.s32 %s119, 1
    %p123 = scmp.eq.s32.totalorder %s17, 1
    %p124 = scmp.ne.s32.totalorder %s119, %s121
    %p125 = scmp.eq.s32.totalorder %s17, 0
    %p126 = por %p124, %p125
    %p127 = scmp.ne.s32.totalorder %s119, %s121
    %p128 = scmp.eq.s32.totalorder %s22, 1
    %p129 = por %p127, %p128
    %p130 = scmp.ne.s32.totalorder %s121, %s122
    %p131 = scmp.eq.s32.totalorder %s22, 0
    %p132 = por %p130, %p131
    %p133 = scmp.ne.s32.totalorder %s121, %s122
    %p134 = scmp.eq.s32.totalorder %s23, 1
    %p135 = por %p133, %p134
    %p137 = scmp.ne.s32.totalorder %s122, %s136
    %p138 = scmp.eq.s32.totalorder %s23, 0
    %p139 = por %p137, %p138
    %s141 = sadd.s32 %s140, 1
    %p144 = scmp.eq.s32.totalorder %s17, 1
    %p145 = scmp.ne.s32.totalorder %s140, %s142
    %p146 = scmp.eq.s32.totalorder %s17, 0
    %p147 = por %p145, %p146
    %p148 = scmp.ne.s32.totalorder %s140, %s142
    %p149 = scmp.eq.s32.totalorder %s22, 1
    %p150 = por %p148, %p149
    %p151 = scmp.ne.s32.totalorder %s142, %s143
    %p152 = scmp.eq.s32.totalorder %s22, 0
    %p153 = por %p151, %p152
    %p154 = scmp.ne.s32.totalorder %s142, %s143
    %p155 = scmp.eq.s32.totalorder %s23, 1
    %p156 = por %p154, %p155
    %p158 = scmp.ne.s32.totalorder %s143, %s157
    %p159 = scmp.eq.s32.totalorder %s23, 0
    %p160 = por %p158, %p159
    %s162 = sadd.s32 %s161, 1
    %p165 = scmp.eq.s32.totalorder %s17, 1
    %p166 = scmp.ne.s32.totalorder %s161, %s163
    %p167 = scmp.eq.s32.totalorder %s17, 0
    %p168 = por %p166, %p167
    %p169 = scmp.ne.s32.totalorder %s161, %s163
    %p170 = scmp.eq.s32.totalorder %s22, 1
    %p171 = por %p169, %p170
    %p172 = scmp.ne.s32.totalorder %s163, %s164
    %p173 = scmp.eq.s32.totalorder %s22, 0
    %p174 = por %p172, %p173
    %p175 = scmp.ne.s32.totalorder %s163, %s164
    %p176 = scmp.eq.s32.totalorder %s23, 1
    %p177 = por %p175, %p176
    %p179 = scmp.ne.s32.totalorder %s164, %s178
    %p180 = scmp.eq.s32.totalorder %s23, 0
    %p181 = por %p179, %p180
    %s183 = sadd.s32 %s182, 1
    %p186 = scmp.eq.s32.totalorder %s17, 1
    %p187 = scmp.ne.s32.totalorder %s182, %s184
    %p188 = scmp.eq.s32.totalorder %s17, 0
    %p189 = por %p187, %p188
    %p190 = scmp.ne.s32.totalorder %s182, %s184
    %p191 = scmp.eq.s32.totalorder %s22, 1
    %p192 = por %p190, %p191
    %p193 = scmp.ne.s32.totalorder %s184, %s185
    %p194 = scmp.eq.s32.totalorder %s22, 0
    %p195 = por %p193, %p194
    %p196 = scmp.ne.s32.totalorder %s184, %s185
    %p197 = scmp.eq.s32.totalorder %s23, 1
    %p198 = por %p196, %p197
    %p200 = scmp.ne.s32.totalorder %s185, %s199
    %p201 = scmp.eq.s32.totalorder %s23, 0
    %p202 = por %p200, %p201
    %s204 = sadd.s32 %s203, 1
    %p207 = scmp.eq.s32.totalorder %s17, 1
    %p208 = scmp.ne.s32.totalorder %s203, %s205
    %p209 = scmp.eq.s32.totalorder %s17, 0
    %p210 = por %p208, %p209
    %p211 = scmp.ne.s32.totalorder %s203, %s205
    %p212 = scmp.eq.s32.totalorder %s22, 1
    %p213 = por %p211, %p212
    %p214 = scmp.ne.s32.totalorder %s205, %s206
    %p215 = scmp.eq.s32.totalorder %s22, 0
    %p216 = por %p214, %p215
    %p217 = scmp.ne.s32.totalorder %s205, %s206
    %p218 = scmp.eq.s32.totalorder %s23, 1
    %p219 = por %p217, %p218
    %p221 = scmp.ne.s32.totalorder %s206, %s220
    %p222 = scmp.eq.s32.totalorder %s23, 0
    %p223 = por %p221, %p222
    %s225 = sadd.s32 %s224, 1
    %p228 = scmp.eq.s32.totalorder %s17, 1
    %p229 = scmp.ne.s32.totalorder %s224, %s226
    %p230 = scmp.eq.s32.totalorder %s17, 0
    %p231 = por %p229, %p230
    %p232 = scmp.ne.s32.totalorder %s224, %s226
    %p233 = scmp.eq.s32.totalorder %s22, 1
    %p234 = por %p232, %p233
    %p235 = scmp.ne.s32.totalorder %s226, %s227
    %p236 = scmp.eq.s32.totalorder %s22, 0
    %p237 = por %p235, %p236
    %p238 = scmp.ne.s32.totalorder %s226, %s227
    %p239 = scmp.eq.s32.totalorder %s23, 1
    %p240 = por %p238, %p239
    %p242 = scmp.ne.s32.totalorder %s227, %s241
    %p243 = scmp.eq.s32.totalorder %s23, 0
    %p244 = por %p242, %p243
    %s246 = sadd.s32 %s245, 1
    %p249 = scmp.eq.s32.totalorder %s17, 1
    %p250 = scmp.ne.s32.totalorder %s245, %s247
    %p251 = scmp.eq.s32.totalorder %s17, 0
    %p252 = por %p250, %p251
    %p253 = scmp.ne.s32.totalorder %s245, %s247
    %p254 = scmp.eq.s32.totalorder %s22, 1
    %p255 = por %p253, %p254
    %p256 = scmp.ne.s32.totalorder %s247, %s248
    %p257 = scmp.eq.s32.totalorder %s22, 0
    %p258 = por %p256, %p257
    %p259 = scmp.ne.s32.totalorder %s247, %s248
    %p260 = scmp.eq.s32.totalorder %s23, 1
    %p261 = por %p259, %p260
    %p263 = scmp.ne.s32.totalorder %s248, %s262
    %p264 = scmp.eq.s32.totalorder %s23, 0
    %p265 = por %p263, %p264
    %s266 = ssub.s32 %s17, %s24
    %p267 = scmp.eq.s32.totalorder %s266, 0
    %s269 = sadd.s32 %s268, 1
    %s270 = scalar_select %p267, %s268, %s269
    %p273 = pneg %p267
    %p274 = scmp.eq.s32.totalorder %s17, 1
    %p275 = por %p273, %p274
    %p276 = scmp.ne.s32.totalorder %s268, %s271
    %p277 = scmp.eq.s32.totalorder %s17, 0
    %p278 = por %p276, %p277
    %p279 = scmp.ne.s32.totalorder %s268, %s271
    %p280 = scmp.eq.s32.totalorder %s22, 1
    %p281 = por %p279, %p280
    %p282 = scmp.ne.s32.totalorder %s271, %s272
    %p283 = scmp.eq.s32.totalorder %s22, 0
    %p284 = por %p282, %p283
    %p285 = scmp.ne.s32.totalorder %s271, %s272
    %p286 = scmp.eq.s32.totalorder %s23, 1
    %p287 = por %p285, %p286
    %p289 = scmp.ne.s32.totalorder %s272, %s288
    %p290 = scmp.eq.s32.totalorder %s23, 0
    %p291 = por %p289, %p290
    %p292 = scmp.le.s32.totalorder 1, %s17
    %p293 = scmp.lt.s32.totalorder %s17, 3
    %p294 = pnand %p292, %p293
    %p295 = pneg %p294
    // Predicated region
    $region9: #{speech_classifier_forward.1} parent=5 // pred_check
      _
    $region10: #{speech_classifier_forward.1} parent=5 // pred_check_branch
      %297 = sbr.rel (%p294) target = $region12
    $region11: #{speech_classifier_forward.1} parent=5 // pred_region
      %s298 = ssub.s32 %s17, 1
      // Predicated region
      $region13: #{speech_classifier_forward.1} parent=11 // pred_check
        %p299 = pneg %p90
      $region14: #{speech_classifier_forward.1} parent=11 // pred_check_branch
        %301 = sbr.rel (%p299) target = $region16
      $region15: #{speech_classifier_forward.1} parent=11 // pred_region
        _
      $region16: #{speech_classifier_forward.1} parent=11 // pred_fallthru
        _
      // Predicated region
      $region17: #{speech_classifier_forward.1} parent=11 // pred_check
        %p302 = pneg %p111
      $region18: #{speech_classifier_forward.1} parent=11 // pred_check_branch
        %304 = sbr.rel (%p302) target = $region20
      $region19: #{speech_classifier_forward.1} parent=11 // pred_region
        _
      $region20: #{speech_classifier_forward.1} parent=11 // pred_fallthru
        _
      // Predicated region
      $region21: #{speech_classifier_forward.1} parent=11 // pred_check
        %p305 = pneg %p132
      $region22: #{speech_classifier_forward.1} parent=11 // pred_check_branch
        %307 = sbr.rel (%p305) target = $region24
      $region23: #{speech_classifier_forward.1} parent=11 // pred_region
        _
      $region24: #{speech_classifier_forward.1} parent=11 // pred_fallthru
        _
      // Predicated region
      $region25: #{speech_classifier_forward.1} parent=11 // pred_check
        %p308 = pneg %p153
      $region26: #{speech_classifier_forward.1} parent=11 // pred_check_branch
        %310 = sbr.rel (%p308) target = $region28
      $region27: #{speech_classifier_forward.1} parent=11 // pred_region
        _
      $region28: #{speech_classifier_forward.1} parent=11 // pred_fallthru
        _
      // Predicated region
      $region29: #{speech_classifier_forward.1} parent=11 // pred_check
        %p311 = pneg %p174
      $region30: #{speech_classifier_forward.1} parent=11 // pred_check_branch
        %313 = sbr.rel (%p311) target = $region32
      $region31: #{speech_classifier_forward.1} parent=11 // pred_region
        _
      $region32: #{speech_classifier_forward.1} parent=11 // pred_fallthru
        _
      // Predicated region
      $region33: #{speech_classifier_forward.1} parent=11 // pred_check
        %p314 = pneg %p195
      $region34: #{speech_classifier_forward.1} parent=11 // pred_check_branch
        %316 = sbr.rel (%p314) target = $region36
      $region35: #{speech_classifier_forward.1} parent=11 // pred_region
        _
      $region36: #{speech_classifier_forward.1} parent=11 // pred_fallthru
        _
      // Predicated region
      $region37: #{speech_classifier_forward.1} parent=11 // pred_check
        %p317 = pneg %p216
      $region38: #{speech_classifier_forward.1} parent=11 // pred_check_branch
        %319 = sbr.rel (%p317) target = $region40
      $region39: #{speech_classifier_forward.1} parent=11 // pred_region
        _
      $region40: #{speech_classifier_forward.1} parent=11 // pred_fallthru
        _
      // Predicated region
      $region41: #{speech_classifier_forward.1} parent=11 // pred_check
        %p320 = pneg %p237
      $region42: #{speech_classifier_forward.1} parent=11 // pred_check_branch
        %322 = sbr.rel (%p320) target = $region44
      $region43: #{speech_classifier_forward.1} parent=11 // pred_region
        _
      $region44: #{speech_classifier_forward.1} parent=11 // pred_fallthru
        _
      // Predicated region
      $region45: #{speech_classifier_forward.1} parent=11 // pred_check
        %p323 = pneg %p258
      $region46: #{speech_classifier_forward.1} parent=11 // pred_check_branch
        %325 = sbr.rel (%p323) target = $region48
      $region47: #{speech_classifier_forward.1} parent=11 // pred_region
        _
      $region48: #{speech_classifier_forward.1} parent=11 // pred_fallthru
        _
    $region12: #{speech_classifier_forward.1} parent=5 // pred_fallthru
      _
    %p326 = scmp.lt.s32.totalorder %s17, 2
    // Predicated region
    $region49: #{speech_classifier_forward.1} parent=5 // pred_check
      %p327 = pneg %p326
    $region50: #{speech_classifier_forward.1} parent=5 // pred_check_branch
      %329 = sbr.rel (%p327) target = $region52
    $region51: #{speech_classifier_forward.1} parent=5 // pred_region
      // Predicated region
      $region53: #{speech_classifier_forward.1} parent=51 // pred_check
        %p330 = pneg %p37
      $region54: #{speech_classifier_forward.1} parent=51 // pred_check_branch
        %332 = sbr.rel (%p330) target = $region56
      $region55: #{speech_classifier_forward.1} parent=51 // pred_region
        %p333 = scmp.lt.s32.totalorder %s17, 1
        %s334 = scalar_select %p333, %s17, 1
        %s335 = smul.addr %s334, 8
        %s336 = smul.addr %s335, 8
        %s337 = scalar_lea.vmem %s0, %s336
      $region56: #{speech_classifier_forward.1} parent=51 // pred_fallthru
        _
      // Predicated region
      $region57: #{speech_classifier_forward.1} parent=51 // pred_check
        %p338 = pneg %p63
      $region58: #{speech_classifier_forward.1} parent=51 // pred_check_branch
        %340 = sbr.rel (%p338) target = $region60
      $region59: #{speech_classifier_forward.1} parent=51 // pred_region
        %p341 = scmp.lt.s32.totalorder %s17, 1
        %s342 = scalar_select %p341, %s17, 1
        %s343 = smul.addr %s342, 48
        %s344 = smul.addr %s343, 4
        %s345 = scalar_lea.vmem %s1, %s344
      $region60: #{speech_classifier_forward.1} parent=51 // pred_fallthru
        _
    $region52: #{speech_classifier_forward.1} parent=5 // pred_fallthru
      _
    %p346 = scmp.le.s32.totalorder 1, %s17
    %p347 = scmp.lt.s32.totalorder %s17, 3
    %p348 = pnand %p346, %p347
    %p349 = pneg %p348
    // Predicated region
    $region61: #{speech_classifier_forward.1} parent=5 // pred_check
      _
    $region62: #{speech_classifier_forward.1} parent=5 // pred_check_branch
      %351 = sbr.rel (%p348) target = $region64
    $region63: #{speech_classifier_forward.1} parent=5 // pred_region
      %s352 = ssub.s32 %s17, 1
      %p353 = scmp.lt.s32.totalorder %s22, 1
      %s354 = scalar_select %p353, %s22, 1
      %s355 = smul.addr %s354, 8
      %s356 = smul.addr %s355, 8
      %s357 = scalar_lea.vmem %s0, %s356
      %p358 = pneg %p43
      %p359 = pneg %p40
      %p360 = scmp.lt.s32.totalorder %s22, 1
      %s361 = scalar_select %p360, %s22, 1
      %s362 = smul.addr %s361, 48
      %s363 = smul.addr %s362, 4
      %s364 = scalar_lea.vmem %s1, %s363
      %p365 = pneg %p69
      %p366 = pneg %p66
      %p367 = pneg %p90
      %p368 = pneg %p87
      %p369 = pneg %p111
      %p370 = pneg %p108
      %p371 = pneg %p132
      %p372 = pneg %p129
      %p373 = pneg %p153
      %p374 = pneg %p150
      %p375 = pneg %p174
      %p376 = pneg %p171
      %p377 = pneg %p195
      %p378 = pneg %p192
      %p379 = pneg %p216
      %p380 = pneg %p213
      %p381 = pneg %p237
      %p382 = pneg %p234
      %p383 = pneg %p258
      %p384 = pneg %p255
      %p385 = pneg %p284
      %p386 = pneg %p281
      %p387 = scmp.lt.s32.totalorder %s22, 1
      %s388 = scalar_select %p387, %s22, 1
      %s389 = smul.addr %s388, 8
      %s390 = scalar_lea.vmem %s11, %s389
      %p391 = scmp.lt.s32.totalorder %s22, 1
      %s392 = scalar_select %p391, %s22, 1
      %s393 = smul.addr %s392, 8
      %s394 = smul.addr %s393, 8
      %s395 = scalar_lea.vmem %s0, %s394
      %p396 = scmp.lt.s32.totalorder %s22, 1
      %s397 = scalar_select %p396, %s22, 1
      %s398 = smul.addr %s397, 48
      %s399 = smul.addr %s398, 4
      %s400 = scalar_lea.vmem %s1, %s399
      %p401 = scmp.lt.s32.totalorder %s22, 1
      %s402 = scalar_select %p401, %s22, 1
      %s403 = smul.addr %s402, 8
      %s404 = scalar_lea.vmem %s11, %s403
      %v405 = vld [vmem:[%s395] sm:$0xff]
      %v406 = vld [vmem:[%s395 + $0x8] sm:$0xff]
      %v407 = vld [vmem:[%s395 + $0x10] sm:$0xff]
      %v408 = vld [vmem:[%s395 + $0x18] sm:$0xff]
      %v409 = vld [vmem:[%s395 + $0x20] sm:$0xff]
      %v410 = vld [vmem:[%s395 + $0x28] sm:$0xff]
      %v411 = vld [vmem:[%s395 + $0x30] sm:$0xff]
      %v412 = vld [vmem:[%s395 + $0x38] sm:$0xff]
      %v413 = vld [vmem:[%s2] sm:$0xff]
      %v414 = vld [vmem:[%s2 + $0x8] sm:$0xff]
      %v415 = vld [vmem:[%s2 + $0x10] sm:$0xff]
      %v416 = vld [vmem:[%s2 + $0x18] sm:$0xff]
      %v417 = vld [vmem:[%s2 + $0x20] sm:$0xff]
      %v418 = vld [vmem:[%s2 + $0x28] sm:$0xff]
      %v419 = vld [vmem:[%s2 + $0x30] sm:$0xff]
      %v420 = vld [vmem:[%s2 + $0x38] sm:$0xff]
      %v421 = vld [vmem:[%s2 + $0x40] sm:$0xff]
      %v422 = vld [vmem:[%s2 + $0x48] sm:$0xff]
      %v423 = vld [vmem:[%s3] sm:$0x3]
      %v425 = vperm.slane %v423, 0
      %v426 = vperm.slane %v423, 1
      %vm429 = vcmask 326656
      %v431 = vsel %vm429, %v405, 0
      %v434 = vsel %vm429, %v406, 0
      %v437 = vsel %vm429, %v407, 0
      %v440 = vsel %vm429, %v408, 0
      %v443 = vsel %vm429, %v409, 0
      %v446 = vsel %vm429, %v410, 0
      %v449 = vsel %vm429, %v411, 0
      %v452 = vsel %vm429, %v412, 0
      %454 = vmatpush.msra.mxu0 0.0
      %455 = vmatpush.msra.mxu0 0.0
      %456 = vmatpush.msra.mxu0 0.0
      %457 = vmatpush.msra.mxu0 0.0
      %458 = vmatpush.msra.mxu0 0.0
      %459 = vmatpush.msra.mxu0 0.0
      %460 = vmatpush.msra.mxu0 0.0
      %461 = vmatpush.msra.mxu0 0.0
      %462 = vmatpush.msra.mxu0 0.0
      %463 = vmatpush.msra.mxu0 0.0
      %464 = vmatpush.msra.mxu0 0.0
      %465 = vmatpush.msra.mxu0 %v421
      %466 = vmatpush.msra.mxu0 %v419
      %467 = vmatpush.msra.mxu0 %v417
      %468 = vmatpush.msra.mxu0 %v415
      %469 = vmatpush.msra.mxu0 %v413
      %470 = vmatmul.f32.gmra.mxu0 %v431
      %v471 = vpop.f32.mrf.mxu0
      %v472 = vadd.f32 %v425, %v471
      %473 = vmatmul.f32.gmra.mxu0 %v434
      %v474 = vpop.f32.mrf.mxu0
      %v475 = vadd.f32 %v425, %v474
      %476 = vmatmul.f32.gmra.mxu0 %v437
      %v477 = vpop.f32.mrf.mxu0
      %v478 = vadd.f32 %v425, %v477
      %479 = vmatmul.f32.gmra.mxu0 %v440
      %v480 = vpop.f32.mrf.mxu0
      %v481 = vadd.f32 %v425, %v480
      %482 = vmatmul.f32.gmra.mxu0 %v443
      %v483 = vpop.f32.mrf.mxu0
      %v484 = vadd.f32 %v425, %v483
      %485 = vmatmul.f32.gmra.mxu0 %v446
      %v486 = vpop.f32.mrf.mxu0
      %v487 = vadd.f32 %v425, %v486
      %488 = vmatmul.f32.gmra.mxu0 %v449
      %v489 = vpop.f32.mrf.mxu0
      %v490 = vadd.f32 %v425, %v489
      %491 = vmatmul.f32.gmra.mxu0 %v452
      %v492 = vpop.f32.mrf.mxu0
      %v493 = vadd.f32 %v425, %v492
      %494 = vdwg.mxu0
      %495 = vmatpush.msra.mxu0 0.0
      %496 = vmatpush.msra.mxu0 0.0
      %497 = vmatpush.msra.mxu0 0.0
      %498 = vmatpush.msra.mxu0 0.0
      %499 = vmatpush.msra.mxu0 0.0
      %500 = vmatpush.msra.mxu0 0.0
      %501 = vmatpush.msra.mxu0 0.0
      %502 = vmatpush.msra.mxu0 0.0
      %503 = vmatpush.msra.mxu0 0.0
      %504 = vmatpush.msra.mxu0 0.0
      %505 = vmatpush.msra.mxu0 0.0
      %506 = vmatpush.msra.mxu0 %v422
      %507 = vmatpush.msra.mxu0 %v420
      %508 = vmatpush.msra.mxu0 %v418
      %509 = vmatpush.msra.mxu0 %v416
      %510 = vmatpush.msra.mxu0 %v414
      %511 = vmatmul.f32.gmra.mxu0 %v431
      %v512 = vpop.f32.mrf.mxu0
      %v513 = vadd.f32 %v426, %v512
      %514 = vmatmul.f32.gmra.mxu0 %v434
      %v515 = vpop.f32.mrf.mxu0
      %v516 = vadd.f32 %v426, %v515
      %517 = vmatmul.f32.gmra.mxu0 %v437
      %v518 = vpop.f32.mrf.mxu0
      %v519 = vadd.f32 %v426, %v518
      %520 = vmatmul.f32.gmra.mxu0 %v440
      %v521 = vpop.f32.mrf.mxu0
      %v522 = vadd.f32 %v426, %v521
      %523 = vmatmul.f32.gmra.mxu0 %v443
      %v524 = vpop.f32.mrf.mxu0
      %v525 = vadd.f32 %v426, %v524
      %526 = vmatmul.f32.gmra.mxu0 %v446
      %v527 = vpop.f32.mrf.mxu0
      %v528 = vadd.f32 %v426, %v527
      %529 = vmatmul.f32.gmra.mxu0 %v449
      %v530 = vpop.f32.mrf.mxu0
      %v531 = vadd.f32 %v426, %v530
      %532 = vmatmul.f32.gmra.mxu0 %v452
      %v533 = vpop.f32.mrf.mxu0
      %v534 = vadd.f32 %v426, %v533
      %535 = vdwg.mxu0
      %536 = vst [vmem:[#allocation2] sm:$0xff] %v472
      %537 = vst [vmem:[#allocation2 + $0x8] sm:$0xff] %v513
      %538 = vst [vmem:[#allocation2 + $0x10] sm:$0xff] %v475
      %539 = vst [vmem:[#allocation2 + $0x18] sm:$0xff] %v516
      %540 = vst [vmem:[#allocation2 + $0x20] sm:$0xff] %v478
      %541 = vst [vmem:[#allocation2 + $0x28] sm:$0xff] %v519
      %542 = vst [vmem:[#allocation2 + $0x30] sm:$0xff] %v481
      %543 = vst [vmem:[#allocation2 + $0x38] sm:$0xff] %v522
      %544 = vst [vmem:[#allocation2 + $0x40] sm:$0xff] %v484
      %545 = vst [vmem:[#allocation2 + $0x48] sm:$0xff] %v525
      %546 = vst [vmem:[#allocation2 + $0x50] sm:$0xff] %v487
      %547 = vst [vmem:[#allocation2 + $0x58] sm:$0xff] %v528
      %548 = vst [vmem:[#allocation2 + $0x60] sm:$0xff] %v490
      %549 = vst [vmem:[#allocation2 + $0x68] sm:$0xff] %v531
      %550 = vst [vmem:[#allocation2 + $0x70] sm:$0xff] %v493
      %551 = vst [vmem:[#allocation2 + $0x78] sm:$0xff] %v534
      %v552 = vld [vmem:[%s400] sm:$0xff]
      %v553 = vld [vmem:[%s400 + $0x8] sm:$0xff]
      %v554 = vld [vmem:[%s400 + $0x10] sm:$0xff]
      %v555 = vld [vmem:[%s400 + $0x18] sm:$0xff]
      %v556 = vld [vmem:[%s400 + $0x20] sm:$0xff]
      %v557 = vld [vmem:[%s400 + $0x28] sm:$0xff]
      %v558 = vld [vmem:[%s400 + $0x30] sm:$0xff]
      %v559 = vld [vmem:[%s400 + $0x38] sm:$0xff]
      %v560 = vld [vmem:[%s400 + $0x40] sm:$0xff]
      %v561 = vld [vmem:[%s400 + $0x48] sm:$0xff]
      %v562 = vld [vmem:[%s400 + $0x50] sm:$0xff]
      %v563 = vld [vmem:[%s400 + $0x58] sm:$0xff]
      %v564 = vld [vmem:[%s400 + $0x60] sm:$0xff]
      %v565 = vld [vmem:[%s400 + $0x68] sm:$0xff]
      %v566 = vld [vmem:[%s400 + $0x70] sm:$0xff]
      %v567 = vld [vmem:[%s400 + $0x78] sm:$0xff]
      %v568 = vld [vmem:[%s400 + $0x80] sm:$0xff]
      %v569 = vld [vmem:[%s400 + $0x88] sm:$0xff]
      %v570 = vld [vmem:[%s400 + $0x90] sm:$0xff]
      %v571 = vld [vmem:[%s400 + $0x98] sm:$0xff]
      %v572 = vld [vmem:[%s400 + $0xa0] sm:$0xff]
      %v573 = vld [vmem:[%s400 + $0xa8] sm:$0xff]
      %v574 = vld [vmem:[%s400 + $0xb0] sm:$0xff]
      %v575 = vld [vmem:[%s400 + $0xb8] sm:$0xff]
      %v576 = vld [vmem:[%s4] sm:$0xff]
      %v577 = vld [vmem:[%s4 + $0x8] sm:$0xff]
      %v578 = vld [vmem:[%s4 + $0x10] sm:$0xff]
      %v579 = vld [vmem:[%s4 + $0x18] sm:$0xff]
      %v580 = vld [vmem:[%s4 + $0x20] sm:$0xff]
      %v581 = vld [vmem:[%s4 + $0x28] sm:$0xff]
      %v582 = vld [vmem:[%s4 + $0x30] sm:$0xff]
      %v583 = vld [vmem:[%s4 + $0x38] sm:$0xff]
      %v584 = vld [vmem:[%s4 + $0x40] sm:$0xff]
      %v585 = vld [vmem:[%s4 + $0x48] sm:$0xff]
      %v586 = vld [vmem:[%s4 + $0x50] sm:$0xff]
      %v587 = vld [vmem:[%s4 + $0x58] sm:$0xff]
      %v588 = vld [vmem:[%s4 + $0x60] sm:$0xff]
      %v589 = vld [vmem:[%s4 + $0x68] sm:$0xff]
      %v590 = vld [vmem:[%s4 + $0x70] sm:$0xff]
      %v591 = vld [vmem:[%s4 + $0x78] sm:$0xff]
      %v592 = vld [vmem:[%s4 + $0x80] sm:$0xff]
      %v593 = vld [vmem:[%s4 + $0x88] sm:$0xff]
      %v594 = vld [vmem:[%s4 + $0x90] sm:$0xff]
      %v595 = vld [vmem:[%s4 + $0x98] sm:$0xff]
      %v596 = vld [vmem:[%s4 + $0xa0] sm:$0xff]
      %v597 = vld [vmem:[%s4 + $0xa8] sm:$0xff]
      %v598 = vld [vmem:[%s4 + $0xb0] sm:$0xff]
      %v599 = vld [vmem:[%s4 + $0xb8] sm:$0xff]
      %v600 = vld [vmem:[%s4 + $0xc0] sm:$0xff]
      %v601 = vld [vmem:[%s4 + $0xc8] sm:$0xff]
      %v602 = vld [vmem:[%s4 + $0xd0] sm:$0xff]
      %v603 = vld [vmem:[%s4 + $0xd8] sm:$0xff]
      %v604 = vld [vmem:[%s4 + $0xe0] sm:$0xff]
      %v605 = vld [vmem:[%s4 + $0xe8] sm:$0xff]
      %v606 = vld [vmem:[%s4 + $0xf0] sm:$0xff]
      %v607 = vld [vmem:[%s4 + $0xf8] sm:$0xff]
      %v608 = vld [vmem:[%s4 + $0x100] sm:$0xff]
      %v609 = vld [vmem:[%s4 + $0x108] sm:$0xff]
      %v610 = vld [vmem:[%s4 + $0x110] sm:$0xff]
      %v611 = vld [vmem:[%s4 + $0x118] sm:$0xff]
      %v612 = vld [vmem:[%s4 + $0x120] sm:$0xff]
      %v613 = vld [vmem:[%s4 + $0x128] sm:$0xff]
      %v614 = vld [vmem:[%s4 + $0x130] sm:$0xff]
      %v615 = vld [vmem:[%s4 + $0x138] sm:$0xff]
      %v616 = vld [vmem:[%s4 + $0x140] sm:$0xff]
      %v617 = vld [vmem:[%s4 + $0x148] sm:$0xff]
      %v618 = vld [vmem:[%s4 + $0x150] sm:$0xff]
      %v619 = vld [vmem:[%s4 + $0x158] sm:$0xff]
      %v620 = vld [vmem:[%s4 + $0x160] sm:$0xff]
      %v621 = vld [vmem:[%s4 + $0x168] sm:$0xff]
      %v622 = vld [vmem:[%s4 + $0x170] sm:$0xff]
      %v623 = vld [vmem:[%s4 + $0x178] sm:$0xff]
      %v624 = vld [vmem:[%s4 + $0x180] sm:$0xff]
      %v625 = vld [vmem:[%s4 + $0x188] sm:$0xff]
      %v626 = vld [vmem:[%s4 + $0x190] sm:$0xff]
      %v627 = vld [vmem:[%s4 + $0x198] sm:$0xff]
      %v628 = vld [vmem:[%s4 + $0x1a0] sm:$0xff]
      %v629 = vld [vmem:[%s4 + $0x1a8] sm:$0xff]
      %v630 = vld [vmem:[%s4 + $0x1b0] sm:$0xff]
      %v631 = vld [vmem:[%s4 + $0x1b8] sm:$0xff]
      %v632 = vld [vmem:[%s4 + $0x1c0] sm:$0xff]
      %v633 = vld [vmem:[%s4 + $0x1c8] sm:$0xff]
      %v634 = vld [vmem:[%s4 + $0x1d0] sm:$0xff]
      %v635 = vld [vmem:[%s4 + $0x1d8] sm:$0xff]
      %v636 = vld [vmem:[%s4 + $0x1e0] sm:$0xff]
      %v637 = vld [vmem:[%s4 + $0x1e8] sm:$0xff]
      %v638 = vld [vmem:[%s4 + $0x1f0] sm:$0xff]
      %v639 = vld [vmem:[%s4 + $0x1f8] sm:$0xff]
      %v640 = vld [vmem:[%s4 + $0x200] sm:$0xff]
      %v641 = vld [vmem:[%s4 + $0x208] sm:$0xff]
      %v642 = vld [vmem:[%s4 + $0x210] sm:$0xff]
      %v643 = vld [vmem:[%s4 + $0x218] sm:$0xff]
      %v644 = vld [vmem:[%s4 + $0x220] sm:$0xff]
      %v645 = vld [vmem:[%s4 + $0x228] sm:$0xff]
      %v646 = vld [vmem:[%s4 + $0x230] sm:$0xff]
      %v647 = vld [vmem:[%s4 + $0x238] sm:$0xff]
      %v648 = vld [vmem:[%s4 + $0x240] sm:$0xff]
      %v649 = vld [vmem:[%s4 + $0x248] sm:$0xff]
      %v650 = vld [vmem:[%s4 + $0x250] sm:$0xff]
      %v651 = vld [vmem:[%s4 + $0x258] sm:$0xff]
      %v652 = vld [vmem:[%s4 + $0x260] sm:$0xff]
      %v653 = vld [vmem:[%s4 + $0x268] sm:$0xff]
      %v654 = vld [vmem:[%s4 + $0x270] sm:$0xff]
      %v655 = vld [vmem:[%s4 + $0x278] sm:$0xff]
      %v656 = vld [vmem:[%s4 + $0x280] sm:$0xff]
      %v657 = vld [vmem:[%s4 + $0x288] sm:$0xff]
      %v658 = vld [vmem:[%s4 + $0x290] sm:$0xff]
      %v659 = vld [vmem:[%s4 + $0x298] sm:$0xff]
      %v660 = vld [vmem:[%s4 + $0x2a0] sm:$0xff]
      %v661 = vld [vmem:[%s4 + $0x2a8] sm:$0xff]
      %v662 = vld [vmem:[%s4 + $0x2b0] sm:$0xff]
      %v663 = vld [vmem:[%s4 + $0x2b8] sm:$0xff]
      %v664 = vld [vmem:[%s4 + $0x2c0] sm:$0xff]
      %v665 = vld [vmem:[%s4 + $0x2c8] sm:$0xff]
      %v666 = vld [vmem:[%s4 + $0x2d0] sm:$0xff]
      %v667 = vld [vmem:[%s4 + $0x2d8] sm:$0xff]
      %v668 = vld [vmem:[%s4 + $0x2e0] sm:$0xff]
      %v669 = vld [vmem:[%s4 + $0x2e8] sm:$0xff]
      %v670 = vld [vmem:[%s4 + $0x2f0] sm:$0xff]
      %v671 = vld [vmem:[%s4 + $0x2f8] sm:$0xff]
      %v672 = vld [vmem:[%s5] sm:$0x3]
      %v674 = vperm.slane %v672, 0
      %v675 = vperm.slane %v672, 1
      %v702 = vunpack.c.l.b16 %v552
      %v703 = vunpack.c.h.b16 %v552
      %v704 = vunpack.c.l.b16 %v553
      %v705 = vunpack.c.h.b16 %v553
      %v706 = vunpack.c.l.b16 %v554
      %v707 = vunpack.c.h.b16 %v554
      %v708 = vunpack.c.l.b16 %v555
      %v709 = vunpack.c.h.b16 %v555
      %v710 = vunpack.c.l.b16 %v556
      %v711 = vunpack.c.h.b16 %v556
      %v712 = vunpack.c.l.b16 %v557
      %v713 = vunpack.c.h.b16 %v557
      %v714 = vunpack.c.l.b16 %v558
      %v715 = vunpack.c.h.b16 %v558
      %v716 = vunpack.c.l.b16 %v559
      %v717 = vunpack.c.h.b16 %v559
      %v718 = vunpack.c.l.b16 %v560
      %v719 = vunpack.c.h.b16 %v560
      %v720 = vunpack.c.l.b16 %v561
      %v721 = vunpack.c.h.b16 %v561
      %v722 = vunpack.c.l.b16 %v562
      %v723 = vunpack.c.h.b16 %v562
      %v724 = vunpack.c.l.b16 %v563
      %v725 = vunpack.c.h.b16 %v563
      %v726 = vunpack.c.l.b16 %v564
      %v727 = vunpack.c.h.b16 %v564
      %v728 = vunpack.c.l.b16 %v565
      %v729 = vunpack.c.h.b16 %v565
      %v730 = vunpack.c.l.b16 %v566
      %v731 = vunpack.c.h.b16 %v566
      %v732 = vunpack.c.l.b16 %v567
      %v733 = vunpack.c.h.b16 %v567
      %v734 = vunpack.c.l.b16 %v568
      %v735 = vunpack.c.h.b16 %v568
      %v736 = vunpack.c.l.b16 %v569
      %v737 = vunpack.c.h.b16 %v569
      %v738 = vunpack.c.l.b16 %v570
      %v739 = vunpack.c.h.b16 %v570
      %v740 = vunpack.c.l.b16 %v571
      %v741 = vunpack.c.h.b16 %v571
      %v742 = vunpack.c.l.b16 %v572
      %v743 = vunpack.c.h.b16 %v572
      %v744 = vunpack.c.l.b16 %v573
      %v745 = vunpack.c.h.b16 %v573
      %v746 = vunpack.c.l.b16 %v574
      %v747 = vunpack.c.h.b16 %v574
      %v748 = vunpack.c.l.b16 %v575
      %v749 = vunpack.c.h.b16 %v575
      %v750 = vpack.c.b16 %v708, %v702
      %v751 = vpack.c.b16 %v709, %v703
      %v752 = vpack.c.b16 %v710, %v704
      %v753 = vpack.c.b16 %v711, %v705
      %v754 = vpack.c.b16 %v712, %v706
      %v755 = vpack.c.b16 %v713, %v707
      %v756 = vpack.c.b16 %v720, %v714
      %v757 = vpack.c.b16 %v721, %v715
      %v758 = vpack.c.b16 %v722, %v716
      %v759 = vpack.c.b16 %v723, %v717
      %v760 = vpack.c.b16 %v724, %v718
      %v761 = vpack.c.b16 %v725, %v719
      %v762 = vpack.c.b16 %v732, %v726
      %v763 = vpack.c.b16 %v733, %v727
      %v764 = vpack.c.b16 %v734, %v728
      %v765 = vpack.c.b16 %v735, %v729
      %v766 = vpack.c.b16 %v736, %v730
      %v767 = vpack.c.b16 %v737, %v731
      %v768 = vpack.c.b16 %v744, %v738
      %v769 = vpack.c.b16 %v745, %v739
      %v770 = vpack.c.b16 %v746, %v740
      %v771 = vpack.c.b16 %v747, %v741
      %v772 = vpack.c.b16 %v748, %v742
      %v773 = vpack.c.b16 %v749, %v743
      %v894 = vunpack.c.l.b16 %v576
      %v895 = vunpack.c.h.b16 %v576
      %v896 = vunpack.c.l.b16 %v577
      %v897 = vunpack.c.h.b16 %v577
      %v898 = vunpack.c.l.b16 %v578
      %v899 = vunpack.c.h.b16 %v578
      %v900 = vunpack.c.l.b16 %v579
      %v901 = vunpack.c.h.b16 %v579
      %v902 = vunpack.c.l.b16 %v580
      %v903 = vunpack.c.h.b16 %v580
      %v904 = vunpack.c.l.b16 %v581
      %v905 = vunpack.c.h.b16 %v581
      %v906 = vunpack.c.l.b16 %v582
      %v907 = vunpack.c.h.b16 %v582
      %v908 = vunpack.c.l.b16 %v583
      %v909 = vunpack.c.h.b16 %v583
      %v910 = vunpack.c.l.b16 %v584
      %v911 = vunpack.c.h.b16 %v584
      %v912 = vunpack.c.l.b16 %v585
      %v913 = vunpack.c.h.b16 %v585
      %v914 = vunpack.c.l.b16 %v586
      %v915 = vunpack.c.h.b16 %v586
      %v916 = vunpack.c.l.b16 %v587
      %v917 = vunpack.c.h.b16 %v587
      %v918 = vunpack.c.l.b16 %v588
      %v919 = vunpack.c.h.b16 %v588
      %v920 = vunpack.c.l.b16 %v589
      %v921 = vunpack.c.h.b16 %v589
      %v922 = vunpack.c.l.b16 %v590
      %v923 = vunpack.c.h.b16 %v590
      %v924 = vunpack.c.l.b16 %v591
      %v925 = vunpack.c.h.b16 %v591
      %v926 = vunpack.c.l.b16 %v592
      %v927 = vunpack.c.h.b16 %v592
      %v928 = vunpack.c.l.b16 %v593
      %v929 = vunpack.c.h.b16 %v593
      %v930 = vunpack.c.l.b16 %v594
      %v931 = vunpack.c.h.b16 %v594
      %v932 = vunpack.c.l.b16 %v595
      %v933 = vunpack.c.h.b16 %v595
      %v934 = vunpack.c.l.b16 %v596
      %v935 = vunpack.c.h.b16 %v596
      %v936 = vunpack.c.l.b16 %v597
      %v937 = vunpack.c.h.b16 %v597
      %v938 = vunpack.c.l.b16 %v598
      %v939 = vunpack.c.h.b16 %v598
      %v940 = vunpack.c.l.b16 %v599
      %v941 = vunpack.c.h.b16 %v599
      %v942 = vunpack.c.l.b16 %v600
      %v943 = vunpack.c.h.b16 %v600
      %v944 = vunpack.c.l.b16 %v601
      %v945 = vunpack.c.h.b16 %v601
      %v946 = vunpack.c.l.b16 %v602
      %v947 = vunpack.c.h.b16 %v602
      %v948 = vunpack.c.l.b16 %v603
      %v949 = vunpack.c.h.b16 %v603
      %v950 = vunpack.c.l.b16 %v604
      %v951 = vunpack.c.h.b16 %v604
      %v952 = vunpack.c.l.b16 %v605
      %v953 = vunpack.c.h.b16 %v605
      %v954 = vunpack.c.l.b16 %v606
      %v955 = vunpack.c.h.b16 %v606
      %v956 = vunpack.c.l.b16 %v607
      %v957 = vunpack.c.h.b16 %v607
      %v958 = vunpack.c.l.b16 %v608
      %v959 = vunpack.c.h.b16 %v608
      %v960 = vunpack.c.l.b16 %v609
      %v961 = vunpack.c.h.b16 %v609
      %v962 = vunpack.c.l.b16 %v610
      %v963 = vunpack.c.h.b16 %v610
      %v964 = vunpack.c.l.b16 %v611
      %v965 = vunpack.c.h.b16 %v611
      %v966 = vunpack.c.l.b16 %v612
      %v967 = vunpack.c.h.b16 %v612
      %v968 = vunpack.c.l.b16 %v613
      %v969 = vunpack.c.h.b16 %v613
      %v970 = vunpack.c.l.b16 %v614
      %v971 = vunpack.c.h.b16 %v614
      %v972 = vunpack.c.l.b16 %v615
      %v973 = vunpack.c.h.b16 %v615
      %v974 = vunpack.c.l.b16 %v616
      %v975 = vunpack.c.h.b16 %v616
      %v976 = vunpack.c.l.b16 %v617
      %v977 = vunpack.c.h.b16 %v617
      %v978 = vunpack.c.l.b16 %v618
      %v979 = vunpack.c.h.b16 %v618
      %v980 = vunpack.c.l.b16 %v619
      %v981 = vunpack.c.h.b16 %v619
      %v982 = vunpack.c.l.b16 %v620
      %v983 = vunpack.c.h.b16 %v620
      %v984 = vunpack.c.l.b16 %v621
      %v985 = vunpack.c.h.b16 %v621
      %v986 = vunpack.c.l.b16 %v622
      %v987 = vunpack.c.h.b16 %v622
      %v988 = vunpack.c.l.b16 %v623
      %v989 = vunpack.c.h.b16 %v623
      %v990 = vunpack.c.l.b16 %v624
      %v991 = vunpack.c.h.b16 %v624
      %v992 = vunpack.c.l.b16 %v625
      %v993 = vunpack.c.h.b16 %v625
      %v994 = vunpack.c.l.b16 %v626
      %v995 = vunpack.c.h.b16 %v626
      %v996 = vunpack.c.l.b16 %v627
      %v997 = vunpack.c.h.b16 %v627
      %v998 = vunpack.c.l.b16 %v628
      %v999 = vunpack.c.h.b16 %v628
      %v1000 = vunpack.c.l.b16 %v629
      %v1001 = vunpack.c.h.b16 %v629
      %v1002 = vunpack.c.l.b16 %v630
      %v1003 = vunpack.c.h.b16 %v630
      %v1004 = vunpack.c.l.b16 %v631
      %v1005 = vunpack.c.h.b16 %v631
      %v1006 = vunpack.c.l.b16 %v632
      %v1007 = vunpack.c.h.b16 %v632
      %v1008 = vunpack.c.l.b16 %v633
      %v1009 = vunpack.c.h.b16 %v633
      %v1010 = vunpack.c.l.b16 %v634
      %v1011 = vunpack.c.h.b16 %v634
      %v1012 = vunpack.c.l.b16 %v635
      %v1013 = vunpack.c.h.b16 %v635
      %v1014 = vunpack.c.l.b16 %v636
      %v1015 = vunpack.c.h.b16 %v636
      %v1016 = vunpack.c.l.b16 %v637
      %v1017 = vunpack.c.h.b16 %v637
      %v1018 = vunpack.c.l.b16 %v638
      %v1019 = vunpack.c.h.b16 %v638
      %v1020 = vunpack.c.l.b16 %v639
      %v1021 = vunpack.c.h.b16 %v639
      %v1022 = vunpack.c.l.b16 %v640
      %v1023 = vunpack.c.h.b16 %v640
      %v1024 = vunpack.c.l.b16 %v641
      %v1025 = vunpack.c.h.b16 %v641
      %v1026 = vunpack.c.l.b16 %v642
      %v1027 = vunpack.c.h.b16 %v642
      %v1028 = vunpack.c.l.b16 %v643
      %v1029 = vunpack.c.h.b16 %v643
      %v1030 = vunpack.c.l.b16 %v644
      %v1031 = vunpack.c.h.b16 %v644
      %v1032 = vunpack.c.l.b16 %v645
      %v1033 = vunpack.c.h.b16 %v645
      %v1034 = vunpack.c.l.b16 %v646
      %v1035 = vunpack.c.h.b16 %v646
      %v1036 = vunpack.c.l.b16 %v647
      %v1037 = vunpack.c.h.b16 %v647
      %v1038 = vunpack.c.l.b16 %v648
      %v1039 = vunpack.c.h.b16 %v648
      %v1040 = vunpack.c.l.b16 %v649
      %v1041 = vunpack.c.h.b16 %v649
      %v1042 = vunpack.c.l.b16 %v650
      %v1043 = vunpack.c.h.b16 %v650
      %v1044 = vunpack.c.l.b16 %v651
      %v1045 = vunpack.c.h.b16 %v651
      %v1046 = vunpack.c.l.b16 %v652
      %v1047 = vunpack.c.h.b16 %v652
      %v1048 = vunpack.c.l.b16 %v653
      %v1049 = vunpack.c.h.b16 %v653
      %v1050 = vunpack.c.l.b16 %v654
      %v1051 = vunpack.c.h.b16 %v654
      %v1052 = vunpack.c.l.b16 %v655
      %v1053 = vunpack.c.h.b16 %v655
      %v1054 = vunpack.c.l.b16 %v656
      %v1055 = vunpack.c.h.b16 %v656
      %v1056 = vunpack.c.l.b16 %v657
      %v1057 = vunpack.c.h.b16 %v657
      %v1058 = vunpack.c.l.b16 %v658
      %v1059 = vunpack.c.h.b16 %v658
      %v1060 = vunpack.c.l.b16 %v659
      %v1061 = vunpack.c.h.b16 %v659
      %v1062 = vunpack.c.l.b16 %v660
      %v1063 = vunpack.c.h.b16 %v660
      %v1064 = vunpack.c.l.b16 %v661
      %v1065 = vunpack.c.h.b16 %v661
      %v1066 = vunpack.c.l.b16 %v662
      %v1067 = vunpack.c.h.b16 %v662
      %v1068 = vunpack.c.l.b16 %v663
      %v1069 = vunpack.c.h.b16 %v663
      %v1070 = vunpack.c.l.b16 %v664
      %v1071 = vunpack.c.h.b16 %v664
      %v1072 = vunpack.c.l.b16 %v665
      %v1073 = vunpack.c.h.b16 %v665
      %v1074 = vunpack.c.l.b16 %v666
      %v1075 = vunpack.c.h.b16 %v666
      %v1076 = vunpack.c.l.b16 %v667
      %v1077 = vunpack.c.h.b16 %v667
      %v1078 = vunpack.c.l.b16 %v668
      %v1079 = vunpack.c.h.b16 %v668
      %v1080 = vunpack.c.l.b16 %v669
      %v1081 = vunpack.c.h.b16 %v669
      %v1082 = vunpack.c.l.b16 %v670
      %v1083 = vunpack.c.h.b16 %v670
      %v1084 = vunpack.c.l.b16 %v671
      %v1085 = vunpack.c.h.b16 %v671
      %v1086 = vpack.c.b16 %v896, %v894
      %v1087 = vpack.c.b16 %v897, %v895
      %v1088 = vpack.c.b16 %v900, %v898
      %v1089 = vpack.c.b16 %v901, %v899
      %v1090 = vpack.c.b16 %v904, %v902
      %v1091 = vpack.c.b16 %v905, %v903
      %v1092 = vpack.c.b16 %v908, %v906
      %v1093 = vpack.c.b16 %v909, %v907
      %v1094 = vpack.c.b16 %v912, %v910
      %v1095 = vpack.c.b16 %v913, %v911
      %v1096 = vpack.c.b16 %v916, %v914
      %v1097 = vpack.c.b16 %v917, %v915
      %v1098 = vpack.c.b16 %v920, %v918
      %v1099 = vpack.c.b16 %v921, %v919
      %v1100 = vpack.c.b16 %v924, %v922
      %v1101 = vpack.c.b16 %v925, %v923
      %v1102 = vpack.c.b16 %v928, %v926
      %v1103 = vpack.c.b16 %v929, %v927
      %v1104 = vpack.c.b16 %v932, %v930
      %v1105 = vpack.c.b16 %v933, %v931
      %v1106 = vpack.c.b16 %v936, %v934
      %v1107 = vpack.c.b16 %v937, %v935
      %v1108 = vpack.c.b16 %v940, %v938
      %v1109 = vpack.c.b16 %v941, %v939
      %v1110 = vpack.c.b16 %v944, %v942
      %v1111 = vpack.c.b16 %v945, %v943
      %v1112 = vpack.c.b16 %v948, %v946
      %v1113 = vpack.c.b16 %v949, %v947
      %v1114 = vpack.c.b16 %v952, %v950
      %v1115 = vpack.c.b16 %v953, %v951
      %v1116 = vpack.c.b16 %v956, %v954
      %v1117 = vpack.c.b16 %v957, %v955
      %v1118 = vpack.c.b16 %v960, %v958
      %v1119 = vpack.c.b16 %v961, %v959
      %v1120 = vpack.c.b16 %v964, %v962
      %v1121 = vpack.c.b16 %v965, %v963
      %v1122 = vpack.c.b16 %v968, %v966
      %v1123 = vpack.c.b16 %v969, %v967
      %v1124 = vpack.c.b16 %v972, %v970
      %v1125 = vpack.c.b16 %v973, %v971
      %v1126 = vpack.c.b16 %v976, %v974
      %v1127 = vpack.c.b16 %v977, %v975
      %v1128 = vpack.c.b16 %v980, %v978
      %v1129 = vpack.c.b16 %v981, %v979
      %v1130 = vpack.c.b16 %v984, %v982
      %v1131 = vpack.c.b16 %v985, %v983
      %v1132 = vpack.c.b16 %v988, %v986
      %v1133 = vpack.c.b16 %v989, %v987
      %v1134 = vpack.c.b16 %v992, %v990
      %v1135 = vpack.c.b16 %v993, %v991
      %v1136 = vpack.c.b16 %v996, %v994
      %v1137 = vpack.c.b16 %v997, %v995
      %v1138 = vpack.c.b16 %v1000, %v998
      %v1139 = vpack.c.b16 %v1001, %v999
      %v1140 = vpack.c.b16 %v1004, %v1002
      %v1141 = vpack.c.b16 %v1005, %v1003
      %v1142 = vpack.c.b16 %v1008, %v1006
      %v1143 = vpack.c.b16 %v1009, %v1007
      %v1144 = vpack.c.b16 %v1012, %v1010
      %v1145 = vpack.c.b16 %v1013, %v1011
      %v1146 = vpack.c.b16 %v1016, %v1014
      %v1147 = vpack.c.b16 %v1017, %v1015
      %v1148 = vpack.c.b16 %v1020, %v1018
      %v1149 = vpack.c.b16 %v1021, %v1019
      %v1150 = vpack.c.b16 %v1024, %v1022
      %v1151 = vpack.c.b16 %v1025, %v1023
      %v1152 = vpack.c.b16 %v1028, %v1026
      %v1153 = vpack.c.b16 %v1029, %v1027
      %v1154 = vpack.c.b16 %v1032, %v1030
      %v1155 = vpack.c.b16 %v1033, %v1031
      %v1156 = vpack.c.b16 %v1036, %v1034
      %v1157 = vpack.c.b16 %v1037, %v1035
      %v1158 = vpack.c.b16 %v1040, %v1038
      %v1159 = vpack.c.b16 %v1041, %v1039
      %v1160 = vpack.c.b16 %v1044, %v1042
      %v1161 = vpack.c.b16 %v1045, %v1043
      %v1162 = vpack.c.b16 %v1048, %v1046
      %v1163 = vpack.c.b16 %v1049, %v1047
      %v1164 = vpack.c.b16 %v1052, %v1050
      %v1165 = vpack.c.b16 %v1053, %v1051
      %v1166 = vpack.c.b16 %v1056, %v1054
      %v1167 = vpack.c.b16 %v1057, %v1055
      %v1168 = vpack.c.b16 %v1060, %v1058
      %v1169 = vpack.c.b16 %v1061, %v1059
      %v1170 = vpack.c.b16 %v1064, %v1062
      %v1171 = vpack.c.b16 %v1065, %v1063
      %v1172 = vpack.c.b16 %v1068, %v1066
      %v1173 = vpack.c.b16 %v1069, %v1067
      %v1174 = vpack.c.b16 %v1072, %v1070
      %v1175 = vpack.c.b16 %v1073, %v1071
      %v1176 = vpack.c.b16 %v1076, %v1074
      %v1177 = vpack.c.b16 %v1077, %v1075
      %v1178 = vpack.c.b16 %v1080, %v1078
      %v1179 = vpack.c.b16 %v1081, %v1079
      %v1180 = vpack.c.b16 %v1084, %v1082
      %v1181 = vpack.c.b16 %v1085, %v1083
      %1278 = vmatpush.bf16.msra.mxu0 %v1100
      %1279 = vmatpush.bf16.msra.mxu0 %v1098
      %1280 = vmatpush.bf16.msra.mxu0 %v1096
      %1281 = vmatpush.bf16.msra.mxu0 %v1094
      %1282 = vmatpush.bf16.msra.mxu0 %v1092
      %1283 = vmatpush.bf16.msra.mxu0 %v1090
      %1284 = vmatpush.bf16.msra.mxu0 %v1088
      %1285 = vmatpush.bf16.msra.mxu0 %v1086
      %1286 = vmatmul.bf16.gmra.mxu0 %v750
      %v1287 = vpop.f32.mrf.mxu0
      %v1288 = vadd.f32 %v674, %v1287
      %v1289 = vpop.f32.mrf.mxu0
      %v1290 = vadd.f32 %v674, %v1289
      %1291 = vmatmul.bf16.gmra.mxu0 %v756
      %v1292 = vpop.f32.mrf.mxu0
      %v1293 = vadd.f32 %v674, %v1292
      %v1294 = vpop.f32.mrf.mxu0
      %v1295 = vadd.f32 %v674, %v1294
      %1296 = vmatmul.bf16.gmra.mxu0 %v762
      %v1297 = vpop.f32.mrf.mxu0
      %v1298 = vadd.f32 %v674, %v1297
      %v1299 = vpop.f32.mrf.mxu0
      %v1300 = vadd.f32 %v674, %v1299
      %1301 = vmatmul.bf16.gmra.mxu0 %v768
      %v1302 = vpop.f32.mrf.mxu0
      %v1303 = vadd.f32 %v674, %v1302
      %v1304 = vpop.f32.mrf.mxu0
      %v1305 = vadd.f32 %v674, %v1304
      %1306 = vdwg.mxu0
      %1307 = vmatpush.bf16.msra.mxu0 %v1116
      %1308 = vmatpush.bf16.msra.mxu0 %v1114
      %1309 = vmatpush.bf16.msra.mxu0 %v1112
      %1310 = vmatpush.bf16.msra.mxu0 %v1110
      %1311 = vmatpush.bf16.msra.mxu0 %v1108
      %1312 = vmatpush.bf16.msra.mxu0 %v1106
      %1313 = vmatpush.bf16.msra.mxu0 %v1104
      %1314 = vmatpush.bf16.msra.mxu0 %v1102
      %1315 = vmatmul.bf16.gmra.mxu0 %v751
      %v1316 = vpop.f32.mrf.mxu0
      %v1317 = vadd.f32 %v1288, %v1316
      %v1318 = vpop.f32.mrf.mxu0
      %v1319 = vadd.f32 %v1290, %v1318
      %1320 = vmatmul.bf16.gmra.mxu0 %v757
      %v1321 = vpop.f32.mrf.mxu0
      %v1322 = vadd.f32 %v1293, %v1321
      %v1323 = vpop.f32.mrf.mxu0
      %v1324 = vadd.f32 %v1295, %v1323
      %1325 = vmatmul.bf16.gmra.mxu0 %v763
      %v1326 = vpop.f32.mrf.mxu0
      %v1327 = vadd.f32 %v1298, %v1326
      %v1328 = vpop.f32.mrf.mxu0
      %v1329 = vadd.f32 %v1300, %v1328
      %1330 = vmatmul.bf16.gmra.mxu0 %v769
      %v1331 = vpop.f32.mrf.mxu0
      %v1332 = vadd.f32 %v1303, %v1331
      %v1333 = vpop.f32.mrf.mxu0
      %v1334 = vadd.f32 %v1305, %v1333
      %1335 = vdwg.mxu0
      %1336 = vmatpush.bf16.msra.mxu0 %v1132
      %1337 = vmatpush.bf16.msra.mxu0 %v1130
      %1338 = vmatpush.bf16.msra.mxu0 %v1128
      %1339 = vmatpush.bf16.msra.mxu0 %v1126
      %1340 = vmatpush.bf16.msra.mxu0 %v1124
      %1341 = vmatpush.bf16.msra.mxu0 %v1122
      %1342 = vmatpush.bf16.msra.mxu0 %v1120
      %1343 = vmatpush.bf16.msra.mxu0 %v1118
      %1344 = vmatmul.bf16.gmra.mxu0 %v752
      %v1345 = vpop.f32.mrf.mxu0
      %v1346 = vadd.f32 %v1317, %v1345
      %v1347 = vpop.f32.mrf.mxu0
      %v1348 = vadd.f32 %v1319, %v1347
      %1349 = vmatmul.bf16.gmra.mxu0 %v758
      %v1350 = vpop.f32.mrf.mxu0
      %v1351 = vadd.f32 %v1322, %v1350
      %v1352 = vpop.f32.mrf.mxu0
      %v1353 = vadd.f32 %v1324, %v1352
      %1354 = vmatmul.bf16.gmra.mxu0 %v764
      %v1355 = vpop.f32.mrf.mxu0
      %v1356 = vadd.f32 %v1327, %v1355
      %v1357 = vpop.f32.mrf.mxu0
      %v1358 = vadd.f32 %v1329, %v1357
      %1359 = vmatmul.bf16.gmra.mxu0 %v770
      %v1360 = vpop.f32.mrf.mxu0
      %v1361 = vadd.f32 %v1332, %v1360
      %v1362 = vpop.f32.mrf.mxu0
      %v1363 = vadd.f32 %v1334, %v1362
      %1364 = vdwg.mxu0
      %1365 = vmatpush.bf16.msra.mxu0 %v1148
      %1366 = vmatpush.bf16.msra.mxu0 %v1146
      %1367 = vmatpush.bf16.msra.mxu0 %v1144
      %1368 = vmatpush.bf16.msra.mxu0 %v1142
      %1369 = vmatpush.bf16.msra.mxu0 %v1140
      %1370 = vmatpush.bf16.msra.mxu0 %v1138
      %1371 = vmatpush.bf16.msra.mxu0 %v1136
      %1372 = vmatpush.bf16.msra.mxu0 %v1134
      %1373 = vmatmul.bf16.gmra.mxu0 %v753
      %v1374 = vpop.f32.mrf.mxu0
      %v1375 = vadd.f32 %v1346, %v1374
      %v1376 = vpop.f32.mrf.mxu0
      %v1377 = vadd.f32 %v1348, %v1376
      %1378 = vmatmul.bf16.gmra.mxu0 %v759
      %v1379 = vpop.f32.mrf.mxu0
      %v1380 = vadd.f32 %v1351, %v1379
      %v1381 = vpop.f32.mrf.mxu0
      %v1382 = vadd.f32 %v1353, %v1381
      %1383 = vmatmul.bf16.gmra.mxu0 %v765
      %v1384 = vpop.f32.mrf.mxu0
      %v1385 = vadd.f32 %v1356, %v1384
      %v1386 = vpop.f32.mrf.mxu0
      %v1387 = vadd.f32 %v1358, %v1386
      %1388 = vmatmul.bf16.gmra.mxu0 %v771
      %v1389 = vpop.f32.mrf.mxu0
      %v1390 = vadd.f32 %v1361, %v1389
      %v1391 = vpop.f32.mrf.mxu0
      %v1392 = vadd.f32 %v1363, %v1391
      %1393 = vdwg.mxu0
      %1394 = vmatpush.bf16.msra.mxu0 %v1164
      %1395 = vmatpush.bf16.msra.mxu0 %v1162
      %1396 = vmatpush.bf16.msra.mxu0 %v1160
      %1397 = vmatpush.bf16.msra.mxu0 %v1158
      %1398 = vmatpush.bf16.msra.mxu0 %v1156
      %1399 = vmatpush.bf16.msra.mxu0 %v1154
      %1400 = vmatpush.bf16.msra.mxu0 %v1152
      %1401 = vmatpush.bf16.msra.mxu0 %v1150
      %1402 = vmatmul.bf16.gmra.mxu0 %v754
      %v1403 = vpop.f32.mrf.mxu0
      %v1404 = vadd.f32 %v1375, %v1403
      %v1405 = vpop.f32.mrf.mxu0
      %v1406 = vadd.f32 %v1377, %v1405
      %1407 = vmatmul.bf16.gmra.mxu0 %v760
      %v1408 = vpop.f32.mrf.mxu0
      %v1409 = vadd.f32 %v1380, %v1408
      %v1410 = vpop.f32.mrf.mxu0
      %v1411 = vadd.f32 %v1382, %v1410
      %1412 = vmatmul.bf16.gmra.mxu0 %v766
      %v1413 = vpop.f32.mrf.mxu0
      %v1414 = vadd.f32 %v1385, %v1413
      %v1415 = vpop.f32.mrf.mxu0
      %v1416 = vadd.f32 %v1387, %v1415
      %1417 = vmatmul.bf16.gmra.mxu0 %v772
      %v1418 = vpop.f32.mrf.mxu0
      %v1419 = vadd.f32 %v1390, %v1418
      %v1420 = vpop.f32.mrf.mxu0
      %v1421 = vadd.f32 %v1392, %v1420
      %1422 = vdwg.mxu0
      %1423 = vmatpush.bf16.msra.mxu0 %v1180
      %1424 = vmatpush.bf16.msra.mxu0 %v1178
      %1425 = vmatpush.bf16.msra.mxu0 %v1176
      %1426 = vmatpush.bf16.msra.mxu0 %v1174
      %1427 = vmatpush.bf16.msra.mxu0 %v1172
      %1428 = vmatpush.bf16.msra.mxu0 %v1170
      %1429 = vmatpush.bf16.msra.mxu0 %v1168
      %1430 = vmatpush.bf16.msra.mxu0 %v1166
      %1431 = vmatmul.bf16.gmra.mxu0 %v755
      %v1432 = vpop.f32.mrf.mxu0
      %v1433 = vadd.f32 %v1404, %v1432
      %v1434 = vpop.f32.mrf.mxu0
      %v1435 = vadd.f32 %v1406, %v1434
      %1436 = vmatmul.bf16.gmra.mxu0 %v761
      %v1437 = vpop.f32.mrf.mxu0
      %v1438 = vadd.f32 %v1409, %v1437
      %v1439 = vpop.f32.mrf.mxu0
      %v1440 = vadd.f32 %v1411, %v1439
      %1441 = vmatmul.bf16.gmra.mxu0 %v767
      %v1442 = vpop.f32.mrf.mxu0
      %v1443 = vadd.f32 %v1414, %v1442
      %v1444 = vpop.f32.mrf.mxu0
      %v1445 = vadd.f32 %v1416, %v1444
      %1446 = vmatmul.bf16.gmra.mxu0 %v773
      %v1447 = vpop.f32.mrf.mxu0
      %v1448 = vadd.f32 %v1419, %v1447
      %v1449 = vpop.f32.mrf.mxu0
      %v1450 = vadd.f32 %v1421, %v1449
      %1451 = vdwg.mxu0
      %1452 = vmatpush.bf16.msra.mxu0 %v1101
      %1453 = vmatpush.bf16.msra.mxu0 %v1099
      %1454 = vmatpush.bf16.msra.mxu0 %v1097
      %1455 = vmatpush.bf16.msra.mxu0 %v1095
      %1456 = vmatpush.bf16.msra.mxu0 %v1093
      %1457 = vmatpush.bf16.msra.mxu0 %v1091
      %1458 = vmatpush.bf16.msra.mxu0 %v1089
      %1459 = vmatpush.bf16.msra.mxu0 %v1087
      %1460 = vmatmul.bf16.gmra.mxu0 %v750
      %v1461 = vpop.f32.mrf.mxu0
      %v1462 = vadd.f32 %v675, %v1461
      %v1463 = vpop.f32.mrf.mxu0
      %v1464 = vadd.f32 %v675, %v1463
      %1465 = vmatmul.bf16.gmra.mxu0 %v756
      %v1466 = vpop.f32.mrf.mxu0
      %v1467 = vadd.f32 %v675, %v1466
      %v1468 = vpop.f32.mrf.mxu0
      %v1469 = vadd.f32 %v675, %v1468
      %1470 = vmatmul.bf16.gmra.mxu0 %v762
      %v1471 = vpop.f32.mrf.mxu0
      %v1472 = vadd.f32 %v675, %v1471
      %v1473 = vpop.f32.mrf.mxu0
      %v1474 = vadd.f32 %v675, %v1473
      %1475 = vmatmul.bf16.gmra.mxu0 %v768
      %v1476 = vpop.f32.mrf.mxu0
      %v1477 = vadd.f32 %v675, %v1476
      %v1478 = vpop.f32.mrf.mxu0
      %v1479 = vadd.f32 %v675, %v1478
      %1480 = vdwg.mxu0
      %1481 = vmatpush.bf16.msra.mxu0 %v1117
      %1482 = vmatpush.bf16.msra.mxu0 %v1115
      %1483 = vmatpush.bf16.msra.mxu0 %v1113
      %1484 = vmatpush.bf16.msra.mxu0 %v1111
      %1485 = vmatpush.bf16.msra.mxu0 %v1109
      %1486 = vmatpush.bf16.msra.mxu0 %v1107
      %1487 = vmatpush.bf16.msra.mxu0 %v1105
      %1488 = vmatpush.bf16.msra.mxu0 %v1103
      %1489 = vmatmul.bf16.gmra.mxu0 %v751
      %v1490 = vpop.f32.mrf.mxu0
      %v1491 = vadd.f32 %v1462, %v1490
      %v1492 = vpop.f32.mrf.mxu0
      %v1493 = vadd.f32 %v1464, %v1492
      %1494 = vmatmul.bf16.gmra.mxu0 %v757
      %v1495 = vpop.f32.mrf.mxu0
      %v1496 = vadd.f32 %v1467, %v1495
      %v1497 = vpop.f32.mrf.mxu0
      %v1498 = vadd.f32 %v1469, %v1497
      %1499 = vmatmul.bf16.gmra.mxu0 %v763
      %v1500 = vpop.f32.mrf.mxu0
      %v1501 = vadd.f32 %v1472, %v1500
      %v1502 = vpop.f32.mrf.mxu0
      %v1503 = vadd.f32 %v1474, %v1502
      %1504 = vmatmul.bf16.gmra.mxu0 %v769
      %v1505 = vpop.f32.mrf.mxu0
      %v1506 = vadd.f32 %v1477, %v1505
      %v1507 = vpop.f32.mrf.mxu0
      %v1508 = vadd.f32 %v1479, %v1507
      %1509 = vdwg.mxu0
      %1510 = vmatpush.bf16.msra.mxu0 %v1133
      %1511 = vmatpush.bf16.msra.mxu0 %v1131
      %1512 = vmatpush.bf16.msra.mxu0 %v1129
      %1513 = vmatpush.bf16.msra.mxu0 %v1127
      %1514 = vmatpush.bf16.msra.mxu0 %v1125
      %1515 = vmatpush.bf16.msra.mxu0 %v1123
      %1516 = vmatpush.bf16.msra.mxu0 %v1121
      %1517 = vmatpush.bf16.msra.mxu0 %v1119
      %1518 = vmatmul.bf16.gmra.mxu0 %v752
      %v1519 = vpop.f32.mrf.mxu0
      %v1520 = vadd.f32 %v1491, %v1519
      %v1521 = vpop.f32.mrf.mxu0
      %v1522 = vadd.f32 %v1493, %v1521
      %1523 = vmatmul.bf16.gmra.mxu0 %v758
      %v1524 = vpop.f32.mrf.mxu0
      %v1525 = vadd.f32 %v1496, %v1524
      %v1526 = vpop.f32.mrf.mxu0
      %v1527 = vadd.f32 %v1498, %v1526
      %1528 = vmatmul.bf16.gmra.mxu0 %v764
      %v1529 = vpop.f32.mrf.mxu0
      %v1530 = vadd.f32 %v1501, %v1529
      %v1531 = vpop.f32.mrf.mxu0
      %v1532 = vadd.f32 %v1503, %v1531
      %1533 = vmatmul.bf16.gmra.mxu0 %v770
      %v1534 = vpop.f32.mrf.mxu0
      %v1535 = vadd.f32 %v1506, %v1534
      %v1536 = vpop.f32.mrf.mxu0
      %v1537 = vadd.f32 %v1508, %v1536
      %1538 = vdwg.mxu0
      %1539 = vmatpush.bf16.msra.mxu0 %v1149
      %1540 = vmatpush.bf16.msra.mxu0 %v1147
      %1541 = vmatpush.bf16.msra.mxu0 %v1145
      %1542 = vmatpush.bf16.msra.mxu0 %v1143
      %1543 = vmatpush.bf16.msra.mxu0 %v1141
      %1544 = vmatpush.bf16.msra.mxu0 %v1139
      %1545 = vmatpush.bf16.msra.mxu0 %v1137
      %1546 = vmatpush.bf16.msra.mxu0 %v1135
      %1547 = vmatmul.bf16.gmra.mxu0 %v753
      %v1548 = vpop.f32.mrf.mxu0
      %v1549 = vadd.f32 %v1520, %v1548
      %v1550 = vpop.f32.mrf.mxu0
      %v1551 = vadd.f32 %v1522, %v1550
      %1552 = vmatmul.bf16.gmra.mxu0 %v759
      %v1553 = vpop.f32.mrf.mxu0
      %v1554 = vadd.f32 %v1525, %v1553
      %v1555 = vpop.f32.mrf.mxu0
      %v1556 = vadd.f32 %v1527, %v1555
      %1557 = vmatmul.bf16.gmra.mxu0 %v765
      %v1558 = vpop.f32.mrf.mxu0
      %v1559 = vadd.f32 %v1530, %v1558
      %v1560 = vpop.f32.mrf.mxu0
      %v1561 = vadd.f32 %v1532, %v1560
      %1562 = vmatmul.bf16.gmra.mxu0 %v771
      %v1563 = vpop.f32.mrf.mxu0
      %v1564 = vadd.f32 %v1535, %v1563
      %v1565 = vpop.f32.mrf.mxu0
      %v1566 = vadd.f32 %v1537, %v1565
      %1567 = vdwg.mxu0
      %1568 = vmatpush.bf16.msra.mxu0 %v1165
      %1569 = vmatpush.bf16.msra.mxu0 %v1163
      %1570 = vmatpush.bf16.msra.mxu0 %v1161
      %1571 = vmatpush.bf16.msra.mxu0 %v1159
      %1572 = vmatpush.bf16.msra.mxu0 %v1157
      %1573 = vmatpush.bf16.msra.mxu0 %v1155
      %1574 = vmatpush.bf16.msra.mxu0 %v1153
      %1575 = vmatpush.bf16.msra.mxu0 %v1151
      %1576 = vmatmul.bf16.gmra.mxu0 %v754
      %v1577 = vpop.f32.mrf.mxu0
      %v1578 = vadd.f32 %v1549, %v1577
      %v1579 = vpop.f32.mrf.mxu0
      %v1580 = vadd.f32 %v1551, %v1579
      %1581 = vmatmul.bf16.gmra.mxu0 %v760
      %v1582 = vpop.f32.mrf.mxu0
      %v1583 = vadd.f32 %v1554, %v1582
      %v1584 = vpop.f32.mrf.mxu0
      %v1585 = vadd.f32 %v1556, %v1584
      %1586 = vmatmul.bf16.gmra.mxu0 %v766
      %v1587 = vpop.f32.mrf.mxu0
      %v1588 = vadd.f32 %v1559, %v1587
      %v1589 = vpop.f32.mrf.mxu0
      %v1590 = vadd.f32 %v1561, %v1589
      %1591 = vmatmul.bf16.gmra.mxu0 %v772
      %v1592 = vpop.f32.mrf.mxu0
      %v1593 = vadd.f32 %v1564, %v1592
      %v1594 = vpop.f32.mrf.mxu0
      %v1595 = vadd.f32 %v1566, %v1594
      %1596 = vdwg.mxu0
      %1597 = vmatpush.bf16.msra.mxu0 %v1181
      %1598 = vmatpush.bf16.msra.mxu0 %v1179
      %1599 = vmatpush.bf16.msra.mxu0 %v1177
      %1600 = vmatpush.bf16.msra.mxu0 %v1175
      %1601 = vmatpush.bf16.msra.mxu0 %v1173
      %1602 = vmatpush.bf16.msra.mxu0 %v1171
      %1603 = vmatpush.bf16.msra.mxu0 %v1169
      %1604 = vmatpush.bf16.msra.mxu0 %v1167
      %1605 = vmatmul.bf16.gmra.mxu0 %v755
      %v1606 = vpop.f32.mrf.mxu0
      %v1607 = vadd.f32 %v1578, %v1606
      %v1608 = vpop.f32.mrf.mxu0
      %v1609 = vadd.f32 %v1580, %v1608
      %1610 = vmatmul.bf16.gmra.mxu0 %v761
      %v1611 = vpop.f32.mrf.mxu0
      %v1612 = vadd.f32 %v1583, %v1611
      %v1613 = vpop.f32.mrf.mxu0
      %v1614 = vadd.f32 %v1585, %v1613
      %1615 = vmatmul.bf16.gmra.mxu0 %v767
      %v1616 = vpop.f32.mrf.mxu0
      %v1617 = vadd.f32 %v1588, %v1616
      %v1618 = vpop.f32.mrf.mxu0
      %v1619 = vadd.f32 %v1590, %v1618
      %1620 = vmatmul.bf16.gmra.mxu0 %v773
      %v1621 = vpop.f32.mrf.mxu0
      %v1622 = vadd.f32 %v1593, %v1621
      %v1623 = vpop.f32.mrf.mxu0
      %v1624 = vadd.f32 %v1595, %v1623
      %1625 = vdwg.mxu0
      %1626 = vst [vmem:[#allocation2 + $0x80] sm:$0xff] %v1433
      %1627 = vst [vmem:[#allocation2 + $0x88] sm:$0xff] %v1607
      %1628 = vst [vmem:[#allocation2 + $0x90] sm:$0xff] %v1435
      %1629 = vst [vmem:[#allocation2 + $0x98] sm:$0xff] %v1609
      %1630 = vst [vmem:[#allocation2 + $0xa0] sm:$0xff] %v1438
      %1631 = vst [vmem:[#allocation2 + $0xa8] sm:$0xff] %v1612
      %1632 = vst [vmem:[#allocation2 + $0xb0] sm:$0xff] %v1440
      %1633 = vst [vmem:[#allocation2 + $0xb8] sm:$0xff] %v1614
      %1634 = vst [vmem:[#allocation2 + $0xc0] sm:$0xff] %v1443
      %1635 = vst [vmem:[#allocation2 + $0xc8] sm:$0xff] %v1617
      %1636 = vst [vmem:[#allocation2 + $0xd0] sm:$0xff] %v1445
      %1637 = vst [vmem:[#allocation2 + $0xd8] sm:$0xff] %v1619
      %1638 = vst [vmem:[#allocation2 + $0xe0] sm:$0xff] %v1448
      %1639 = vst [vmem:[#allocation2 + $0xe8] sm:$0xff] %v1622
      %1640 = vst [vmem:[#allocation2 + $0xf0] sm:$0xff] %v1450
      %1641 = vst [vmem:[#allocation2 + $0xf8] sm:$0xff] %v1624
      %v1642 = vld [vmem:[%s6] sm:$0xff]
      %v1643 = vld [vmem:[%s6 + $0x8] sm:$0xff]
      %v1644 = vld [vmem:[%s6 + $0x10] sm:$0xff]
      %v1645 = vld [vmem:[%s6 + $0x18] sm:$0xff]
      %v1646 = vld [vmem:[%s7] sm:$0xff]
      %v1647 = vld [vmem:[%s7 + $0x8] sm:$0xff]
      %v1648 = vld [vmem:[%s7 + $0x10] sm:$0xff]
      %v1649 = vld [vmem:[%s7 + $0x18] sm:$0xff]
      %v1650 = vld [vmem:[#allocation2] sm:$0xff]
      %v1651 = vld [vmem:[#allocation2 + $0x8] sm:$0xff]
      %v1652 = vld [vmem:[#allocation2 + $0xf0] sm:$0xff]
      %v1653 = vld [vmem:[#allocation2 + $0xf8] sm:$0xff]
      %vm1654 = vcmask 261120
      %v1656 = vsel %vm1654, 0.0, 0
      %1658 = vmatpush.msra.mxu0 0.0
      %1659 = vmatpush.msra.mxu0 0.0
      %1660 = vmatpush.msra.mxu0 0.0
      %1661 = vmatpush.msra.mxu0 0.0
      %1662 = vmatpush.msra.mxu0 0.0
      %1663 = vmatpush.msra.mxu0 0.0
      %1664 = vmatpush.msra.mxu0 0.0
      %1665 = vmatpush.msra.mxu0 0.0
      %1666 = vmatpush.msra.mxu0 0.0
      %1667 = vmatpush.msra.mxu0 0.0
      %1668 = vmatpush.msra.mxu0 0.0
      %1669 = vmatpush.msra.mxu0 0.0
      %1670 = vmatpush.msra.mxu0 %v1645
      %1671 = vmatpush.msra.mxu0 %v1644
      %1672 = vmatpush.msra.mxu0 %v1643
      %1673 = vmatpush.msra.mxu0 %v1642
      %1674 = vmatmul.f32.gmra.mxu0 %v1656
      %v1675 = vpop.f32.mrf.mxu0
      %v1676 = vadd.f32 0.0, %v1675
      %1677 = vdwg.mxu0
      %v1678 = vadd.f32 %v1650, %v1676
      %1679 = vmatpush.msra.mxu0 0.0
      %1680 = vmatpush.msra.mxu0 0.0
      %1681 = vmatpush.msra.mxu0 0.0
      %1682 = vmatpush.msra.mxu0 0.0
      %1683 = vmatpush.msra.mxu0 0.0
      %1684 = vmatpush.msra.mxu0 0.0
      %1685 = vmatpush.msra.mxu0 0.0
      %1686 = vmatpush.msra.mxu0 0.0
      %1687 = vmatpush.msra.mxu0 0.0
      %1688 = vmatpush.msra.mxu0 0.0
      %1689 = vmatpush.msra.mxu0 0.0
      %1690 = vmatpush.msra.mxu0 0.0
      %1691 = vmatpush.msra.mxu0 %v1649
      %1692 = vmatpush.msra.mxu0 %v1648
      %1693 = vmatpush.msra.mxu0 %v1647
      %1694 = vmatpush.msra.mxu0 %v1646
      %1695 = vmatmul.f32.gmra.mxu0 %v1656
      %v1696 = vpop.f32.mrf.mxu0
      %v1697 = vadd.f32 0.0, %v1696
      %1698 = vdwg.mxu0
      %v1699 = vadd.f32 %v1653, %v1697
      %v1700 = vxor.u32 %v1678, 2147483648
      %v1701 = vmul.f32 %v1700, 1.442695
      %v1702 = vpow.pop %v1701
      %v1703 = vadd.f32 %v1702, 1.0
      %v1704 = vrcp.pop %v1703
      %v1705 = vmul.f32 %v1703, %v1704
      %v1706 = vsub.f32 1.0, %v1705
      %v1707 = vmul.f32 %v1704, %v1706
      %v1708 = vadd.f32 %v1704, %v1707
      %vm1709 = vweird.f32 %v1703
      %vm1710 = vweird.f32 %v1704
      %vm1711 = vmor %vm1709, %vm1710
      %v1712 = vsel %vm1711, %v1704, %v1708
      %v1713 = vand.u32 2147483647, %v1703
      %vm1714 = vcmp.eq.f32.partialorder %v1713, 8.507059e+37
      %v1715 = vand.u32 %v1703, 2147483648
      %v1716 = vor.u32 1.1754944e-38, %v1715
      %v1717 = vsel %vm1714, %v1716, %v1712
      %v1718 = vmul.f32 1.0, %v1717
      %v1719 = vtanh.pop %v1678
      %v1720 = vxor.u32 %v1699, 2147483648
      %v1721 = vmul.f32 %v1720, 1.442695
      %v1722 = vpow.pop %v1721
      %v1723 = vadd.f32 %v1722, 1.0
      %v1724 = vrcp.pop %v1723
      %v1725 = vmul.f32 %v1723, %v1724
      %v1726 = vsub.f32 1.0, %v1725
      %v1727 = vmul.f32 %v1724, %v1726
      %v1728 = vadd.f32 %v1724, %v1727
      %vm1729 = vweird.f32 %v1723
      %vm1730 = vweird.f32 %v1724
      %vm1731 = vmor %vm1729, %vm1730
      %v1732 = vsel %vm1731, %v1724, %v1728
      %v1733 = vand.u32 2147483647, %v1723
      %vm1734 = vcmp.eq.f32.partialorder %v1733, 8.507059e+37
      %v1735 = vand.u32 %v1723, 2147483648
      %v1736 = vor.u32 1.1754944e-38, %v1735
      %v1737 = vsel %vm1734, %v1736, %v1732
      %v1738 = vmul.f32 1.0, %v1737
      %v1739 = vtanh.pop %v1699
      %v1740 = vmul.f32 %v1718, 0.0
      %1742 = vrot.lane.b32.xlu0 %v1719, 64
      %v1743 = vpop.permute.xlu0 %1742
      %v1745 = vmul.f32 %v1718, %v1743
      %1747 = vrot.lane.b32.xlu0 %v1745, 32
      %v1748 = vpop.permute.xlu0 %1747
      %v1750 = vadd.f32 %v1740, %v1748
      %v1751 = vmul.f32 %v1738, 0.0
      %1753 = vrot.lane.b32.xlu0 %v1739, 64
      %v1754 = vpop.permute.xlu0 %1753
      %v1756 = vmul.f32 %v1738, %v1754
      %1758 = vrot.lane.b32.xlu0 %v1756, 32
      %v1759 = vpop.permute.xlu0 %1758
      %v1761 = vadd.f32 %v1751, %v1759
      %v1762 = vtanh.pop %v1750
      %1764 = vrot.lane.b32.xlu0 %v1762, 64
      %v1765 = vpop.permute.xlu0 %1764
      %v1767 = vmul.f32 %v1718, %v1765
      %v1768 = vtanh.pop %v1761
      %1770 = vrot.lane.b32.xlu0 %v1768, 64
      %v1771 = vpop.permute.xlu0 %1770
      %v1773 = vmul.f32 %v1738, %v1771
      %v1774 = vadd.f32 %v1767, 0.0
      %v1775 = vadd.f32 %v1773, 0.0
      %v1776 = vld [vmem:[#allocation2 + $0x10] sm:$0xff]
      %v1777 = vld [vmem:[#allocation2 + $0x18] sm:$0xff]
      %v1778 = vld [vmem:[#allocation2 + $0xe0] sm:$0xff]
      %v1779 = vld [vmem:[#allocation2 + $0xe8] sm:$0xff]
      %1781 = vrot.lane.b32.xlu0 %v1767, 32
      %v1782 = vpop.permute.xlu0 %1781
      %v1783 = vsel %vm1654, %v1782, 0
      %1785 = vmatpush.msra.mxu0 0.0
      %1786 = vmatpush.msra.mxu0 0.0
      %1787 = vmatpush.msra.mxu0 0.0
      %1788 = vmatpush.msra.mxu0 0.0
      %1789 = vmatpush.msra.mxu0 0.0
      %1790 = vmatpush.msra.mxu0 0.0
      %1791 = vmatpush.msra.mxu0 0.0
      %1792 = vmatpush.msra.mxu0 0.0
      %1793 = vmatpush.msra.mxu0 0.0
      %1794 = vmatpush.msra.mxu0 0.0
      %1795 = vmatpush.msra.mxu0 0.0
      %1796 = vmatpush.msra.mxu0 0.0
      %1797 = vmatpush.msra.mxu0 %v1645
      %1798 = vmatpush.msra.mxu0 %v1644
      %1799 = vmatpush.msra.mxu0 %v1643
      %1800 = vmatpush.msra.mxu0 %v1642
      %1801 = vmatmul.f32.gmra.mxu0 %v1783
      %v1802 = vpop.f32.mrf.mxu0
      %v1803 = vadd.f32 0.0, %v1802
      %1804 = vdwg.mxu0
      %v1805 = vadd.f32 %v1776, %v1803
      %1807 = vrot.lane.b32.xlu0 %v1773, 32
      %v1808 = vpop.permute.xlu0 %1807
      %v1809 = vsel %vm1654, %v1808, 0
      %1811 = vmatpush.msra.mxu0 0.0
      %1812 = vmatpush.msra.mxu0 0.0
      %1813 = vmatpush.msra.mxu0 0.0
      %1814 = vmatpush.msra.mxu0 0.0
      %1815 = vmatpush.msra.mxu0 0.0
      %1816 = vmatpush.msra.mxu0 0.0
      %1817 = vmatpush.msra.mxu0 0.0
      %1818 = vmatpush.msra.mxu0 0.0
      %1819 = vmatpush.msra.mxu0 0.0
      %1820 = vmatpush.msra.mxu0 0.0
      %1821 = vmatpush.msra.mxu0 0.0
      %1822 = vmatpush.msra.mxu0 0.0
      %1823 = vmatpush.msra.mxu0 %v1649
      %1824 = vmatpush.msra.mxu0 %v1648
      %1825 = vmatpush.msra.mxu0 %v1647
      %1826 = vmatpush.msra.mxu0 %v1646
      %1827 = vmatmul.f32.gmra.mxu0 %v1809
      %v1828 = vpop.f32.mrf.mxu0
      %v1829 = vadd.f32 0.0, %v1828
      %1830 = vdwg.mxu0
      %v1831 = vadd.f32 %v1779, %v1829
      %v1832 = vxor.u32 %v1805, 2147483648
      %v1833 = vmul.f32 %v1832, 1.442695
      %v1834 = vpow.pop %v1833
      %v1835 = vadd.f32 %v1834, 1.0
      %v1836 = vrcp.pop %v1835
      %v1837 = vmul.f32 %v1835, %v1836
      %v1838 = vsub.f32 1.0, %v1837
      %v1839 = vmul.f32 %v1836, %v1838
      %v1840 = vadd.f32 %v1836, %v1839
      %vm1841 = vweird.f32 %v1835
      %vm1842 = vweird.f32 %v1836
      %vm1843 = vmor %vm1841, %vm1842
      %v1844 = vsel %vm1843, %v1836, %v1840
      %v1845 = vand.u32 2147483647, %v1835
      %vm1846 = vcmp.eq.f32.partialorder %v1845, 8.507059e+37
      %v1847 = vand.u32 %v1835, 2147483648
      %v1848 = vor.u32 1.1754944e-38, %v1847
      %v1849 = vsel %vm1846, %v1848, %v1844
      %v1850 = vmul.f32 1.0, %v1849
      %v1851 = vtanh.pop %v1805
      %v1852 = vxor.u32 %v1831, 2147483648
      %v1853 = vmul.f32 %v1852, 1.442695
      %v1854 = vpow.pop %v1853
      %v1855 = vadd.f32 %v1854, 1.0
      %v1856 = vrcp.pop %v1855
      %v1857 = vmul.f32 %v1855, %v1856
      %v1858 = vsub.f32 1.0, %v1857
      %v1859 = vmul.f32 %v1856, %v1858
      %v1860 = vadd.f32 %v1856, %v1859
      %vm1861 = vweird.f32 %v1855
      %vm1862 = vweird.f32 %v1856
      %vm1863 = vmor %vm1861, %vm1862
      %v1864 = vsel %vm1863, %v1856, %v1860
      %v1865 = vand.u32 2147483647, %v1855
      %vm1866 = vcmp.eq.f32.partialorder %v1865, 8.507059e+37
      %v1867 = vand.u32 %v1855, 2147483648
      %v1868 = vor.u32 1.1754944e-38, %v1867
      %v1869 = vsel %vm1866, %v1868, %v1864
      %v1870 = vmul.f32 1.0, %v1869
      %v1871 = vtanh.pop %v1831
      %v1872 = vmul.f32 %v1850, %v1750
      %1874 = vrot.lane.b32.xlu0 %v1851, 64
      %v1875 = vpop.permute.xlu0 %1874
      %v1877 = vmul.f32 %v1850, %v1875
      %1879 = vrot.lane.b32.xlu0 %v1877, 32
      %v1880 = vpop.permute.xlu0 %1879
      %v1882 = vadd.f32 %v1872, %v1880
      %v1883 = vmul.f32 %v1870, %v1761
      %1885 = vrot.lane.b32.xlu0 %v1871, 64
      %v1886 = vpop.permute.xlu0 %1885
      %v1888 = vmul.f32 %v1870, %v1886
      %1890 = vrot.lane.b32.xlu0 %v1888, 32
      %v1891 = vpop.permute.xlu0 %1890
      %v1893 = vadd.f32 %v1883, %v1891
      %v1894 = vtanh.pop %v1882
      %1896 = vrot.lane.b32.xlu0 %v1894, 64
      %v1897 = vpop.permute.xlu0 %1896
      %v1899 = vmul.f32 %v1850, %v1897
      %v1900 = vtanh.pop %v1893
      %1902 = vrot.lane.b32.xlu0 %v1900, 64
      %v1903 = vpop.permute.xlu0 %1902
      %v1905 = vmul.f32 %v1870, %v1903
      %v1906 = vadd.f32 %v1774, %v1899
      %v1907 = vadd.f32 %v1775, %v1905
      %v1908 = vld [vmem:[#allocation2 + $0x20] sm:$0xff]
      %v1909 = vld [vmem:[#allocation2 + $0x28] sm:$0xff]
      %v1910 = vld [vmem:[#allocation2 + $0xd0] sm:$0xff]
      %v1911 = vld [vmem:[#allocation2 + $0xd8] sm:$0xff]
      %1913 = vrot.lane.b32.xlu0 %v1899, 32
      %v1914 = vpop.permute.xlu0 %1913
      %v1915 = vsel %vm1654, %v1914, 0
      %1917 = vmatpush.msra.mxu0 0.0
      %1918 = vmatpush.msra.mxu0 0.0
      %1919 = vmatpush.msra.mxu0 0.0
      %1920 = vmatpush.msra.mxu0 0.0
      %1921 = vmatpush.msra.mxu0 0.0
      %1922 = vmatpush.msra.mxu0 0.0
      %1923 = vmatpush.msra.mxu0 0.0
      %1924 = vmatpush.msra.mxu0 0.0
      %1925 = vmatpush.msra.mxu0 0.0
      %1926 = vmatpush.msra.mxu0 0.0
      %1927 = vmatpush.msra.mxu0 0.0
      %1928 = vmatpush.msra.mxu0 0.0
      %1929 = vmatpush.msra.mxu0 %v1645
      %1930 = vmatpush.msra.mxu0 %v1644
      %1931 = vmatpush.msra.mxu0 %v1643
      %1932 = vmatpush.msra.mxu0 %v1642
      %1933 = vmatmul.f32.gmra.mxu0 %v1915
      %v1934 = vpop.f32.mrf.mxu0
      %v1935 = vadd.f32 0.0, %v1934
      %1936 = vdwg.mxu0
      %v1937 = vadd.f32 %v1908, %v1935
      %1939 = vrot.lane.b32.xlu0 %v1905, 32
      %v1940 = vpop.permute.xlu0 %1939
      %v1941 = vsel %vm1654, %v1940, 0
      %1943 = vmatpush.msra.mxu0 0.0
      %1944 = vmatpush.msra.mxu0 0.0
      %1945 = vmatpush.msra.mxu0 0.0
      %1946 = vmatpush.msra.mxu0 0.0
      %1947 = vmatpush.msra.mxu0 0.0
      %1948 = vmatpush.msra.mxu0 0.0
      %1949 = vmatpush.msra.mxu0 0.0
      %1950 = vmatpush.msra.mxu0 0.0
      %1951 = vmatpush.msra.mxu0 0.0
      %1952 = vmatpush.msra.mxu0 0.0
      %1953 = vmatpush.msra.mxu0 0.0
      %1954 = vmatpush.msra.mxu0 0.0
      %1955 = vmatpush.msra.mxu0 %v1649
      %1956 = vmatpush.msra.mxu0 %v1648
      %1957 = vmatpush.msra.mxu0 %v1647
      %1958 = vmatpush.msra.mxu0 %v1646
      %1959 = vmatmul.f32.gmra.mxu0 %v1941
      %v1960 = vpop.f32.mrf.mxu0
      %v1961 = vadd.f32 0.0, %v1960
      %1962 = vdwg.mxu0
      %v1963 = vadd.f32 %v1911, %v1961
      %v1964 = vxor.u32 %v1937, 2147483648
      %v1965 = vmul.f32 %v1964, 1.442695
      %v1966 = vpow.pop %v1965
      %v1967 = vadd.f32 %v1966, 1.0
      %v1968 = vrcp.pop %v1967
      %v1969 = vmul.f32 %v1967, %v1968
      %v1970 = vsub.f32 1.0, %v1969
      %v1971 = vmul.f32 %v1968, %v1970
      %v1972 = vadd.f32 %v1968, %v1971
      %vm1973 = vweird.f32 %v1967
      %vm1974 = vweird.f32 %v1968
      %vm1975 = vmor %vm1973, %vm1974
      %v1976 = vsel %vm1975, %v1968, %v1972
      %v1977 = vand.u32 2147483647, %v1967
      %vm1978 = vcmp.eq.f32.partialorder %v1977, 8.507059e+37
      %v1979 = vand.u32 %v1967, 2147483648
      %v1980 = vor.u32 1.1754944e-38, %v1979
      %v1981 = vsel %vm1978, %v1980, %v1976
      %v1982 = vmul.f32 1.0, %v1981
      %v1983 = vtanh.pop %v1937
      %v1984 = vxor.u32 %v1963, 2147483648
      %v1985 = vmul.f32 %v1984, 1.442695
      %v1986 = vpow.pop %v1985
      %v1987 = vadd.f32 %v1986, 1.0
      %v1988 = vrcp.pop %v1987
      %v1989 = vmul.f32 %v1987, %v1988
      %v1990 = vsub.f32 1.0, %v1989
      %v1991 = vmul.f32 %v1988, %v1990
      %v1992 = vadd.f32 %v1988, %v1991
      %vm1993 = vweird.f32 %v1987
      %vm1994 = vweird.f32 %v1988
      %vm1995 = vmor %vm1993, %vm1994
      %v1996 = vsel %vm1995, %v1988, %v1992
      %v1997 = vand.u32 2147483647, %v1987
      %vm1998 = vcmp.eq.f32.partialorder %v1997, 8.507059e+37
      %v1999 = vand.u32 %v1987, 2147483648
      %v2000 = vor.u32 1.1754944e-38, %v1999
      %v2001 = vsel %vm1998, %v2000, %v1996
      %v2002 = vmul.f32 1.0, %v2001
      %v2003 = vtanh.pop %v1963
      %v2004 = vmul.f32 %v1982, %v1882
      %2006 = vrot.lane.b32.xlu0 %v1983, 64
      %v2007 = vpop.permute.xlu0 %2006
      %v2009 = vmul.f32 %v1982, %v2007
      %2011 = vrot.lane.b32.xlu0 %v2009, 32
      %v2012 = vpop.permute.xlu0 %2011
      %v2014 = vadd.f32 %v2004, %v2012
      %v2015 = vmul.f32 %v2002, %v1893
      %2017 = vrot.lane.b32.xlu0 %v2003, 64
      %v2018 = vpop.permute.xlu0 %2017
      %v2020 = vmul.f32 %v2002, %v2018
      %2022 = vrot.lane.b32.xlu0 %v2020, 32
      %v2023 = vpop.permute.xlu0 %2022
      %v2025 = vadd.f32 %v2015, %v2023
      %v2026 = vtanh.pop %v2014
      %2028 = vrot.lane.b32.xlu0 %v2026, 64
      %v2029 = vpop.permute.xlu0 %2028
      %v2031 = vmul.f32 %v1982, %v2029
      %v2032 = vtanh.pop %v2025
      %2034 = vrot.lane.b32.xlu0 %v2032, 64
      %v2035 = vpop.permute.xlu0 %2034
      %v2037 = vmul.f32 %v2002, %v2035
      %v2038 = vadd.f32 %v1906, %v2031
      %v2039 = vadd.f32 %v1907, %v2037
      %v2040 = vld [vmem:[#allocation2 + $0x30] sm:$0xff]
      %v2041 = vld [vmem:[#allocation2 + $0x38] sm:$0xff]
      %v2042 = vld [vmem:[#allocation2 + $0xc0] sm:$0xff]
      %v2043 = vld [vmem:[#allocation2 + $0xc8] sm:$0xff]
      %2045 = vrot.lane.b32.xlu0 %v2031, 32
      %v2046 = vpop.permute.xlu0 %2045
      %v2047 = vsel %vm1654, %v2046, 0
      %2049 = vmatpush.msra.mxu0 0.0
      %2050 = vmatpush.msra.mxu0 0.0
      %2051 = vmatpush.msra.mxu0 0.0
      %2052 = vmatpush.msra.mxu0 0.0
      %2053 = vmatpush.msra.mxu0 0.0
      %2054 = vmatpush.msra.mxu0 0.0
      %2055 = vmatpush.msra.mxu0 0.0
      %2056 = vmatpush.msra.mxu0 0.0
      %2057 = vmatpush.msra.mxu0 0.0
      %2058 = vmatpush.msra.mxu0 0.0
      %2059 = vmatpush.msra.mxu0 0.0
      %2060 = vmatpush.msra.mxu0 0.0
      %2061 = vmatpush.msra.mxu0 %v1645
      %2062 = vmatpush.msra.mxu0 %v1644
      %2063 = vmatpush.msra.mxu0 %v1643
      %2064 = vmatpush.msra.mxu0 %v1642
      %2065 = vmatmul.f32.gmra.mxu0 %v2047
      %v2066 = vpop.f32.mrf.mxu0
      %v2067 = vadd.f32 0.0, %v2066
      %2068 = vdwg.mxu0
      %v2069 = vadd.f32 %v2040, %v2067
      %2071 = vrot.lane.b32.xlu0 %v2037, 32
      %v2072 = vpop.permute.xlu0 %2071
      %v2073 = vsel %vm1654, %v2072, 0
      %2075 = vmatpush.msra.mxu0 0.0
      %2076 = vmatpush.msra.mxu0 0.0
      %2077 = vmatpush.msra.mxu0 0.0
      %2078 = vmatpush.msra.mxu0 0.0
      %2079 = vmatpush.msra.mxu0 0.0
      %2080 = vmatpush.msra.mxu0 0.0
      %2081 = vmatpush.msra.mxu0 0.0
      %2082 = vmatpush.msra.mxu0 0.0
      %2083 = vmatpush.msra.mxu0 0.0
      %2084 = vmatpush.msra.mxu0 0.0
      %2085 = vmatpush.msra.mxu0 0.0
      %2086 = vmatpush.msra.mxu0 0.0
      %2087 = vmatpush.msra.mxu0 %v1649
      %2088 = vmatpush.msra.mxu0 %v1648
      %2089 = vmatpush.msra.mxu0 %v1647
      %2090 = vmatpush.msra.mxu0 %v1646
      %2091 = vmatmul.f32.gmra.mxu0 %v2073
      %v2092 = vpop.f32.mrf.mxu0
      %v2093 = vadd.f32 0.0, %v2092
      %2094 = vdwg.mxu0
      %v2095 = vadd.f32 %v2043, %v2093
      %v2096 = vxor.u32 %v2069, 2147483648
      %v2097 = vmul.f32 %v2096, 1.442695
      %v2098 = vpow.pop %v2097
      %v2099 = vadd.f32 %v2098, 1.0
      %v2100 = vrcp.pop %v2099
      %v2101 = vmul.f32 %v2099, %v2100
      %v2102 = vsub.f32 1.0, %v2101
      %v2103 = vmul.f32 %v2100, %v2102
      %v2104 = vadd.f32 %v2100, %v2103
      %vm2105 = vweird.f32 %v2099
      %vm2106 = vweird.f32 %v2100
      %vm2107 = vmor %vm2105, %vm2106
      %v2108 = vsel %vm2107, %v2100, %v2104
      %v2109 = vand.u32 2147483647, %v2099
      %vm2110 = vcmp.eq.f32.partialorder %v2109, 8.507059e+37
      %v2111 = vand.u32 %v2099, 2147483648
      %v2112 = vor.u32 1.1754944e-38, %v2111
      %v2113 = vsel %vm2110, %v2112, %v2108
      %v2114 = vmul.f32 1.0, %v2113
      %v2115 = vtanh.pop %v2069
      %v2116 = vxor.u32 %v2095, 2147483648
      %v2117 = vmul.f32 %v2116, 1.442695
      %v2118 = vpow.pop %v2117
      %v2119 = vadd.f32 %v2118, 1.0
      %v2120 = vrcp.pop %v2119
      %v2121 = vmul.f32 %v2119, %v2120
      %v2122 = vsub.f32 1.0, %v2121
      %v2123 = vmul.f32 %v2120, %v2122
      %v2124 = vadd.f32 %v2120, %v2123
      %vm2125 = vweird.f32 %v2119
      %vm2126 = vweird.f32 %v2120
      %vm2127 = vmor %vm2125, %vm2126
      %v2128 = vsel %vm2127, %v2120, %v2124
      %v2129 = vand.u32 2147483647, %v2119
      %vm2130 = vcmp.eq.f32.partialorder %v2129, 8.507059e+37
      %v2131 = vand.u32 %v2119, 2147483648
      %v2132 = vor.u32 1.1754944e-38, %v2131
      %v2133 = vsel %vm2130, %v2132, %v2128
      %v2134 = vmul.f32 1.0, %v2133
      %v2135 = vtanh.pop %v2095
      %v2136 = vmul.f32 %v2114, %v2014
      %2138 = vrot.lane.b32.xlu0 %v2115, 64
      %v2139 = vpop.permute.xlu0 %2138
      %v2141 = vmul.f32 %v2114, %v2139
      %2143 = vrot.lane.b32.xlu0 %v2141, 32
      %v2144 = vpop.permute.xlu0 %2143
      %v2146 = vadd.f32 %v2136, %v2144
      %v2147 = vmul.f32 %v2134, %v2025
      %2149 = vrot.lane.b32.xlu0 %v2135, 64
      %v2150 = vpop.permute.xlu0 %2149
      %v2152 = vmul.f32 %v2134, %v2150
      %2154 = vrot.lane.b32.xlu0 %v2152, 32
      %v2155 = vpop.permute.xlu0 %2154
      %v2157 = vadd.f32 %v2147, %v2155
      %v2158 = vtanh.pop %v2146
      %2160 = vrot.lane.b32.xlu0 %v2158, 64
      %v2161 = vpop.permute.xlu0 %2160
      %v2163 = vmul.f32 %v2114, %v2161
      %v2164 = vtanh.pop %v2157
      %2166 = vrot.lane.b32.xlu0 %v2164, 64
      %v2167 = vpop.permute.xlu0 %2166
      %v2169 = vmul.f32 %v2134, %v2167
      %v2170 = vadd.f32 %v2038, %v2163
      %v2171 = vadd.f32 %v2039, %v2169
      %v2172 = vld [vmem:[#allocation2 + $0x40] sm:$0xff]
      %v2173 = vld [vmem:[#allocation2 + $0x48] sm:$0xff]
      %v2174 = vld [vmem:[#allocation2 + $0xb0] sm:$0xff]
      %v2175 = vld [vmem:[#allocation2 + $0xb8] sm:$0xff]
      %2177 = vrot.lane.b32.xlu0 %v2163, 32
      %v2178 = vpop.permute.xlu0 %2177
      %v2179 = vsel %vm1654, %v2178, 0
      %2181 = vmatpush.msra.mxu0 0.0
      %2182 = vmatpush.msra.mxu0 0.0
      %2183 = vmatpush.msra.mxu0 0.0
      %2184 = vmatpush.msra.mxu0 0.0
      %2185 = vmatpush.msra.mxu0 0.0
      %2186 = vmatpush.msra.mxu0 0.0
      %2187 = vmatpush.msra.mxu0 0.0
      %2188 = vmatpush.msra.mxu0 0.0
      %2189 = vmatpush.msra.mxu0 0.0
      %2190 = vmatpush.msra.mxu0 0.0
      %2191 = vmatpush.msra.mxu0 0.0
      %2192 = vmatpush.msra.mxu0 0.0
      %2193 = vmatpush.msra.mxu0 %v1645
      %2194 = vmatpush.msra.mxu0 %v1644
      %2195 = vmatpush.msra.mxu0 %v1643
      %2196 = vmatpush.msra.mxu0 %v1642
      %2197 = vmatmul.f32.gmra.mxu0 %v2179
      %v2198 = vpop.f32.mrf.mxu0
      %v2199 = vadd.f32 0.0, %v2198
      %2200 = vdwg.mxu0
      %v2201 = vadd.f32 %v2172, %v2199
      %2203 = vrot.lane.b32.xlu0 %v2169, 32
      %v2204 = vpop.permute.xlu0 %2203
      %v2205 = vsel %vm1654, %v2204, 0
      %2207 = vmatpush.msra.mxu0 0.0
      %2208 = vmatpush.msra.mxu0 0.0
      %2209 = vmatpush.msra.mxu0 0.0
      %2210 = vmatpush.msra.mxu0 0.0
      %2211 = vmatpush.msra.mxu0 0.0
      %2212 = vmatpush.msra.mxu0 0.0
      %2213 = vmatpush.msra.mxu0 0.0
      %2214 = vmatpush.msra.mxu0 0.0
      %2215 = vmatpush.msra.mxu0 0.0
      %2216 = vmatpush.msra.mxu0 0.0
      %2217 = vmatpush.msra.mxu0 0.0
      %2218 = vmatpush.msra.mxu0 0.0
      %2219 = vmatpush.msra.mxu0 %v1649
      %2220 = vmatpush.msra.mxu0 %v1648
      %2221 = vmatpush.msra.mxu0 %v1647
      %2222 = vmatpush.msra.mxu0 %v1646
      %2223 = vmatmul.f32.gmra.mxu0 %v2205
      %v2224 = vpop.f32.mrf.mxu0
      %v2225 = vadd.f32 0.0, %v2224
      %2226 = vdwg.mxu0
      %v2227 = vadd.f32 %v2175, %v2225
      %v2228 = vxor.u32 %v2201, 2147483648
      %v2229 = vmul.f32 %v2228, 1.442695
      %v2230 = vpow.pop %v2229
      %v2231 = vadd.f32 %v2230, 1.0
      %v2232 = vrcp.pop %v2231
      %v2233 = vmul.f32 %v2231, %v2232
      %v2234 = vsub.f32 1.0, %v2233
      %v2235 = vmul.f32 %v2232, %v2234
      %v2236 = vadd.f32 %v2232, %v2235
      %vm2237 = vweird.f32 %v2231
      %vm2238 = vweird.f32 %v2232
      %vm2239 = vmor %vm2237, %vm2238
      %v2240 = vsel %vm2239, %v2232, %v2236
      %v2241 = vand.u32 2147483647, %v2231
      %vm2242 = vcmp.eq.f32.partialorder %v2241, 8.507059e+37
      %v2243 = vand.u32 %v2231, 2147483648
      %v2244 = vor.u32 1.1754944e-38, %v2243
      %v2245 = vsel %vm2242, %v2244, %v2240
      %v2246 = vmul.f32 1.0, %v2245
      %v2247 = vtanh.pop %v2201
      %v2248 = vxor.u32 %v2227, 2147483648
      %v2249 = vmul.f32 %v2248, 1.442695
      %v2250 = vpow.pop %v2249
      %v2251 = vadd.f32 %v2250, 1.0
      %v2252 = vrcp.pop %v2251
      %v2253 = vmul.f32 %v2251, %v2252
      %v2254 = vsub.f32 1.0, %v2253
      %v2255 = vmul.f32 %v2252, %v2254
      %v2256 = vadd.f32 %v2252, %v2255
      %vm2257 = vweird.f32 %v2251
      %vm2258 = vweird.f32 %v2252
      %vm2259 = vmor %vm2257, %vm2258
      %v2260 = vsel %vm2259, %v2252, %v2256
      %v2261 = vand.u32 2147483647, %v2251
      %vm2262 = vcmp.eq.f32.partialorder %v2261, 8.507059e+37
      %v2263 = vand.u32 %v2251, 2147483648
      %v2264 = vor.u32 1.1754944e-38, %v2263
      %v2265 = vsel %vm2262, %v2264, %v2260
      %v2266 = vmul.f32 1.0, %v2265
      %v2267 = vtanh.pop %v2227
      %v2268 = vmul.f32 %v2246, %v2146
      %2270 = vrot.lane.b32.xlu0 %v2247, 64
      %v2271 = vpop.permute.xlu0 %2270
      %v2273 = vmul.f32 %v2246, %v2271
      %2275 = vrot.lane.b32.xlu0 %v2273, 32
      %v2276 = vpop.permute.xlu0 %2275
      %v2278 = vadd.f32 %v2268, %v2276
      %v2279 = vmul.f32 %v2266, %v2157
      %2281 = vrot.lane.b32.xlu0 %v2267, 64
      %v2282 = vpop.permute.xlu0 %2281
      %v2284 = vmul.f32 %v2266, %v2282
      %2286 = vrot.lane.b32.xlu0 %v2284, 32
      %v2287 = vpop.permute.xlu0 %2286
      %v2289 = vadd.f32 %v2279, %v2287
      %v2290 = vtanh.pop %v2278
      %2292 = vrot.lane.b32.xlu0 %v2290, 64
      %v2293 = vpop.permute.xlu0 %2292
      %v2295 = vmul.f32 %v2246, %v2293
      %v2296 = vtanh.pop %v2289
      %2298 = vrot.lane.b32.xlu0 %v2296, 64
      %v2299 = vpop.permute.xlu0 %2298
      %v2301 = vmul.f32 %v2266, %v2299
      %v2302 = vadd.f32 %v2170, %v2295
      %v2303 = vadd.f32 %v2171, %v2301
      %v2304 = vld [vmem:[#allocation2 + $0x50] sm:$0xff]
      %v2305 = vld [vmem:[#allocation2 + $0x58] sm:$0xff]
      %v2306 = vld [vmem:[#allocation2 + $0xa0] sm:$0xff]
      %v2307 = vld [vmem:[#allocation2 + $0xa8] sm:$0xff]
      %2309 = vrot.lane.b32.xlu0 %v2295, 32
      %v2310 = vpop.permute.xlu0 %2309
      %v2311 = vsel %vm1654, %v2310, 0
      %2313 = vmatpush.msra.mxu0 0.0
      %2314 = vmatpush.msra.mxu0 0.0
      %2315 = vmatpush.msra.mxu0 0.0
      %2316 = vmatpush.msra.mxu0 0.0
      %2317 = vmatpush.msra.mxu0 0.0
      %2318 = vmatpush.msra.mxu0 0.0
      %2319 = vmatpush.msra.mxu0 0.0
      %2320 = vmatpush.msra.mxu0 0.0
      %2321 = vmatpush.msra.mxu0 0.0
      %2322 = vmatpush.msra.mxu0 0.0
      %2323 = vmatpush.msra.mxu0 0.0
      %2324 = vmatpush.msra.mxu0 0.0
      %2325 = vmatpush.msra.mxu0 %v1645
      %2326 = vmatpush.msra.mxu0 %v1644
      %2327 = vmatpush.msra.mxu0 %v1643
      %2328 = vmatpush.msra.mxu0 %v1642
      %2329 = vmatmul.f32.gmra.mxu0 %v2311
      %v2330 = vpop.f32.mrf.mxu0
      %v2331 = vadd.f32 0.0, %v2330
      %2332 = vdwg.mxu0
      %v2333 = vadd.f32 %v2304, %v2331
      %2335 = vrot.lane.b32.xlu0 %v2301, 32
      %v2336 = vpop.permute.xlu0 %2335
      %v2337 = vsel %vm1654, %v2336, 0
      %2339 = vmatpush.msra.mxu0 0.0
      %2340 = vmatpush.msra.mxu0 0.0
      %2341 = vmatpush.msra.mxu0 0.0
      %2342 = vmatpush.msra.mxu0 0.0
      %2343 = vmatpush.msra.mxu0 0.0
      %2344 = vmatpush.msra.mxu0 0.0
      %2345 = vmatpush.msra.mxu0 0.0
      %2346 = vmatpush.msra.mxu0 0.0
      %2347 = vmatpush.msra.mxu0 0.0
      %2348 = vmatpush.msra.mxu0 0.0
      %2349 = vmatpush.msra.mxu0 0.0
      %2350 = vmatpush.msra.mxu0 0.0
      %2351 = vmatpush.msra.mxu0 %v1649
      %2352 = vmatpush.msra.mxu0 %v1648
      %2353 = vmatpush.msra.mxu0 %v1647
      %2354 = vmatpush.msra.mxu0 %v1646
      %2355 = vmatmul.f32.gmra.mxu0 %v2337
      %v2356 = vpop.f32.mrf.mxu0
      %v2357 = vadd.f32 0.0, %v2356
      %2358 = vdwg.mxu0
      %v2359 = vadd.f32 %v2307, %v2357
      %v2360 = vxor.u32 %v2333, 2147483648
      %v2361 = vmul.f32 %v2360, 1.442695
      %v2362 = vpow.pop %v2361
      %v2363 = vadd.f32 %v2362, 1.0
      %v2364 = vrcp.pop %v2363
      %v2365 = vmul.f32 %v2363, %v2364
      %v2366 = vsub.f32 1.0, %v2365
      %v2367 = vmul.f32 %v2364, %v2366
      %v2368 = vadd.f32 %v2364, %v2367
      %vm2369 = vweird.f32 %v2363
      %vm2370 = vweird.f32 %v2364
      %vm2371 = vmor %vm2369, %vm2370
      %v2372 = vsel %vm2371, %v2364, %v2368
      %v2373 = vand.u32 2147483647, %v2363
      %vm2374 = vcmp.eq.f32.partialorder %v2373, 8.507059e+37
      %v2375 = vand.u32 %v2363, 2147483648
      %v2376 = vor.u32 1.1754944e-38, %v2375
      %v2377 = vsel %vm2374, %v2376, %v2372
      %v2378 = vmul.f32 1.0, %v2377
      %v2379 = vtanh.pop %v2333
      %v2380 = vxor.u32 %v2359, 2147483648
      %v2381 = vmul.f32 %v2380, 1.442695
      %v2382 = vpow.pop %v2381
      %v2383 = vadd.f32 %v2382, 1.0
      %v2384 = vrcp.pop %v2383
      %v2385 = vmul.f32 %v2383, %v2384
      %v2386 = vsub.f32 1.0, %v2385
      %v2387 = vmul.f32 %v2384, %v2386
      %v2388 = vadd.f32 %v2384, %v2387
      %vm2389 = vweird.f32 %v2383
      %vm2390 = vweird.f32 %v2384
      %vm2391 = vmor %vm2389, %vm2390
      %v2392 = vsel %vm2391, %v2384, %v2388
      %v2393 = vand.u32 2147483647, %v2383
      %vm2394 = vcmp.eq.f32.partialorder %v2393, 8.507059e+37
      %v2395 = vand.u32 %v2383, 2147483648
      %v2396 = vor.u32 1.1754944e-38, %v2395
      %v2397 = vsel %vm2394, %v2396, %v2392
      %v2398 = vmul.f32 1.0, %v2397
      %v2399 = vtanh.pop %v2359
      %v2400 = vmul.f32 %v2378, %v2278
      %2402 = vrot.lane.b32.xlu0 %v2379, 64
      %v2403 = vpop.permute.xlu0 %2402
      %v2405 = vmul.f32 %v2378, %v2403
      %2407 = vrot.lane.b32.xlu0 %v2405, 32
      %v2408 = vpop.permute.xlu0 %2407
      %v2410 = vadd.f32 %v2400, %v2408
      %v2411 = vmul.f32 %v2398, %v2289
      %2413 = vrot.lane.b32.xlu0 %v2399, 64
      %v2414 = vpop.permute.xlu0 %2413
      %v2416 = vmul.f32 %v2398, %v2414
      %2418 = vrot.lane.b32.xlu0 %v2416, 32
      %v2419 = vpop.permute.xlu0 %2418
      %v2421 = vadd.f32 %v2411, %v2419
      %v2422 = vtanh.pop %v2410
      %2424 = vrot.lane.b32.xlu0 %v2422, 64
      %v2425 = vpop.permute.xlu0 %2424
      %v2427 = vmul.f32 %v2378, %v2425
      %v2428 = vtanh.pop %v2421
      %2430 = vrot.lane.b32.xlu0 %v2428, 64
      %v2431 = vpop.permute.xlu0 %2430
      %v2433 = vmul.f32 %v2398, %v2431
      %v2434 = vadd.f32 %v2302, %v2427
      %v2435 = vadd.f32 %v2303, %v2433
      %v2436 = vld [vmem:[#allocation2 + $0x60] sm:$0xff]
      %v2437 = vld [vmem:[#allocation2 + $0x68] sm:$0xff]
      %v2438 = vld [vmem:[#allocation2 + $0x90] sm:$0xff]
      %v2439 = vld [vmem:[#allocation2 + $0x98] sm:$0xff]
      %2441 = vrot.lane.b32.xlu0 %v2427, 32
      %v2442 = vpop.permute.xlu0 %2441
      %v2443 = vsel %vm1654, %v2442, 0
      %2445 = vmatpush.msra.mxu0 0.0
      %2446 = vmatpush.msra.mxu0 0.0
      %2447 = vmatpush.msra.mxu0 0.0
      %2448 = vmatpush.msra.mxu0 0.0
      %2449 = vmatpush.msra.mxu0 0.0
      %2450 = vmatpush.msra.mxu0 0.0
      %2451 = vmatpush.msra.mxu0 0.0
      %2452 = vmatpush.msra.mxu0 0.0
      %2453 = vmatpush.msra.mxu0 0.0
      %2454 = vmatpush.msra.mxu0 0.0
      %2455 = vmatpush.msra.mxu0 0.0
      %2456 = vmatpush.msra.mxu0 0.0
      %2457 = vmatpush.msra.mxu0 %v1645
      %2458 = vmatpush.msra.mxu0 %v1644
      %2459 = vmatpush.msra.mxu0 %v1643
      %2460 = vmatpush.msra.mxu0 %v1642
      %2461 = vmatmul.f32.gmra.mxu0 %v2443
      %v2462 = vpop.f32.mrf.mxu0
      %v2463 = vadd.f32 0.0, %v2462
      %2464 = vdwg.mxu0
      %v2465 = vadd.f32 %v2436, %v2463
      %2467 = vrot.lane.b32.xlu0 %v2433, 32
      %v2468 = vpop.permute.xlu0 %2467
      %v2469 = vsel %vm1654, %v2468, 0
      %2471 = vmatpush.msra.mxu0 0.0
      %2472 = vmatpush.msra.mxu0 0.0
      %2473 = vmatpush.msra.mxu0 0.0
      %2474 = vmatpush.msra.mxu0 0.0
      %2475 = vmatpush.msra.mxu0 0.0
      %2476 = vmatpush.msra.mxu0 0.0
      %2477 = vmatpush.msra.mxu0 0.0
      %2478 = vmatpush.msra.mxu0 0.0
      %2479 = vmatpush.msra.mxu0 0.0
      %2480 = vmatpush.msra.mxu0 0.0
      %2481 = vmatpush.msra.mxu0 0.0
      %2482 = vmatpush.msra.mxu0 0.0
      %2483 = vmatpush.msra.mxu0 %v1649
      %2484 = vmatpush.msra.mxu0 %v1648
      %2485 = vmatpush.msra.mxu0 %v1647
      %2486 = vmatpush.msra.mxu0 %v1646
      %2487 = vmatmul.f32.gmra.mxu0 %v2469
      %v2488 = vpop.f32.mrf.mxu0
      %v2489 = vadd.f32 0.0, %v2488
      %2490 = vdwg.mxu0
      %v2491 = vadd.f32 %v2439, %v2489
      %v2492 = vxor.u32 %v2465, 2147483648
      %v2493 = vmul.f32 %v2492, 1.442695
      %v2494 = vpow.pop %v2493
      %v2495 = vadd.f32 %v2494, 1.0
      %v2496 = vrcp.pop %v2495
      %v2497 = vmul.f32 %v2495, %v2496
      %v2498 = vsub.f32 1.0, %v2497
      %v2499 = vmul.f32 %v2496, %v2498
      %v2500 = vadd.f32 %v2496, %v2499
      %vm2501 = vweird.f32 %v2495
      %vm2502 = vweird.f32 %v2496
      %vm2503 = vmor %vm2501, %vm2502
      %v2504 = vsel %vm2503, %v2496, %v2500
      %v2505 = vand.u32 2147483647, %v2495
      %vm2506 = vcmp.eq.f32.partialorder %v2505, 8.507059e+37
      %v2507 = vand.u32 %v2495, 2147483648
      %v2508 = vor.u32 1.1754944e-38, %v2507
      %v2509 = vsel %vm2506, %v2508, %v2504
      %v2510 = vmul.f32 1.0, %v2509
      %v2511 = vtanh.pop %v2465
      %v2512 = vxor.u32 %v2491, 2147483648
      %v2513 = vmul.f32 %v2512, 1.442695
      %v2514 = vpow.pop %v2513
      %v2515 = vadd.f32 %v2514, 1.0
      %v2516 = vrcp.pop %v2515
      %v2517 = vmul.f32 %v2515, %v2516
      %v2518 = vsub.f32 1.0, %v2517
      %v2519 = vmul.f32 %v2516, %v2518
      %v2520 = vadd.f32 %v2516, %v2519
      %vm2521 = vweird.f32 %v2515
      %vm2522 = vweird.f32 %v2516
      %vm2523 = vmor %vm2521, %vm2522
      %v2524 = vsel %vm2523, %v2516, %v2520
      %v2525 = vand.u32 2147483647, %v2515
      %vm2526 = vcmp.eq.f32.partialorder %v2525, 8.507059e+37
      %v2527 = vand.u32 %v2515, 2147483648
      %v2528 = vor.u32 1.1754944e-38, %v2527
      %v2529 = vsel %vm2526, %v2528, %v2524
      %v2530 = vmul.f32 1.0, %v2529
      %v2531 = vtanh.pop %v2491
      %v2532 = vmul.f32 %v2510, %v2410
      %2534 = vrot.lane.b32.xlu0 %v2511, 64
      %v2535 = vpop.permute.xlu0 %2534
      %v2537 = vmul.f32 %v2510, %v2535
      %2539 = vrot.lane.b32.xlu0 %v2537, 32
      %v2540 = vpop.permute.xlu0 %2539
      %v2542 = vadd.f32 %v2532, %v2540
      %v2543 = vmul.f32 %v2530, %v2421
      %2545 = vrot.lane.b32.xlu0 %v2531, 64
      %v2546 = vpop.permute.xlu0 %2545
      %v2548 = vmul.f32 %v2530, %v2546
      %2550 = vrot.lane.b32.xlu0 %v2548, 32
      %v2551 = vpop.permute.xlu0 %2550
      %v2553 = vadd.f32 %v2543, %v2551
      %v2554 = vtanh.pop %v2542
      %2556 = vrot.lane.b32.xlu0 %v2554, 64
      %v2557 = vpop.permute.xlu0 %2556
      %v2559 = vmul.f32 %v2510, %v2557
      %v2560 = vtanh.pop %v2553
      %2562 = vrot.lane.b32.xlu0 %v2560, 64
      %v2563 = vpop.permute.xlu0 %2562
      %v2565 = vmul.f32 %v2530, %v2563
      %v2566 = vadd.f32 %v2434, %v2559
      %v2567 = vadd.f32 %v2435, %v2565
      %v2568 = vld [vmem:[#allocation2 + $0x70] sm:$0xff]
      %v2569 = vld [vmem:[#allocation2 + $0x78] sm:$0xff]
      %v2570 = vld [vmem:[#allocation2 + $0x80] sm:$0xff]
      %v2571 = vld [vmem:[#allocation2 + $0x88] sm:$0xff]
      %2573 = vrot.lane.b32.xlu0 %v2559, 32
      %v2574 = vpop.permute.xlu0 %2573
      %v2575 = vsel %vm1654, %v2574, 0
      %2577 = vmatpush.msra.mxu0 0.0
      %2578 = vmatpush.msra.mxu0 0.0
      %2579 = vmatpush.msra.mxu0 0.0
      %2580 = vmatpush.msra.mxu0 0.0
      %2581 = vmatpush.msra.mxu0 0.0
      %2582 = vmatpush.msra.mxu0 0.0
      %2583 = vmatpush.msra.mxu0 0.0
      %2584 = vmatpush.msra.mxu0 0.0
      %2585 = vmatpush.msra.mxu0 0.0
      %2586 = vmatpush.msra.mxu0 0.0
      %2587 = vmatpush.msra.mxu0 0.0
      %2588 = vmatpush.msra.mxu0 0.0
      %2589 = vmatpush.msra.mxu0 %v1645
      %2590 = vmatpush.msra.mxu0 %v1644
      %2591 = vmatpush.msra.mxu0 %v1643
      %2592 = vmatpush.msra.mxu0 %v1642
      %2593 = vmatmul.f32.gmra.mxu0 %v2575
      %v2594 = vpop.f32.mrf.mxu0
      %v2595 = vadd.f32 0.0, %v2594
      %2596 = vdwg.mxu0
      %v2597 = vadd.f32 %v2568, %v2595
      %2599 = vrot.lane.b32.xlu0 %v2565, 32
      %v2600 = vpop.permute.xlu0 %2599
      %v2601 = vsel %vm1654, %v2600, 0
      %2603 = vmatpush.msra.mxu0 0.0
      %2604 = vmatpush.msra.mxu0 0.0
      %2605 = vmatpush.msra.mxu0 0.0
      %2606 = vmatpush.msra.mxu0 0.0
      %2607 = vmatpush.msra.mxu0 0.0
      %2608 = vmatpush.msra.mxu0 0.0
      %2609 = vmatpush.msra.mxu0 0.0
      %2610 = vmatpush.msra.mxu0 0.0
      %2611 = vmatpush.msra.mxu0 0.0
      %2612 = vmatpush.msra.mxu0 0.0
      %2613 = vmatpush.msra.mxu0 0.0
      %2614 = vmatpush.msra.mxu0 0.0
      %2615 = vmatpush.msra.mxu0 %v1649
      %2616 = vmatpush.msra.mxu0 %v1648
      %2617 = vmatpush.msra.mxu0 %v1647
      %2618 = vmatpush.msra.mxu0 %v1646
      %2619 = vmatmul.f32.gmra.mxu0 %v2601
      %v2620 = vpop.f32.mrf.mxu0
      %v2621 = vadd.f32 0.0, %v2620
      %2622 = vdwg.mxu0
      %v2623 = vadd.f32 %v2571, %v2621
      %v2624 = vxor.u32 %v2597, 2147483648
      %v2625 = vmul.f32 %v2624, 1.442695
      %v2626 = vpow.pop %v2625
      %v2627 = vadd.f32 %v2626, 1.0
      %v2628 = vrcp.pop %v2627
      %v2629 = vmul.f32 %v2627, %v2628
      %v2630 = vsub.f32 1.0, %v2629
      %v2631 = vmul.f32 %v2628, %v2630
      %v2632 = vadd.f32 %v2628, %v2631
      %vm2633 = vweird.f32 %v2627
      %vm2634 = vweird.f32 %v2628
      %vm2635 = vmor %vm2633, %vm2634
      %v2636 = vsel %vm2635, %v2628, %v2632
      %v2637 = vand.u32 2147483647, %v2627
      %vm2638 = vcmp.eq.f32.partialorder %v2637, 8.507059e+37
      %v2639 = vand.u32 %v2627, 2147483648
      %v2640 = vor.u32 1.1754944e-38, %v2639
      %v2641 = vsel %vm2638, %v2640, %v2636
      %v2642 = vmul.f32 1.0, %v2641
      %v2643 = vtanh.pop %v2597
      %v2644 = vxor.u32 %v2623, 2147483648
      %v2645 = vmul.f32 %v2644, 1.442695
      %v2646 = vpow.pop %v2645
      %v2647 = vadd.f32 %v2646, 1.0
      %v2648 = vrcp.pop %v2647
      %v2649 = vmul.f32 %v2647, %v2648
      %v2650 = vsub.f32 1.0, %v2649
      %v2651 = vmul.f32 %v2648, %v2650
      %v2652 = vadd.f32 %v2648, %v2651
      %vm2653 = vweird.f32 %v2647
      %vm2654 = vweird.f32 %v2648
      %vm2655 = vmor %vm2653, %vm2654
      %v2656 = vsel %vm2655, %v2648, %v2652
      %v2657 = vand.u32 2147483647, %v2647
      %vm2658 = vcmp.eq.f32.partialorder %v2657, 8.507059e+37
      %v2659 = vand.u32 %v2647, 2147483648
      %v2660 = vor.u32 1.1754944e-38, %v2659
      %v2661 = vsel %vm2658, %v2660, %v2656
      %v2662 = vmul.f32 1.0, %v2661
      %v2663 = vtanh.pop %v2623
      %v2664 = vmul.f32 %v2642, %v2542
      %2666 = vrot.lane.b32.xlu0 %v2643, 64
      %v2667 = vpop.permute.xlu0 %2666
      %v2669 = vmul.f32 %v2642, %v2667
      %2671 = vrot.lane.b32.xlu0 %v2669, 32
      %v2672 = vpop.permute.xlu0 %2671
      %v2674 = vadd.f32 %v2664, %v2672
      %v2675 = vmul.f32 %v2662, %v2553
      %2677 = vrot.lane.b32.xlu0 %v2663, 64
      %v2678 = vpop.permute.xlu0 %2677
      %v2680 = vmul.f32 %v2662, %v2678
      %2682 = vrot.lane.b32.xlu0 %v2680, 32
      %v2683 = vpop.permute.xlu0 %2682
      %v2685 = vadd.f32 %v2675, %v2683
      %v2686 = vtanh.pop %v2674
      %2688 = vrot.lane.b32.xlu0 %v2686, 64
      %v2689 = vpop.permute.xlu0 %2688
      %v2691 = vmul.f32 %v2642, %v2689
      %v2692 = vtanh.pop %v2685
      %2694 = vrot.lane.b32.xlu0 %v2692, 64
      %v2695 = vpop.permute.xlu0 %2694
      %v2697 = vmul.f32 %v2662, %v2695
      %v2698 = vadd.f32 %v2566, %v2691
      %v2699 = vadd.f32 %v2567, %v2697
      %2701 = vrot.lane.b32.xlu0 %v2691, 32
      %v2702 = vpop.permute.xlu0 %2701
      %v2703 = vsel %vm1654, %v2702, 0
      %2705 = vmatpush.msra.mxu0 0.0
      %2706 = vmatpush.msra.mxu0 0.0
      %2707 = vmatpush.msra.mxu0 0.0
      %2708 = vmatpush.msra.mxu0 0.0
      %2709 = vmatpush.msra.mxu0 0.0
      %2710 = vmatpush.msra.mxu0 0.0
      %2711 = vmatpush.msra.mxu0 0.0
      %2712 = vmatpush.msra.mxu0 0.0
      %2713 = vmatpush.msra.mxu0 0.0
      %2714 = vmatpush.msra.mxu0 0.0
      %2715 = vmatpush.msra.mxu0 0.0
      %2716 = vmatpush.msra.mxu0 0.0
      %2717 = vmatpush.msra.mxu0 %v1645
      %2718 = vmatpush.msra.mxu0 %v1644
      %2719 = vmatpush.msra.mxu0 %v1643
      %2720 = vmatpush.msra.mxu0 %v1642
      %2721 = vmatmul.f32.gmra.mxu0 %v2703
      %v2722 = vpop.f32.mrf.mxu0
      %v2723 = vadd.f32 0.0, %v2722
      %2724 = vdwg.mxu0
      %v2725 = vadd.f32 %v2570, %v2723
      %2727 = vrot.lane.b32.xlu0 %v2697, 32
      %v2728 = vpop.permute.xlu0 %2727
      %v2729 = vsel %vm1654, %v2728, 0
      %2731 = vmatpush.msra.mxu0 0.0
      %2732 = vmatpush.msra.mxu0 0.0
      %2733 = vmatpush.msra.mxu0 0.0
      %2734 = vmatpush.msra.mxu0 0.0
      %2735 = vmatpush.msra.mxu0 0.0
      %2736 = vmatpush.msra.mxu0 0.0
      %2737 = vmatpush.msra.mxu0 0.0
      %2738 = vmatpush.msra.mxu0 0.0
      %2739 = vmatpush.msra.mxu0 0.0
      %2740 = vmatpush.msra.mxu0 0.0
      %2741 = vmatpush.msra.mxu0 0.0
      %2742 = vmatpush.msra.mxu0 0.0
      %2743 = vmatpush.msra.mxu0 %v1649
      %2744 = vmatpush.msra.mxu0 %v1648
      %2745 = vmatpush.msra.mxu0 %v1647
      %2746 = vmatpush.msra.mxu0 %v1646
      %2747 = vmatmul.f32.gmra.mxu0 %v2729
      %v2748 = vpop.f32.mrf.mxu0
      %v2749 = vadd.f32 0.0, %v2748
      %2750 = vdwg.mxu0
      %v2751 = vadd.f32 %v2569, %v2749
      %v2752 = vxor.u32 %v2725, 2147483648
      %v2753 = vmul.f32 %v2752, 1.442695
      %v2754 = vpow.pop %v2753
      %v2755 = vadd.f32 %v2754, 1.0
      %v2756 = vrcp.pop %v2755
      %v2757 = vmul.f32 %v2755, %v2756
      %v2758 = vsub.f32 1.0, %v2757
      %v2759 = vmul.f32 %v2756, %v2758
      %v2760 = vadd.f32 %v2756, %v2759
      %vm2761 = vweird.f32 %v2755
      %vm2762 = vweird.f32 %v2756
      %vm2763 = vmor %vm2761, %vm2762
      %v2764 = vsel %vm2763, %v2756, %v2760
      %v2765 = vand.u32 2147483647, %v2755
      %vm2766 = vcmp.eq.f32.partialorder %v2765, 8.507059e+37
      %v2767 = vand.u32 %v2755, 2147483648
      %v2768 = vor.u32 1.1754944e-38, %v2767
      %v2769 = vsel %vm2766, %v2768, %v2764
      %v2770 = vmul.f32 1.0, %v2769
      %v2771 = vtanh.pop %v2725
      %v2772 = vxor.u32 %v2751, 2147483648
      %v2773 = vmul.f32 %v2772, 1.442695
      %v2774 = vpow.pop %v2773
      %v2775 = vadd.f32 %v2774, 1.0
      %v2776 = vrcp.pop %v2775
      %v2777 = vmul.f32 %v2775, %v2776
      %v2778 = vsub.f32 1.0, %v2777
      %v2779 = vmul.f32 %v2776, %v2778
      %v2780 = vadd.f32 %v2776, %v2779
      %vm2781 = vweird.f32 %v2775
      %vm2782 = vweird.f32 %v2776
      %vm2783 = vmor %vm2781, %vm2782
      %v2784 = vsel %vm2783, %v2776, %v2780
      %v2785 = vand.u32 2147483647, %v2775
      %vm2786 = vcmp.eq.f32.partialorder %v2785, 8.507059e+37
      %v2787 = vand.u32 %v2775, 2147483648
      %v2788 = vor.u32 1.1754944e-38, %v2787
      %v2789 = vsel %vm2786, %v2788, %v2784
      %v2790 = vmul.f32 1.0, %v2789
      %v2791 = vtanh.pop %v2751
      %v2792 = vmul.f32 %v2770, %v2674
      %2794 = vrot.lane.b32.xlu0 %v2771, 64
      %v2795 = vpop.permute.xlu0 %2794
      %v2797 = vmul.f32 %v2770, %v2795
      %2799 = vrot.lane.b32.xlu0 %v2797, 32
      %v2800 = vpop.permute.xlu0 %2799
      %v2802 = vadd.f32 %v2792, %v2800
      %v2803 = vmul.f32 %v2790, %v2685
      %2805 = vrot.lane.b32.xlu0 %v2791, 64
      %v2806 = vpop.permute.xlu0 %2805
      %v2808 = vmul.f32 %v2790, %v2806
      %2810 = vrot.lane.b32.xlu0 %v2808, 32
      %v2811 = vpop.permute.xlu0 %2810
      %v2813 = vadd.f32 %v2803, %v2811
      %v2814 = vtanh.pop %v2802
      %2816 = vrot.lane.b32.xlu0 %v2814, 64
      %v2817 = vpop.permute.xlu0 %2816
      %v2819 = vmul.f32 %v2770, %v2817
      %v2820 = vtanh.pop %v2813
      %2822 = vrot.lane.b32.xlu0 %v2820, 64
      %v2823 = vpop.permute.xlu0 %2822
      %v2825 = vmul.f32 %v2790, %v2823
      %v2826 = vadd.f32 %v2698, %v2819
      %v2827 = vadd.f32 %v2699, %v2825
      %2829 = vrot.lane.b32.xlu0 %v2819, 32
      %v2830 = vpop.permute.xlu0 %2829
      %v2831 = vsel %vm1654, %v2830, 0
      %2833 = vmatpush.msra.mxu0 0.0
      %2834 = vmatpush.msra.mxu0 0.0
      %2835 = vmatpush.msra.mxu0 0.0
      %2836 = vmatpush.msra.mxu0 0.0
      %2837 = vmatpush.msra.mxu0 0.0
      %2838 = vmatpush.msra.mxu0 0.0
      %2839 = vmatpush.msra.mxu0 0.0
      %2840 = vmatpush.msra.mxu0 0.0
      %2841 = vmatpush.msra.mxu0 0.0
      %2842 = vmatpush.msra.mxu0 0.0
      %2843 = vmatpush.msra.mxu0 0.0
      %2844 = vmatpush.msra.mxu0 0.0
      %2845 = vmatpush.msra.mxu0 %v1645
      %2846 = vmatpush.msra.mxu0 %v1644
      %2847 = vmatpush.msra.mxu0 %v1643
      %2848 = vmatpush.msra.mxu0 %v1642
      %2849 = vmatmul.f32.gmra.mxu0 %v2831
      %v2850 = vpop.f32.mrf.mxu0
      %v2851 = vadd.f32 0.0, %v2850
      %2852 = vdwg.mxu0
      %v2853 = vadd.f32 %v2438, %v2851
      %2855 = vrot.lane.b32.xlu0 %v2825, 32
      %v2856 = vpop.permute.xlu0 %2855
      %v2857 = vsel %vm1654, %v2856, 0
      %2859 = vmatpush.msra.mxu0 0.0
      %2860 = vmatpush.msra.mxu0 0.0
      %2861 = vmatpush.msra.mxu0 0.0
      %2862 = vmatpush.msra.mxu0 0.0
      %2863 = vmatpush.msra.mxu0 0.0
      %2864 = vmatpush.msra.mxu0 0.0
      %2865 = vmatpush.msra.mxu0 0.0
      %2866 = vmatpush.msra.mxu0 0.0
      %2867 = vmatpush.msra.mxu0 0.0
      %2868 = vmatpush.msra.mxu0 0.0
      %2869 = vmatpush.msra.mxu0 0.0
      %2870 = vmatpush.msra.mxu0 0.0
      %2871 = vmatpush.msra.mxu0 %v1649
      %2872 = vmatpush.msra.mxu0 %v1648
      %2873 = vmatpush.msra.mxu0 %v1647
      %2874 = vmatpush.msra.mxu0 %v1646
      %2875 = vmatmul.f32.gmra.mxu0 %v2857
      %v2876 = vpop.f32.mrf.mxu0
      %v2877 = vadd.f32 0.0, %v2876
      %2878 = vdwg.mxu0
      %v2879 = vadd.f32 %v2437, %v2877
      %v2880 = vxor.u32 %v2853, 2147483648
      %v2881 = vmul.f32 %v2880, 1.442695
      %v2882 = vpow.pop %v2881
      %v2883 = vadd.f32 %v2882, 1.0
      %v2884 = vrcp.pop %v2883
      %v2885 = vmul.f32 %v2883, %v2884
      %v2886 = vsub.f32 1.0, %v2885
      %v2887 = vmul.f32 %v2884, %v2886
      %v2888 = vadd.f32 %v2884, %v2887
      %vm2889 = vweird.f32 %v2883
      %vm2890 = vweird.f32 %v2884
      %vm2891 = vmor %vm2889, %vm2890
      %v2892 = vsel %vm2891, %v2884, %v2888
      %v2893 = vand.u32 2147483647, %v2883
      %vm2894 = vcmp.eq.f32.partialorder %v2893, 8.507059e+37
      %v2895 = vand.u32 %v2883, 2147483648
      %v2896 = vor.u32 1.1754944e-38, %v2895
      %v2897 = vsel %vm2894, %v2896, %v2892
      %v2898 = vmul.f32 1.0, %v2897
      %v2899 = vtanh.pop %v2853
      %v2900 = vxor.u32 %v2879, 2147483648
      %v2901 = vmul.f32 %v2900, 1.442695
      %v2902 = vpow.pop %v2901
      %v2903 = vadd.f32 %v2902, 1.0
      %v2904 = vrcp.pop %v2903
      %v2905 = vmul.f32 %v2903, %v2904
      %v2906 = vsub.f32 1.0, %v2905
      %v2907 = vmul.f32 %v2904, %v2906
      %v2908 = vadd.f32 %v2904, %v2907
      %vm2909 = vweird.f32 %v2903
      %vm2910 = vweird.f32 %v2904
      %vm2911 = vmor %vm2909, %vm2910
      %v2912 = vsel %vm2911, %v2904, %v2908
      %v2913 = vand.u32 2147483647, %v2903
      %vm2914 = vcmp.eq.f32.partialorder %v2913, 8.507059e+37
      %v2915 = vand.u32 %v2903, 2147483648
      %v2916 = vor.u32 1.1754944e-38, %v2915
      %v2917 = vsel %vm2914, %v2916, %v2912
      %v2918 = vmul.f32 1.0, %v2917
      %v2919 = vtanh.pop %v2879
      %v2920 = vmul.f32 %v2898, %v2802
      %2922 = vrot.lane.b32.xlu0 %v2899, 64
      %v2923 = vpop.permute.xlu0 %2922
      %v2925 = vmul.f32 %v2898, %v2923
      %2927 = vrot.lane.b32.xlu0 %v2925, 32
      %v2928 = vpop.permute.xlu0 %2927
      %v2930 = vadd.f32 %v2920, %v2928
      %v2931 = vmul.f32 %v2918, %v2813
      %2933 = vrot.lane.b32.xlu0 %v2919, 64
      %v2934 = vpop.permute.xlu0 %2933
      %v2936 = vmul.f32 %v2918, %v2934
      %2938 = vrot.lane.b32.xlu0 %v2936, 32
      %v2939 = vpop.permute.xlu0 %2938
      %v2941 = vadd.f32 %v2931, %v2939
      %v2942 = vtanh.pop %v2930
      %2944 = vrot.lane.b32.xlu0 %v2942, 64
      %v2945 = vpop.permute.xlu0 %2944
      %v2947 = vmul.f32 %v2898, %v2945
      %v2948 = vtanh.pop %v2941
      %2950 = vrot.lane.b32.xlu0 %v2948, 64
      %v2951 = vpop.permute.xlu0 %2950
      %v2953 = vmul.f32 %v2918, %v2951
      %v2954 = vadd.f32 %v2826, %v2947
      %v2955 = vadd.f32 %v2827, %v2953
      %2957 = vrot.lane.b32.xlu0 %v2947, 32
      %v2958 = vpop.permute.xlu0 %2957
      %v2959 = vsel %vm1654, %v2958, 0
      %2961 = vmatpush.msra.mxu0 0.0
      %2962 = vmatpush.msra.mxu0 0.0
      %2963 = vmatpush.msra.mxu0 0.0
      %2964 = vmatpush.msra.mxu0 0.0
      %2965 = vmatpush.msra.mxu0 0.0
      %2966 = vmatpush.msra.mxu0 0.0
      %2967 = vmatpush.msra.mxu0 0.0
      %2968 = vmatpush.msra.mxu0 0.0
      %2969 = vmatpush.msra.mxu0 0.0
      %2970 = vmatpush.msra.mxu0 0.0
      %2971 = vmatpush.msra.mxu0 0.0
      %2972 = vmatpush.msra.mxu0 0.0
      %2973 = vmatpush.msra.mxu0 %v1645
      %2974 = vmatpush.msra.mxu0 %v1644
      %2975 = vmatpush.msra.mxu0 %v1643
      %2976 = vmatpush.msra.mxu0 %v1642
      %2977 = vmatmul.f32.gmra.mxu0 %v2959
      %v2978 = vpop.f32.mrf.mxu0
      %v2979 = vadd.f32 0.0, %v2978
      %2980 = vdwg.mxu0
      %v2981 = vadd.f32 %v2306, %v2979
      %2983 = vrot.lane.b32.xlu0 %v2953, 32
      %v2984 = vpop.permute.xlu0 %2983
      %v2985 = vsel %vm1654, %v2984, 0
      %2987 = vmatpush.msra.mxu0 0.0
      %2988 = vmatpush.msra.mxu0 0.0
      %2989 = vmatpush.msra.mxu0 0.0
      %2990 = vmatpush.msra.mxu0 0.0
      %2991 = vmatpush.msra.mxu0 0.0
      %2992 = vmatpush.msra.mxu0 0.0
      %2993 = vmatpush.msra.mxu0 0.0
      %2994 = vmatpush.msra.mxu0 0.0
      %2995 = vmatpush.msra.mxu0 0.0
      %2996 = vmatpush.msra.mxu0 0.0
      %2997 = vmatpush.msra.mxu0 0.0
      %2998 = vmatpush.msra.mxu0 0.0
      %2999 = vmatpush.msra.mxu0 %v1649
      %3000 = vmatpush.msra.mxu0 %v1648
      %3001 = vmatpush.msra.mxu0 %v1647
      %3002 = vmatpush.msra.mxu0 %v1646
      %3003 = vmatmul.f32.gmra.mxu0 %v2985
      %v3004 = vpop.f32.mrf.mxu0
      %v3005 = vadd.f32 0.0, %v3004
      %3006 = vdwg.mxu0
      %v3007 = vadd.f32 %v2305, %v3005
      %v3008 = vxor.u32 %v2981, 2147483648
      %v3009 = vmul.f32 %v3008, 1.442695
      %v3010 = vpow.pop %v3009
      %v3011 = vadd.f32 %v3010, 1.0
      %v3012 = vrcp.pop %v3011
      %v3013 = vmul.f32 %v3011, %v3012
      %v3014 = vsub.f32 1.0, %v3013
      %v3015 = vmul.f32 %v3012, %v3014
      %v3016 = vadd.f32 %v3012, %v3015
      %vm3017 = vweird.f32 %v3011
      %vm3018 = vweird.f32 %v3012
      %vm3019 = vmor %vm3017, %vm3018
      %v3020 = vsel %vm3019, %v3012, %v3016
      %v3021 = vand.u32 2147483647, %v3011
      %vm3022 = vcmp.eq.f32.partialorder %v3021, 8.507059e+37
      %v3023 = vand.u32 %v3011, 2147483648
      %v3024 = vor.u32 1.1754944e-38, %v3023
      %v3025 = vsel %vm3022, %v3024, %v3020
      %v3026 = vmul.f32 1.0, %v3025
      %v3027 = vtanh.pop %v2981
      %v3028 = vxor.u32 %v3007, 2147483648
      %v3029 = vmul.f32 %v3028, 1.442695
      %v3030 = vpow.pop %v3029
      %v3031 = vadd.f32 %v3030, 1.0
      %v3032 = vrcp.pop %v3031
      %v3033 = vmul.f32 %v3031, %v3032
      %v3034 = vsub.f32 1.0, %v3033
      %v3035 = vmul.f32 %v3032, %v3034
      %v3036 = vadd.f32 %v3032, %v3035
      %vm3037 = vweird.f32 %v3031
      %vm3038 = vweird.f32 %v3032
      %vm3039 = vmor %vm3037, %vm3038
      %v3040 = vsel %vm3039, %v3032, %v3036
      %v3041 = vand.u32 2147483647, %v3031
      %vm3042 = vcmp.eq.f32.partialorder %v3041, 8.507059e+37
      %v3043 = vand.u32 %v3031, 2147483648
      %v3044 = vor.u32 1.1754944e-38, %v3043
      %v3045 = vsel %vm3042, %v3044, %v3040
      %v3046 = vmul.f32 1.0, %v3045
      %v3047 = vtanh.pop %v3007
      %v3048 = vmul.f32 %v3026, %v2930
      %3050 = vrot.lane.b32.xlu0 %v3027, 64
      %v3051 = vpop.permute.xlu0 %3050
      %v3053 = vmul.f32 %v3026, %v3051
      %3055 = vrot.lane.b32.xlu0 %v3053, 32
      %v3056 = vpop.permute.xlu0 %3055
      %v3058 = vadd.f32 %v3048, %v3056
      %v3059 = vmul.f32 %v3046, %v2941
      %3061 = vrot.lane.b32.xlu0 %v3047, 64
      %v3062 = vpop.permute.xlu0 %3061
      %v3064 = vmul.f32 %v3046, %v3062
      %3066 = vrot.lane.b32.xlu0 %v3064, 32
      %v3067 = vpop.permute.xlu0 %3066
      %v3069 = vadd.f32 %v3059, %v3067
      %v3070 = vtanh.pop %v3058
      %3072 = vrot.lane.b32.xlu0 %v3070, 64
      %v3073 = vpop.permute.xlu0 %3072
      %v3075 = vmul.f32 %v3026, %v3073
      %v3076 = vtanh.pop %v3069
      %3078 = vrot.lane.b32.xlu0 %v3076, 64
      %v3079 = vpop.permute.xlu0 %3078
      %v3081 = vmul.f32 %v3046, %v3079
      %v3082 = vadd.f32 %v2954, %v3075
      %v3083 = vadd.f32 %v2955, %v3081
      %3085 = vrot.lane.b32.xlu0 %v3075, 32
      %v3086 = vpop.permute.xlu0 %3085
      %v3087 = vsel %vm1654, %v3086, 0
      %3089 = vmatpush.msra.mxu0 0.0
      %3090 = vmatpush.msra.mxu0 0.0
      %3091 = vmatpush.msra.mxu0 0.0
      %3092 = vmatpush.msra.mxu0 0.0
      %3093 = vmatpush.msra.mxu0 0.0
      %3094 = vmatpush.msra.mxu0 0.0
      %3095 = vmatpush.msra.mxu0 0.0
      %3096 = vmatpush.msra.mxu0 0.0
      %3097 = vmatpush.msra.mxu0 0.0
      %3098 = vmatpush.msra.mxu0 0.0
      %3099 = vmatpush.msra.mxu0 0.0
      %3100 = vmatpush.msra.mxu0 0.0
      %3101 = vmatpush.msra.mxu0 %v1645
      %3102 = vmatpush.msra.mxu0 %v1644
      %3103 = vmatpush.msra.mxu0 %v1643
      %3104 = vmatpush.msra.mxu0 %v1642
      %3105 = vmatmul.f32.gmra.mxu0 %v3087
      %v3106 = vpop.f32.mrf.mxu0
      %v3107 = vadd.f32 0.0, %v3106
      %3108 = vdwg.mxu0
      %v3109 = vadd.f32 %v2174, %v3107
      %3111 = vrot.lane.b32.xlu0 %v3081, 32
      %v3112 = vpop.permute.xlu0 %3111
      %v3113 = vsel %vm1654, %v3112, 0
      %3115 = vmatpush.msra.mxu0 0.0
      %3116 = vmatpush.msra.mxu0 0.0
      %3117 = vmatpush.msra.mxu0 0.0
      %3118 = vmatpush.msra.mxu0 0.0
      %3119 = vmatpush.msra.mxu0 0.0
      %3120 = vmatpush.msra.mxu0 0.0
      %3121 = vmatpush.msra.mxu0 0.0
      %3122 = vmatpush.msra.mxu0 0.0
      %3123 = vmatpush.msra.mxu0 0.0
      %3124 = vmatpush.msra.mxu0 0.0
      %3125 = vmatpush.msra.mxu0 0.0
      %3126 = vmatpush.msra.mxu0 0.0
      %3127 = vmatpush.msra.mxu0 %v1649
      %3128 = vmatpush.msra.mxu0 %v1648
      %3129 = vmatpush.msra.mxu0 %v1647
      %3130 = vmatpush.msra.mxu0 %v1646
      %3131 = vmatmul.f32.gmra.mxu0 %v3113
      %v3132 = vpop.f32.mrf.mxu0
      %v3133 = vadd.f32 0.0, %v3132
      %3134 = vdwg.mxu0
      %v3135 = vadd.f32 %v2173, %v3133
      %v3136 = vxor.u32 %v3109, 2147483648
      %v3137 = vmul.f32 %v3136, 1.442695
      %v3138 = vpow.pop %v3137
      %v3139 = vadd.f32 %v3138, 1.0
      %v3140 = vrcp.pop %v3139
      %v3141 = vmul.f32 %v3139, %v3140
      %v3142 = vsub.f32 1.0, %v3141
      %v3143 = vmul.f32 %v3140, %v3142
      %v3144 = vadd.f32 %v3140, %v3143
      %vm3145 = vweird.f32 %v3139
      %vm3146 = vweird.f32 %v3140
      %vm3147 = vmor %vm3145, %vm3146
      %v3148 = vsel %vm3147, %v3140, %v3144
      %v3149 = vand.u32 2147483647, %v3139
      %vm3150 = vcmp.eq.f32.partialorder %v3149, 8.507059e+37
      %v3151 = vand.u32 %v3139, 2147483648
      %v3152 = vor.u32 1.1754944e-38, %v3151
      %v3153 = vsel %vm3150, %v3152, %v3148
      %v3154 = vmul.f32 1.0, %v3153
      %v3155 = vtanh.pop %v3109
      %v3156 = vxor.u32 %v3135, 2147483648
      %v3157 = vmul.f32 %v3156, 1.442695
      %v3158 = vpow.pop %v3157
      %v3159 = vadd.f32 %v3158, 1.0
      %v3160 = vrcp.pop %v3159
      %v3161 = vmul.f32 %v3159, %v3160
      %v3162 = vsub.f32 1.0, %v3161
      %v3163 = vmul.f32 %v3160, %v3162
      %v3164 = vadd.f32 %v3160, %v3163
      %vm3165 = vweird.f32 %v3159
      %vm3166 = vweird.f32 %v3160
      %vm3167 = vmor %vm3165, %vm3166
      %v3168 = vsel %vm3167, %v3160, %v3164
      %v3169 = vand.u32 2147483647, %v3159
      %vm3170 = vcmp.eq.f32.partialorder %v3169, 8.507059e+37
      %v3171 = vand.u32 %v3159, 2147483648
      %v3172 = vor.u32 1.1754944e-38, %v3171
      %v3173 = vsel %vm3170, %v3172, %v3168
      %v3174 = vmul.f32 1.0, %v3173
      %v3175 = vtanh.pop %v3135
      %v3176 = vmul.f32 %v3154, %v3058
      %3178 = vrot.lane.b32.xlu0 %v3155, 64
      %v3179 = vpop.permute.xlu0 %3178
      %v3181 = vmul.f32 %v3154, %v3179
      %3183 = vrot.lane.b32.xlu0 %v3181, 32
      %v3184 = vpop.permute.xlu0 %3183
      %v3186 = vadd.f32 %v3176, %v3184
      %v3187 = vmul.f32 %v3174, %v3069
      %3189 = vrot.lane.b32.xlu0 %v3175, 64
      %v3190 = vpop.permute.xlu0 %3189
      %v3192 = vmul.f32 %v3174, %v3190
      %3194 = vrot.lane.b32.xlu0 %v3192, 32
      %v3195 = vpop.permute.xlu0 %3194
      %v3197 = vadd.f32 %v3187, %v3195
      %v3198 = vtanh.pop %v3186
      %3200 = vrot.lane.b32.xlu0 %v3198, 64
      %v3201 = vpop.permute.xlu0 %3200
      %v3203 = vmul.f32 %v3154, %v3201
      %v3204 = vtanh.pop %v3197
      %3206 = vrot.lane.b32.xlu0 %v3204, 64
      %v3207 = vpop.permute.xlu0 %3206
      %v3209 = vmul.f32 %v3174, %v3207
      %v3210 = vadd.f32 %v3082, %v3203
      %v3211 = vadd.f32 %v3083, %v3209
      %3213 = vrot.lane.b32.xlu0 %v3203, 32
      %v3214 = vpop.permute.xlu0 %3213
      %v3215 = vsel %vm1654, %v3214, 0
      %3217 = vmatpush.msra.mxu0 0.0
      %3218 = vmatpush.msra.mxu0 0.0
      %3219 = vmatpush.msra.mxu0 0.0
      %3220 = vmatpush.msra.mxu0 0.0
      %3221 = vmatpush.msra.mxu0 0.0
      %3222 = vmatpush.msra.mxu0 0.0
      %3223 = vmatpush.msra.mxu0 0.0
      %3224 = vmatpush.msra.mxu0 0.0
      %3225 = vmatpush.msra.mxu0 0.0
      %3226 = vmatpush.msra.mxu0 0.0
      %3227 = vmatpush.msra.mxu0 0.0
      %3228 = vmatpush.msra.mxu0 0.0
      %3229 = vmatpush.msra.mxu0 %v1645
      %3230 = vmatpush.msra.mxu0 %v1644
      %3231 = vmatpush.msra.mxu0 %v1643
      %3232 = vmatpush.msra.mxu0 %v1642
      %3233 = vmatmul.f32.gmra.mxu0 %v3215
      %v3234 = vpop.f32.mrf.mxu0
      %v3235 = vadd.f32 0.0, %v3234
      %3236 = vdwg.mxu0
      %v3237 = vadd.f32 %v2042, %v3235
      %3239 = vrot.lane.b32.xlu0 %v3209, 32
      %v3240 = vpop.permute.xlu0 %3239
      %v3241 = vsel %vm1654, %v3240, 0
      %3243 = vmatpush.msra.mxu0 0.0
      %3244 = vmatpush.msra.mxu0 0.0
      %3245 = vmatpush.msra.mxu0 0.0
      %3246 = vmatpush.msra.mxu0 0.0
      %3247 = vmatpush.msra.mxu0 0.0
      %3248 = vmatpush.msra.mxu0 0.0
      %3249 = vmatpush.msra.mxu0 0.0
      %3250 = vmatpush.msra.mxu0 0.0
      %3251 = vmatpush.msra.mxu0 0.0
      %3252 = vmatpush.msra.mxu0 0.0
      %3253 = vmatpush.msra.mxu0 0.0
      %3254 = vmatpush.msra.mxu0 0.0
      %3255 = vmatpush.msra.mxu0 %v1649
      %3256 = vmatpush.msra.mxu0 %v1648
      %3257 = vmatpush.msra.mxu0 %v1647
      %3258 = vmatpush.msra.mxu0 %v1646
      %3259 = vmatmul.f32.gmra.mxu0 %v3241
      %v3260 = vpop.f32.mrf.mxu0
      %v3261 = vadd.f32 0.0, %v3260
      %3262 = vdwg.mxu0
      %v3263 = vadd.f32 %v2041, %v3261
      %v3264 = vxor.u32 %v3237, 2147483648
      %v3265 = vmul.f32 %v3264, 1.442695
      %v3266 = vpow.pop %v3265
      %v3267 = vadd.f32 %v3266, 1.0
      %v3268 = vrcp.pop %v3267
      %v3269 = vmul.f32 %v3267, %v3268
      %v3270 = vsub.f32 1.0, %v3269
      %v3271 = vmul.f32 %v3268, %v3270
      %v3272 = vadd.f32 %v3268, %v3271
      %vm3273 = vweird.f32 %v3267
      %vm3274 = vweird.f32 %v3268
      %vm3275 = vmor %vm3273, %vm3274
      %v3276 = vsel %vm3275, %v3268, %v3272
      %v3277 = vand.u32 2147483647, %v3267
      %vm3278 = vcmp.eq.f32.partialorder %v3277, 8.507059e+37
      %v3279 = vand.u32 %v3267, 2147483648
      %v3280 = vor.u32 1.1754944e-38, %v3279
      %v3281 = vsel %vm3278, %v3280, %v3276
      %v3282 = vmul.f32 1.0, %v3281
      %v3283 = vtanh.pop %v3237
      %v3284 = vxor.u32 %v3263, 2147483648
      %v3285 = vmul.f32 %v3284, 1.442695
      %v3286 = vpow.pop %v3285
      %v3287 = vadd.f32 %v3286, 1.0
      %v3288 = vrcp.pop %v3287
      %v3289 = vmul.f32 %v3287, %v3288
      %v3290 = vsub.f32 1.0, %v3289
      %v3291 = vmul.f32 %v3288, %v3290
      %v3292 = vadd.f32 %v3288, %v3291
      %vm3293 = vweird.f32 %v3287
      %vm3294 = vweird.f32 %v3288
      %vm3295 = vmor %vm3293, %vm3294
      %v3296 = vsel %vm3295, %v3288, %v3292
      %v3297 = vand.u32 2147483647, %v3287
      %vm3298 = vcmp.eq.f32.partialorder %v3297, 8.507059e+37
      %v3299 = vand.u32 %v3287, 2147483648
      %v3300 = vor.u32 1.1754944e-38, %v3299
      %v3301 = vsel %vm3298, %v3300, %v3296
      %v3302 = vmul.f32 1.0, %v3301
      %v3303 = vtanh.pop %v3263
      %v3304 = vmul.f32 %v3282, %v3186
      %3306 = vrot.lane.b32.xlu0 %v3283, 64
      %v3307 = vpop.permute.xlu0 %3306
      %v3309 = vmul.f32 %v3282, %v3307
      %3311 = vrot.lane.b32.xlu0 %v3309, 32
      %v3312 = vpop.permute.xlu0 %3311
      %v3314 = vadd.f32 %v3304, %v3312
      %v3315 = vmul.f32 %v3302, %v3197
      %3317 = vrot.lane.b32.xlu0 %v3303, 64
      %v3318 = vpop.permute.xlu0 %3317
      %v3320 = vmul.f32 %v3302, %v3318
      %3322 = vrot.lane.b32.xlu0 %v3320, 32
      %v3323 = vpop.permute.xlu0 %3322
      %v3325 = vadd.f32 %v3315, %v3323
      %v3326 = vtanh.pop %v3314
      %3328 = vrot.lane.b32.xlu0 %v3326, 64
      %v3329 = vpop.permute.xlu0 %3328
      %v3331 = vmul.f32 %v3282, %v3329
      %v3332 = vtanh.pop %v3325
      %3334 = vrot.lane.b32.xlu0 %v3332, 64
      %v3335 = vpop.permute.xlu0 %3334
      %v3337 = vmul.f32 %v3302, %v3335
      %v3338 = vadd.f32 %v3210, %v3331
      %v3339 = vadd.f32 %v3211, %v3337
      %3341 = vrot.lane.b32.xlu0 %v3331, 32
      %v3342 = vpop.permute.xlu0 %3341
      %v3343 = vsel %vm1654, %v3342, 0
      %3345 = vmatpush.msra.mxu0 0.0
      %3346 = vmatpush.msra.mxu0 0.0
      %3347 = vmatpush.msra.mxu0 0.0
      %3348 = vmatpush.msra.mxu0 0.0
      %3349 = vmatpush.msra.mxu0 0.0
      %3350 = vmatpush.msra.mxu0 0.0
      %3351 = vmatpush.msra.mxu0 0.0
      %3352 = vmatpush.msra.mxu0 0.0
      %3353 = vmatpush.msra.mxu0 0.0
      %3354 = vmatpush.msra.mxu0 0.0
      %3355 = vmatpush.msra.mxu0 0.0
      %3356 = vmatpush.msra.mxu0 0.0
      %3357 = vmatpush.msra.mxu0 %v1645
      %3358 = vmatpush.msra.mxu0 %v1644
      %3359 = vmatpush.msra.mxu0 %v1643
      %3360 = vmatpush.msra.mxu0 %v1642
      %3361 = vmatmul.f32.gmra.mxu0 %v3343
      %v3362 = vpop.f32.mrf.mxu0
      %v3363 = vadd.f32 0.0, %v3362
      %3364 = vdwg.mxu0
      %v3365 = vadd.f32 %v1910, %v3363
      %3367 = vrot.lane.b32.xlu0 %v3337, 32
      %v3368 = vpop.permute.xlu0 %3367
      %v3369 = vsel %vm1654, %v3368, 0
      %3371 = vmatpush.msra.mxu0 0.0
      %3372 = vmatpush.msra.mxu0 0.0
      %3373 = vmatpush.msra.mxu0 0.0
      %3374 = vmatpush.msra.mxu0 0.0
      %3375 = vmatpush.msra.mxu0 0.0
      %3376 = vmatpush.msra.mxu0 0.0
      %3377 = vmatpush.msra.mxu0 0.0
      %3378 = vmatpush.msra.mxu0 0.0
      %3379 = vmatpush.msra.mxu0 0.0
      %3380 = vmatpush.msra.mxu0 0.0
      %3381 = vmatpush.msra.mxu0 0.0
      %3382 = vmatpush.msra.mxu0 0.0
      %3383 = vmatpush.msra.mxu0 %v1649
      %3384 = vmatpush.msra.mxu0 %v1648
      %3385 = vmatpush.msra.mxu0 %v1647
      %3386 = vmatpush.msra.mxu0 %v1646
      %3387 = vmatmul.f32.gmra.mxu0 %v3369
      %v3388 = vpop.f32.mrf.mxu0
      %v3389 = vadd.f32 0.0, %v3388
      %3390 = vdwg.mxu0
      %v3391 = vadd.f32 %v1909, %v3389
      %v3392 = vxor.u32 %v3365, 2147483648
      %v3393 = vmul.f32 %v3392, 1.442695
      %v3394 = vpow.pop %v3393
      %v3395 = vadd.f32 %v3394, 1.0
      %v3396 = vrcp.pop %v3395
      %v3397 = vmul.f32 %v3395, %v3396
      %v3398 = vsub.f32 1.0, %v3397
      %v3399 = vmul.f32 %v3396, %v3398
      %v3400 = vadd.f32 %v3396, %v3399
      %vm3401 = vweird.f32 %v3395
      %vm3402 = vweird.f32 %v3396
      %vm3403 = vmor %vm3401, %vm3402
      %v3404 = vsel %vm3403, %v3396, %v3400
      %v3405 = vand.u32 2147483647, %v3395
      %vm3406 = vcmp.eq.f32.partialorder %v3405, 8.507059e+37
      %v3407 = vand.u32 %v3395, 2147483648
      %v3408 = vor.u32 1.1754944e-38, %v3407
      %v3409 = vsel %vm3406, %v3408, %v3404
      %v3410 = vmul.f32 1.0, %v3409
      %v3411 = vtanh.pop %v3365
      %v3412 = vxor.u32 %v3391, 2147483648
      %v3413 = vmul.f32 %v3412, 1.442695
      %v3414 = vpow.pop %v3413
      %v3415 = vadd.f32 %v3414, 1.0
      %v3416 = vrcp.pop %v3415
      %v3417 = vmul.f32 %v3415, %v3416
      %v3418 = vsub.f32 1.0, %v3417
      %v3419 = vmul.f32 %v3416, %v3418
      %v3420 = vadd.f32 %v3416, %v3419
      %vm3421 = vweird.f32 %v3415
      %vm3422 = vweird.f32 %v3416
      %vm3423 = vmor %vm3421, %vm3422
      %v3424 = vsel %vm3423, %v3416, %v3420
      %v3425 = vand.u32 2147483647, %v3415
      %vm3426 = vcmp.eq.f32.partialorder %v3425, 8.507059e+37
      %v3427 = vand.u32 %v3415, 2147483648
      %v3428 = vor.u32 1.1754944e-38, %v3427
      %v3429 = vsel %vm3426, %v3428, %v3424
      %v3430 = vmul.f32 1.0, %v3429
      %v3431 = vtanh.pop %v3391
      %v3432 = vmul.f32 %v3410, %v3314
      %3434 = vrot.lane.b32.xlu0 %v3411, 64
      %v3435 = vpop.permute.xlu0 %3434
      %v3437 = vmul.f32 %v3410, %v3435
      %3439 = vrot.lane.b32.xlu0 %v3437, 32
      %v3440 = vpop.permute.xlu0 %3439
      %v3442 = vadd.f32 %v3432, %v3440
      %v3443 = vmul.f32 %v3430, %v3325
      %3445 = vrot.lane.b32.xlu0 %v3431, 64
      %v3446 = vpop.permute.xlu0 %3445
      %v3448 = vmul.f32 %v3430, %v3446
      %3450 = vrot.lane.b32.xlu0 %v3448, 32
      %v3451 = vpop.permute.xlu0 %3450
      %v3453 = vadd.f32 %v3443, %v3451
      %v3454 = vtanh.pop %v3442
      %3456 = vrot.lane.b32.xlu0 %v3454, 64
      %v3457 = vpop.permute.xlu0 %3456
      %v3459 = vmul.f32 %v3410, %v3457
      %v3460 = vtanh.pop %v3453
      %3462 = vrot.lane.b32.xlu0 %v3460, 64
      %v3463 = vpop.permute.xlu0 %3462
      %v3465 = vmul.f32 %v3430, %v3463
      %v3466 = vadd.f32 %v3338, %v3459
      %v3467 = vadd.f32 %v3339, %v3465
      %3469 = vrot.lane.b32.xlu0 %v3459, 32
      %v3470 = vpop.permute.xlu0 %3469
      %v3471 = vsel %vm1654, %v3470, 0
      %3473 = vmatpush.msra.mxu0 0.0
      %3474 = vmatpush.msra.mxu0 0.0
      %3475 = vmatpush.msra.mxu0 0.0
      %3476 = vmatpush.msra.mxu0 0.0
      %3477 = vmatpush.msra.mxu0 0.0
      %3478 = vmatpush.msra.mxu0 0.0
      %3479 = vmatpush.msra.mxu0 0.0
      %3480 = vmatpush.msra.mxu0 0.0
      %3481 = vmatpush.msra.mxu0 0.0
      %3482 = vmatpush.msra.mxu0 0.0
      %3483 = vmatpush.msra.mxu0 0.0
      %3484 = vmatpush.msra.mxu0 0.0
      %3485 = vmatpush.msra.mxu0 %v1645
      %3486 = vmatpush.msra.mxu0 %v1644
      %3487 = vmatpush.msra.mxu0 %v1643
      %3488 = vmatpush.msra.mxu0 %v1642
      %3489 = vmatmul.f32.gmra.mxu0 %v3471
      %v3490 = vpop.f32.mrf.mxu0
      %v3491 = vadd.f32 0.0, %v3490
      %3492 = vdwg.mxu0
      %v3493 = vadd.f32 %v1778, %v3491
      %3495 = vrot.lane.b32.xlu0 %v3465, 32
      %v3496 = vpop.permute.xlu0 %3495
      %v3497 = vsel %vm1654, %v3496, 0
      %3499 = vmatpush.msra.mxu0 0.0
      %3500 = vmatpush.msra.mxu0 0.0
      %3501 = vmatpush.msra.mxu0 0.0
      %3502 = vmatpush.msra.mxu0 0.0
      %3503 = vmatpush.msra.mxu0 0.0
      %3504 = vmatpush.msra.mxu0 0.0
      %3505 = vmatpush.msra.mxu0 0.0
      %3506 = vmatpush.msra.mxu0 0.0
      %3507 = vmatpush.msra.mxu0 0.0
      %3508 = vmatpush.msra.mxu0 0.0
      %3509 = vmatpush.msra.mxu0 0.0
      %3510 = vmatpush.msra.mxu0 0.0
      %3511 = vmatpush.msra.mxu0 %v1649
      %3512 = vmatpush.msra.mxu0 %v1648
      %3513 = vmatpush.msra.mxu0 %v1647
      %3514 = vmatpush.msra.mxu0 %v1646
      %3515 = vmatmul.f32.gmra.mxu0 %v3497
      %v3516 = vpop.f32.mrf.mxu0
      %v3517 = vadd.f32 0.0, %v3516
      %3518 = vdwg.mxu0
      %v3519 = vadd.f32 %v1777, %v3517
      %v3520 = vxor.u32 %v3493, 2147483648
      %v3521 = vmul.f32 %v3520, 1.442695
      %v3522 = vpow.pop %v3521
      %v3523 = vadd.f32 %v3522, 1.0
      %v3524 = vrcp.pop %v3523
      %v3525 = vmul.f32 %v3523, %v3524
      %v3526 = vsub.f32 1.0, %v3525
      %v3527 = vmul.f32 %v3524, %v3526
      %v3528 = vadd.f32 %v3524, %v3527
      %vm3529 = vweird.f32 %v3523
      %vm3530 = vweird.f32 %v3524
      %vm3531 = vmor %vm3529, %vm3530
      %v3532 = vsel %vm3531, %v3524, %v3528
      %v3533 = vand.u32 2147483647, %v3523
      %vm3534 = vcmp.eq.f32.partialorder %v3533, 8.507059e+37
      %v3535 = vand.u32 %v3523, 2147483648
      %v3536 = vor.u32 1.1754944e-38, %v3535
      %v3537 = vsel %vm3534, %v3536, %v3532
      %v3538 = vmul.f32 1.0, %v3537
      %v3539 = vtanh.pop %v3493
      %v3540 = vxor.u32 %v3519, 2147483648
      %v3541 = vmul.f32 %v3540, 1.442695
      %v3542 = vpow.pop %v3541
      %v3543 = vadd.f32 %v3542, 1.0
      %v3544 = vrcp.pop %v3543
      %v3545 = vmul.f32 %v3543, %v3544
      %v3546 = vsub.f32 1.0, %v3545
      %v3547 = vmul.f32 %v3544, %v3546
      %v3548 = vadd.f32 %v3544, %v3547
      %vm3549 = vweird.f32 %v3543
      %vm3550 = vweird.f32 %v3544
      %vm3551 = vmor %vm3549, %vm3550
      %v3552 = vsel %vm3551, %v3544, %v3548
      %v3553 = vand.u32 2147483647, %v3543
      %vm3554 = vcmp.eq.f32.partialorder %v3553, 8.507059e+37
      %v3555 = vand.u32 %v3543, 2147483648
      %v3556 = vor.u32 1.1754944e-38, %v3555
      %v3557 = vsel %vm3554, %v3556, %v3552
      %v3558 = vmul.f32 1.0, %v3557
      %v3559 = vtanh.pop %v3519
      %v3560 = vmul.f32 %v3538, %v3442
      %3562 = vrot.lane.b32.xlu0 %v3539, 64
      %v3563 = vpop.permute.xlu0 %3562
      %v3565 = vmul.f32 %v3538, %v3563
      %3567 = vrot.lane.b32.xlu0 %v3565, 32
      %v3568 = vpop.permute.xlu0 %3567
      %v3570 = vadd.f32 %v3560, %v3568
      %v3571 = vmul.f32 %v3558, %v3453
      %3573 = vrot.lane.b32.xlu0 %v3559, 64
      %v3574 = vpop.permute.xlu0 %3573
      %v3576 = vmul.f32 %v3558, %v3574
      %3578 = vrot.lane.b32.xlu0 %v3576, 32
      %v3579 = vpop.permute.xlu0 %3578
      %v3581 = vadd.f32 %v3571, %v3579
      %v3582 = vtanh.pop %v3570
      %3584 = vrot.lane.b32.xlu0 %v3582, 64
      %v3585 = vpop.permute.xlu0 %3584
      %v3587 = vmul.f32 %v3538, %v3585
      %v3588 = vtanh.pop %v3581
      %3590 = vrot.lane.b32.xlu0 %v3588, 64
      %v3591 = vpop.permute.xlu0 %3590
      %v3593 = vmul.f32 %v3558, %v3591
      %v3594 = vadd.f32 %v3466, %v3587
      %v3595 = vadd.f32 %v3467, %v3593
      %3597 = vrot.lane.b32.xlu0 %v3587, 32
      %v3598 = vpop.permute.xlu0 %3597
      %v3599 = vsel %vm1654, %v3598, 0
      %3601 = vmatpush.msra.mxu0 0.0
      %3602 = vmatpush.msra.mxu0 0.0
      %3603 = vmatpush.msra.mxu0 0.0
      %3604 = vmatpush.msra.mxu0 0.0
      %3605 = vmatpush.msra.mxu0 0.0
      %3606 = vmatpush.msra.mxu0 0.0
      %3607 = vmatpush.msra.mxu0 0.0
      %3608 = vmatpush.msra.mxu0 0.0
      %3609 = vmatpush.msra.mxu0 0.0
      %3610 = vmatpush.msra.mxu0 0.0
      %3611 = vmatpush.msra.mxu0 0.0
      %3612 = vmatpush.msra.mxu0 0.0
      %3613 = vmatpush.msra.mxu0 %v1645
      %3614 = vmatpush.msra.mxu0 %v1644
      %3615 = vmatpush.msra.mxu0 %v1643
      %3616 = vmatpush.msra.mxu0 %v1642
      %3617 = vmatmul.f32.gmra.mxu0 %v3599
      %v3618 = vpop.f32.mrf.mxu0
      %v3619 = vadd.f32 0.0, %v3618
      %3620 = vdwg.mxu0
      %v3621 = vadd.f32 %v1652, %v3619
      %3623 = vrot.lane.b32.xlu0 %v3593, 32
      %v3624 = vpop.permute.xlu0 %3623
      %v3625 = vsel %vm1654, %v3624, 0
      %3627 = vmatpush.msra.mxu0 0.0
      %3628 = vmatpush.msra.mxu0 0.0
      %3629 = vmatpush.msra.mxu0 0.0
      %3630 = vmatpush.msra.mxu0 0.0
      %3631 = vmatpush.msra.mxu0 0.0
      %3632 = vmatpush.msra.mxu0 0.0
      %3633 = vmatpush.msra.mxu0 0.0
      %3634 = vmatpush.msra.mxu0 0.0
      %3635 = vmatpush.msra.mxu0 0.0
      %3636 = vmatpush.msra.mxu0 0.0
      %3637 = vmatpush.msra.mxu0 0.0
      %3638 = vmatpush.msra.mxu0 0.0
      %3639 = vmatpush.msra.mxu0 %v1649
      %3640 = vmatpush.msra.mxu0 %v1648
      %3641 = vmatpush.msra.mxu0 %v1647
      %3642 = vmatpush.msra.mxu0 %v1646
      %3643 = vmatmul.f32.gmra.mxu0 %v3625
      %v3644 = vpop.f32.mrf.mxu0
      %v3645 = vadd.f32 0.0, %v3644
      %3646 = vdwg.mxu0
      %v3647 = vadd.f32 %v1651, %v3645
      %v3648 = vxor.u32 %v3621, 2147483648
      %v3649 = vmul.f32 %v3648, 1.442695
      %v3650 = vpow.pop %v3649
      %v3651 = vadd.f32 %v3650, 1.0
      %v3652 = vrcp.pop %v3651
      %v3653 = vmul.f32 %v3651, %v3652
      %v3654 = vsub.f32 1.0, %v3653
      %v3655 = vmul.f32 %v3652, %v3654
      %v3656 = vadd.f32 %v3652, %v3655
      %vm3657 = vweird.f32 %v3651
      %vm3658 = vweird.f32 %v3652
      %vm3659 = vmor %vm3657, %vm3658
      %v3660 = vsel %vm3659, %v3652, %v3656
      %v3661 = vand.u32 2147483647, %v3651
      %vm3662 = vcmp.eq.f32.partialorder %v3661, 8.507059e+37
      %v3663 = vand.u32 %v3651, 2147483648
      %v3664 = vor.u32 1.1754944e-38, %v3663
      %v3665 = vsel %vm3662, %v3664, %v3660
      %v3666 = vmul.f32 1.0, %v3665
      %v3667 = vtanh.pop %v3621
      %v3668 = vxor.u32 %v3647, 2147483648
      %v3669 = vmul.f32 %v3668, 1.442695
      %v3670 = vpow.pop %v3669
      %v3671 = vadd.f32 %v3670, 1.0
      %v3672 = vrcp.pop %v3671
      %v3673 = vmul.f32 %v3671, %v3672
      %v3674 = vsub.f32 1.0, %v3673
      %v3675 = vmul.f32 %v3672, %v3674
      %v3676 = vadd.f32 %v3672, %v3675
      %vm3677 = vweird.f32 %v3671
      %vm3678 = vweird.f32 %v3672
      %vm3679 = vmor %vm3677, %vm3678
      %v3680 = vsel %vm3679, %v3672, %v3676
      %v3681 = vand.u32 2147483647, %v3671
      %vm3682 = vcmp.eq.f32.partialorder %v3681, 8.507059e+37
      %v3683 = vand.u32 %v3671, 2147483648
      %v3684 = vor.u32 1.1754944e-38, %v3683
      %v3685 = vsel %vm3682, %v3684, %v3680
      %v3686 = vmul.f32 1.0, %v3685
      %v3687 = vtanh.pop %v3647
      %v3688 = vmul.f32 %v3666, %v3570
      %3690 = vrot.lane.b32.xlu0 %v3667, 64
      %v3691 = vpop.permute.xlu0 %3690
      %v3693 = vmul.f32 %v3666, %v3691
      %3695 = vrot.lane.b32.xlu0 %v3693, 32
      %v3696 = vpop.permute.xlu0 %3695
      %v3698 = vadd.f32 %v3688, %v3696
      %v3699 = vmul.f32 %v3686, %v3581
      %3701 = vrot.lane.b32.xlu0 %v3687, 64
      %v3702 = vpop.permute.xlu0 %3701
      %v3704 = vmul.f32 %v3686, %v3702
      %3706 = vrot.lane.b32.xlu0 %v3704, 32
      %v3707 = vpop.permute.xlu0 %3706
      %v3709 = vadd.f32 %v3699, %v3707
      %v3710 = vtanh.pop %v3698
      %3712 = vrot.lane.b32.xlu0 %v3710, 64
      %v3713 = vpop.permute.xlu0 %3712
      %v3715 = vmul.f32 %v3666, %v3713
      %v3716 = vtanh.pop %v3709
      %3718 = vrot.lane.b32.xlu0 %v3716, 64
      %v3719 = vpop.permute.xlu0 %3718
      %v3721 = vmul.f32 %v3686, %v3719
      %v3722 = vadd.f32 %v3594, %v3715
      %v3723 = vadd.f32 %v3595, %v3721
      %v3724 = vld [vmem:[%s8] sm:$0xff]
      %v3725 = vld [vmem:[%s8 + $0x8] sm:$0xff]
      %v3726 = vld [vmem:[%s8 + $0x10] sm:$0xff]
      %v3727 = vld [vmem:[%s8 + $0x18] sm:$0xff]
      %v3728 = vld [vmem:[%s9] sm:$0xff]
      %v3729 = vld [vmem:[%s9 + $0x8] sm:$0xff]
      %v3730 = vld [vmem:[%s9 + $0x10] sm:$0xff]
      %v3731 = vld [vmem:[%s9 + $0x18] sm:$0xff]
      %3733 = vrot.lane.b32.xlu0 %v3723, 32
      %v3734 = vpop.permute.xlu0 %3733
      %v3735 = vsel %vm1654, %v3734, 0
      %3737 = vmatpush.msra.mxu0 0.0
      %3738 = vmatpush.msra.mxu0 0.0
      %3739 = vmatpush.msra.mxu0 0.0
      %3740 = vmatpush.msra.mxu0 0.0
      %3741 = vmatpush.msra.mxu0 0.0
      %3742 = vmatpush.msra.mxu0 0.0
      %3743 = vmatpush.msra.mxu0 0.0
      %3744 = vmatpush.msra.mxu0 0.0
      %3745 = vmatpush.msra.mxu0 0.0
      %3746 = vmatpush.msra.mxu0 0.0
      %3747 = vmatpush.msra.mxu0 0.0
      %3748 = vmatpush.msra.mxu0 0.0
      %3749 = vmatpush.msra.mxu0 %v3731
      %3750 = vmatpush.msra.mxu0 %v3730
      %3751 = vmatpush.msra.mxu0 %v3729
      %3752 = vmatpush.msra.mxu0 %v3728
      %3753 = vmatmul.f32.gmra.mxu0 %v3735
      %v3754 = vpop.f32.mrf.mxu0
      %v3755 = vadd.f32 0.0, %v3754
      %3756 = vdwg.mxu0
      %3758 = vrot.lane.b32.xlu0 %v3722, 32
      %v3759 = vpop.permute.xlu0 %3758
      %v3760 = vsel %vm1654, %v3759, 0
      %3762 = vmatpush.msra.mxu0 0.0
      %3763 = vmatpush.msra.mxu0 0.0
      %3764 = vmatpush.msra.mxu0 0.0
      %3765 = vmatpush.msra.mxu0 0.0
      %3766 = vmatpush.msra.mxu0 0.0
      %3767 = vmatpush.msra.mxu0 0.0
      %3768 = vmatpush.msra.mxu0 0.0
      %3769 = vmatpush.msra.mxu0 0.0
      %3770 = vmatpush.msra.mxu0 0.0
      %3771 = vmatpush.msra.mxu0 0.0
      %3772 = vmatpush.msra.mxu0 0.0
      %3773 = vmatpush.msra.mxu0 0.0
      %3774 = vmatpush.msra.mxu0 %v3727
      %3775 = vmatpush.msra.mxu0 %v3726
      %3776 = vmatpush.msra.mxu0 %v3725
      %3777 = vmatpush.msra.mxu0 %v3724
      %3778 = vmatmul.f32.gmra.mxu0 %v3760
      %v3779 = vpop.f32.mrf.mxu0
      %v3780 = vadd.f32 %v3755, %v3779
      %3781 = vdwg.mxu0
      %v3782 = vmul.f32 %v3780, 0.0625
      %v3783 = vld [vmem:[%s10] sm:$0x1]
      %v3785 = vperm.slane %v3783, 0
      %v3787 = vadd.f32 %v3782, %v3785
      %v3788 = vxor.u32 %v3787, 2147483648
      %v3789 = vmul.f32 %v3788, 1.442695
      %v3790 = vpow.pop %v3789
      %v3791 = vadd.f32 %v3790, 1.0
      %v3792 = vrcp.pop %v3791
      %v3793 = vmul.f32 %v3791, %v3792
      %v3794 = vsub.f32 1.0, %v3793
      %v3795 = vmul.f32 %v3792, %v3794
      %v3796 = vadd.f32 %v3792, %v3795
      %vm3797 = vweird.f32 %v3791
      %vm3798 = vweird.f32 %v3792
      %vm3799 = vmor %vm3797, %vm3798
      %v3800 = vsel %vm3799, %v3792, %v3796
      %v3801 = vand.u32 2147483647, %v3791
      %vm3802 = vcmp.eq.f32.partialorder %v3801, 8.507059e+37
      %v3803 = vand.u32 %v3791, 2147483648
      %v3804 = vor.u32 1.1754944e-38, %v3803
      %v3805 = vsel %vm3802, %v3804, %v3800
      %v3806 = vmul.f32 1.0, %v3805
      %vm3807 = vcmask 31744
      %3808 = vst.msk [vmem:[%s404] sm:$0xff] %vm3807, %v3806
      %p3809 = scmp.lt.s32.totalorder %s22, 1
      %s3810 = scalar_select %p3809, %s22, 1
      %s3811 = smul.addr %s3810, 8
      %s3812 = scalar_lea.vmem %s11, %s3811
      // Predicated region
      $region65: #{speech_classifier_forward.1} parent=63 // pred_check
        %p3813 = pneg %p281
      $region66: #{speech_classifier_forward.1} parent=63 // pred_check_branch
        %3815 = sbr.rel (%p3813) target = $region68
      $region67: #{speech_classifier_forward.1} parent=63 // pred_region
        _
      $region68: #{speech_classifier_forward.1} parent=63 // pred_fallthru
        _
    $region64: #{speech_classifier_forward.1} parent=5 // pred_fallthru
      _
    %p3816 = scmp.le.s32.totalorder 2, %s17
    // Predicated region
    $region69: #{speech_classifier_forward.1} parent=5 // pred_check
      %p3817 = pneg %p3816
    $region70: #{speech_classifier_forward.1} parent=5 // pred_check_branch
      %3819 = sbr.rel (%p3817) target = $region72
    $region71: #{speech_classifier_forward.1} parent=5 // pred_region
      %s3820 = ssub.s32 %s17, 2
      // Predicated region
      $region73: #{speech_classifier_forward.1} parent=71 // pred_check
        %p3821 = pneg %p287
      $region74: #{speech_classifier_forward.1} parent=71 // pred_check_branch
        %3823 = sbr.rel (%p3821) target = $region76
      $region75: #{speech_classifier_forward.1} parent=71 // pred_region
        %p3824 = scmp.lt.s32.totalorder %s23, 1
        %s3825 = scalar_select %p3824, %s23, 1
        %s3826 = smul.addr %s3825, 8
        %s3827 = scalar_lea.vmem %s11, %s3826
      $region76: #{speech_classifier_forward.1} parent=71 // pred_fallthru
        _
    $region72: #{speech_classifier_forward.1} parent=5 // pred_fallthru
      _
  $region6: #{speech_classifier_forward.1} parent=0 // loop_footer
    %s21 = sadd.s32 1, %s17
  $region7: #{speech_classifier_forward.1} parent=0 // loop_footer_branch
    %16 = sbr.rel target = $region3
  $region8: #{speech_classifier_forward.1} parent=0 // loop_exit
    _

</llo_original>
